<compile_context>
chip_gen: v7x
topology: tpu7x:2x2x1
jax: 0.10.0
libtpu: 0.0.40
codegen_flags: <defaults>
</compile_context>

<pallas_src>
import math

import jax
import jax.numpy as jnp
from jax.experimental import pallas as pl
from jax.experimental.pallas import tpu as pltpu

D_MODEL = 32          # d_model
NUM_HEAD = 4          # num_head
NUM_LAYER = 2         # num_layer
VOCAB = 3             # {'<PAD>':0, '<CLS>':1, '<UNK>':2}
FEAT = 12
FFN = 4 * D_MODEL
EPS = 1e-5
NEG_BIG = -1e9        # finite mask bias -> no inf-inf NaN hazard


def _layer_norm(x, g, b):
    mu = jnp.mean(x, axis=-1, keepdims=True)
    var = jnp.mean((x - mu) ** 2, axis=-1, keepdims=True)
    return (x - mu) * jax.lax.rsqrt(var + EPS) * g + b


# ----------------------------------------------------------------------------
# Single fused kernel: embedding+PE -> 2 encoder layers -> final LN(CLS) ->
# BatchNorm + feature MLP -> classifier.  grid=(1,), whole batch per step.
# ----------------------------------------------------------------------------
def fused_forward_kernel(tok_ref, pe_ref, mask_ref, feat_ref,
                         emb_ref, wqkv_ref, wo_ref, w1_ref, w2_ref, vec_ref,
                         hmat_ref, hvec_ref, o_ref):
    B, S = mask_ref.shape
    D = D_MODEL
    H = NUM_HEAD
    hd = D // H
    N = B * S

    # --- embedding lookup (VOCAB==3 -> arithmetic blend) + positional enc. ---
    tok = tok_ref[...]                             # (B*S, 1) int32
    emb = emb_ref[...]                             # (VOCAB, D)
    is0 = (tok == 0).astype(jnp.float32)
    is1 = (tok == 1).astype(jnp.float32)
    is2 = 1.0 - is0 - is1
    x = is0 * emb[0:1, :] + is1 * emb[1:2, :] + is2 * emb[2:3, :]   # (B*S, D)
    # PE passed as (S, D): broadcast over batch inside the kernel
    x = (x.reshape(B, S, D) + pe_ref[...]).reshape(N, D)

    # key-padding bias built ONCE for all layers/heads, broadcast over queries
    bias = jnp.where(mask_ref[...] > 0.5, NEG_BIG, 0.0)[:, None, :]  # (B,1,S)

    # --- NUM_LAYER pre-norm (norm_first) transformer encoder layers ---
    for l in range(NUM_LAYER):
        vec = vec_ref[l]                           # (8, 128) packed vectors
        ln1g, ln1b = vec[0:1, :D], vec[1:2, :D]
        ln2g, ln2b = vec[2:3, :D], vec[3:4, :D]
        bqkv = vec[4:5, :3 * D]
        bo = vec[5:6, :D]
        b1 = vec[6:7, :FFN]
        b2 = vec[7:8, :D]
        wo = wo_ref[l]                             # (D, D)

        # --- self-attention block (1/sqrt(hd) already folded into Q at init) ---
        xn = _layer_norm(x, ln1g, ln1b)
        qkv = jnp.dot(xn, wqkv_ref[l], preferred_element_type=jnp.float32) + bqkv
        q = qkv[:, :D].reshape(B, S, D)
        k = qkv[:, D:2 * D].reshape(B, S, D)
        v = qkv[:, 2 * D:].reshape(B, S, D)

        attn = None
        for h in range(H):                         # static unroll over heads,
            c0 = h * hd                            # batched over B via einsum
            s = jnp.einsum('bqd,bkd->bqk',
                           q[:, :, c0:c0 + hd], k[:, :, c0:c0 + hd],
                           preferred_element_type=jnp.float32) + bias
            s = s - jnp.max(s, axis=-1, keepdims=True)
            p = jnp.exp(s)
            p = p * pl.reciprocal(jnp.sum(p, axis=-1, keepdims=True),
                                  approx=True)
            ctx = jnp.einsum('bqk,bkd->bqd', p, v[:, :, c0:c0 + hd],
                             preferred_element_type=jnp.float32)     # (B,S,hd)
            contrib = jnp.dot(ctx.reshape(N, hd), wo[c0:c0 + hd, :],
                              preferred_element_type=jnp.float32)    # (N, D)
            attn = contrib if attn is None else attn + contrib
        # TODO(synk): attention/FFN Dropout(0.2) are identity (inference mode).
        x = x + attn + bo

        # --- feed-forward block ---
        xn2 = _layer_norm(x, ln2g, ln2b)
        hdd = jnp.maximum(
            jnp.dot(xn2, w1_ref[l], preferred_element_type=jnp.float32) + b1, 0.0)
        x = x + jnp.dot(hdd, w2_ref[l], preferred_element_type=jnp.float32) + b2

    # --- head ---
    hvec = hvec_ref[...]                           # (9, 128) packed vectors
    bng, bnb = hvec[0:1, :FEAT], hvec[1:2, :FEAT]
    fb1 = hvec[2:3, :48]
    fb2 = hvec[3:4, :FEAT]
    lng, lnb = hvec[4:5, :D], hvec[5:6, :D]
    cb1 = hvec[6:7, :64]
    cb2 = hvec[7:8, :16]
    cb3 = hvec[8:9, :1]

    # BatchNorm1d with training-mode batch statistics.
    # TODO(synk): eval-mode running_mean/running_var are not modeled here
    #             (this coupling also blocks splitting the batch across cores).
    feats = feat_ref[...]                          # (B, FEAT)
    mu = jnp.mean(feats, axis=0, keepdims=True)
    var = jnp.mean((feats - mu) ** 2, axis=0, keepdims=True)
    fn = (feats - mu) * jax.lax.rsqrt(var + EPS) * bng + bnb

    fw1 = hmat_ref[0][:FEAT, :48]
    fw2 = hmat_ref[1][:48, :FEAT]
    cw1a = hmat_ref[2][:D, :64]
    cw1b = hmat_ref[3][:FEAT, :64]
    cw2 = hmat_ref[4][:64, :16]
    cw3 = hmat_ref[5][:16, :1]

    # feature_mlp: Linear(12,48) ReLU Linear(48,12) ReLU
    h1 = jnp.maximum(
        jnp.dot(fn, fw1, preferred_element_type=jnp.float32) + fb1, 0.0)
    add_feat = jnp.maximum(
        jnp.dot(h1, fw2, preferred_element_type=jnp.float32) + fb2, 0.0)

    # final encoder LayerNorm applied to the CLS token (position 0) per seq
    cls = _layer_norm(x.reshape(B, S, D)[:, 0, :], lng, lnb)

    # classifier on concat([cls, add_features]) folded into a split matmul
    # TODO(synk): Dropout(0.3) layers are identity (inference semantics).
    z = (jnp.dot(cls, cw1a, preferred_element_type=jnp.float32)
         + jnp.dot(add_feat, cw1b, preferred_element_type=jnp.float32) + cb1)
    z = jnp.maximum(z, 0.0)
    z = jnp.maximum(jnp.dot(z, cw2, preferred_element_type=jnp.float32) + cb2, 0.0)
    o_ref[...] = jnp.dot(z, cw3, preferred_element_type=jnp.float32) + cb3


# ----------------------------------------------------------------------------
# Wrapper
# ----------------------------------------------------------------------------
def _full_spec(arr):
    nd = arr.ndim
    return pl.BlockSpec(arr.shape, lambda i, _nd=nd: (0,) * _nd)


def model_forward(params, tokens, pad_mask, features):
    B, S = tokens.shape
    tok = tokens.reshape(B * S, 1).astype(jnp.int32)
    pe = PE[:S].astype(jnp.float32)                           # (S, D)
    mask = pad_mask.astype(jnp.float32)                       # (B, S)
    feats = features.astype(jnp.float32)

    args = [tok, pe, mask, feats,
            params['emb'], params['wqkv'], params['wo'],
            params['w1'], params['w2'], params['vec'],
            params['hmat'], params['hvec']]
    # TODO(synk): for large batches, split the batch over a 'parallel' grid
    #             axis (v7x dual-TC) once BatchNorm no longer couples examples.
    return pl.pallas_call(
        fused_forward_kernel,
        out_shape=jax.ShapeDtypeStruct((B, 1), jnp.float32),
        grid=(1,),
        in_specs=[_full_spec(a) for a in args],
        out_specs=pl.BlockSpec((B, 1), lambda i: (0, 0)),
        compiler_params=pltpu.CompilerParams(
            dimension_semantics=("arbitrary",)),
    )(*args)


def positional_encoding(max_len, d_model):
    pos = jnp.arange(max_len, dtype=jnp.float32)[:, None]
    div = jnp.exp(jnp.arange(0, d_model, 2, dtype=jnp.float32)
                  * (-math.log(10000.0) / d_model))
    pe = jnp.zeros((max_len, d_model), jnp.float32)
    pe = pe.at[:, 0::2].set(jnp.sin(pos * div))
    pe = pe.at[:, 1::2].set(jnp.cos(pos * div))
    return pe


PE = positional_encoding(256, D_MODEL)


def _pad_row(v, width=128):
    v = jnp.asarray(v, jnp.float32).reshape(-1)
    return jnp.zeros((1, width), jnp.float32).at[0, :v.shape[0]].set(v)


def _pad_mat(m, r=64, c=64):
    m = jnp.asarray(m, jnp.float32)
    return jnp.zeros((r, c), jnp.float32).at[:m.shape[0], :m.shape[1]].set(m)


def init_params(key):
    keys = iter(jax.random.split(key, 64))

    def lin(fan_in, fan_out):
        kw, kb = next(keys), next(keys)
        bound = 1.0 / math.sqrt(fan_in)
        w = jax.random.uniform(kw, (fan_out, fan_in), jnp.float32, -bound, bound)
        b = jax.random.uniform(kb, (fan_out,), jnp.float32, -bound, bound)
        return w, b

    emb = jax.random.normal(next(keys), (VOCAB, D_MODEL), jnp.float32)

    scale = 1.0 / math.sqrt(D_MODEL // NUM_HEAD)
    wqkv_l, wo_l, w1_l, w2_l, vec_l = [], [], [], [], []
    for _ in range(NUM_LAYER):
        wqkv, bqkv = lin(D_MODEL, 3 * D_MODEL)
        # fold 1/sqrt(head_dim) into the Q projection (rows :D in torch layout)
        wqkv = wqkv.at[:D_MODEL, :].multiply(scale)
        bqkv = bqkv.at[:D_MODEL].multiply(scale)
        wo, bo = lin(D_MODEL, D_MODEL)
        w1, b1 = lin(D_MODEL, FFN)
        w2, b2 = lin(FFN, D_MODEL)
        wqkv_l.append(wqkv.T)               # (D, 3D) -- Q columns pre-scaled
        wo_l.append(wo.T)                   # (D, D)
        w1_l.append(w1.T)                   # (D, FFN)
        w2_l.append(w2.T)                   # (FFN, D)
        vec_l.append(jnp.concatenate([
            _pad_row(jnp.ones(D_MODEL)),    # ln1_g
            _pad_row(jnp.zeros(D_MODEL)),   # ln1_b
            _pad_row(jnp.ones(D_MODEL)),    # ln2_g
            _pad_row(jnp.zeros(D_MODEL)),   # ln2_b
            _pad_row(bqkv),                 # (96,)
            _pad_row(bo),                   # (32,)
            _pad_row(b1),                   # (128,)
            _pad_row(b2),                   # (32,)
        ], axis=0))                         # (8, 128)

    fw1, fb1 = lin(FEAT, 48)
    fw2, fb2 = lin(48, FEAT)
    cw1, cb1 = lin(D_MODEL + FEAT, 64)
    cw2, cb2 = lin(64, 16)
    cw3, cb3 = lin(16, 1)

    hmat = jnp.stack([
        _pad_mat(fw1.T),                    # (12, 48)
        _pad_mat(fw2.T),                    # (48, 12)
        _pad_mat(cw1[:, :D_MODEL].T),       # (32, 64)
        _pad_mat(cw1[:, D_MODEL:].T),       # (12, 64)
        _pad_mat(cw2.T),                    # (64, 16)
        _pad_mat(cw3.T),                    # (16, 1)
    ])                                      # (6, 64, 64)

    hvec = jnp.concatenate([
        _pad_row(jnp.ones(FEAT)),           # bn_g
        _pad_row(jnp.zeros(FEAT)),          # bn_b
        _pad_row(fb1),                      # (48,)
        _pad_row(fb2),                      # (12,)
        _pad_row(jnp.ones(D_MODEL)),        # final LN gamma
        _pad_row(jnp.zeros(D_MODEL)),       # final LN beta
        _pad_row(cb1),                      # (64,)
        _pad_row(cb2),                      # (16,)
        _pad_row(cb3),                      # (1,)
    ], axis=0)                              # (9, 128)

    return dict(emb=emb,
                wqkv=jnp.stack(wqkv_l), wo=jnp.stack(wo_l),
                w1=jnp.stack(w1_l), w2=jnp.stack(w2_l),
                vec=jnp.stack(vec_l),
                hmat=hmat, hvec=hvec)


if __name__ == "__main__":
    key = jax.random.PRNGKey(0)
    kp, kf = jax.random.split(key)
    params = init_params(kp)

    B, S = 2, 8
    # tokens: CLS(=1) at position 0, PAD(=0) at padded positions
    tokens = jnp.array([[1, 2, 2, 0, 2, 2, 2, 2],
                        [1, 2, 0, 2, 2, 0, 0, 0]], dtype=jnp.int32)
    pad_mask = jnp.array([[False, False, False, False, False, False, False, False],
                          [False, False, False, False, False, True, True, True]])
    features = jax.random.normal(kf, (B, FEAT), jnp.float32)

    logits = model_forward(params, tokens, pad_mask, features)
    jax.block_until_ready(logits)
    assert logits.shape == (B, 1) and logits.dtype == jnp.float32
    print("KERNEL_OK")
</pallas_src>

<mosaic_0001>
module attributes {stable_mosaic.version = 11 : i64} {
  func.func @fused_forward_kernel(%arg0: i32, %arg1: memref<16x1xi32, #tpu.memory_space<vmem>>, %arg2: memref<8x32xf32, #tpu.memory_space<vmem>>, %arg3: memref<2x8xf32, #tpu.memory_space<vmem>>, %arg4: memref<2x12xf32, #tpu.memory_space<vmem>>, %arg5: memref<3x32xf32, #tpu.memory_space<vmem>>, %arg6: memref<2x32x96xf32, #tpu.memory_space<vmem>>, %arg7: memref<2x32x32xf32, #tpu.memory_space<vmem>>, %arg8: memref<2x32x128xf32, #tpu.memory_space<vmem>>, %arg9: memref<2x128x32xf32, #tpu.memory_space<vmem>>, %arg10: memref<2x8x128xf32, #tpu.memory_space<vmem>>, %arg11: memref<6x64x64xf32, #tpu.memory_space<vmem>>, %arg12: memref<9x128xf32, #tpu.memory_space<vmem>>, %arg13: memref<2x1xf32, #tpu.memory_space<vmem>>) attributes {dimension_semantics = [#tpu.dimension_semantics<arbitrary>], iteration_bounds = array<i64: 1>, scalar_prefetch = 0 : i64, scratch_operands = 0 : i64, tpu.core_type = #tpu.core_type<tc>, window_params = [{pipeline_mode = #tpu.pipeline_mode<synchronous>, transform_indices = @transform_0, window_bounds = array<i64: 16, 1>}, {pipeline_mode = #tpu.pipeline_mode<synchronous>, transform_indices = @transform_1, window_bounds = array<i64: 8, 32>}, {pipeline_mode = #tpu.pipeline_mode<synchronous>, transform_indices = @transform_2, window_bounds = array<i64: 2, 8>}, {pipeline_mode = #tpu.pipeline_mode<synchronous>, transform_indices = @transform_3, window_bounds = array<i64: 2, 12>}, {pipeline_mode = #tpu.pipeline_mode<synchronous>, transform_indices = @transform_4, window_bounds = array<i64: 3, 32>}, {pipeline_mode = #tpu.pipeline_mode<synchronous>, transform_indices = @transform_5, window_bounds = array<i64: 2, 32, 96>}, {pipeline_mode = #tpu.pipeline_mode<synchronous>, transform_indices = @transform_6, window_bounds = array<i64: 2, 32, 32>}, {pipeline_mode = #tpu.pipeline_mode<synchronous>, transform_indices = @transform_7, window_bounds = array<i64: 2, 32, 128>}, {pipeline_mode = #tpu.pipeline_mode<synchronous>, transform_indices = @transform_8, window_bounds = array<i64: 2, 128, 32>}, {pipeline_mode = #tpu.pipeline_mode<synchronous>, transform_indices = @transform_9, window_bounds = array<i64: 2, 8, 128>}, {pipeline_mode = #tpu.pipeline_mode<synchronous>, transform_indices = @transform_10, window_bounds = array<i64: 6, 64, 64>}, {pipeline_mode = #tpu.pipeline_mode<synchronous>, transform_indices = @transform_11, window_bounds = array<i64: 9, 128>}, {pipeline_mode = #tpu.pipeline_mode<synchronous>, transform_indices = @transform_12, window_bounds = array<i64: 2, 1>}]} {
    %c0 = arith.constant 0 : index
    %c0_0 = arith.constant 0 : index
    %0 = vector.load %arg1[%c0, %c0_0] : memref<16x1xi32, #tpu.memory_space<vmem>>, vector<16x1xi32>
    %c0_1 = arith.constant 0 : index
    %c0_2 = arith.constant 0 : index
    %1 = vector.load %arg5[%c0_1, %c0_2] : memref<3x32xf32, #tpu.memory_space<vmem>>, vector<3x32xf32>
    %c0_i32 = arith.constant 0 : i32
    %2 = vector.broadcast %c0_i32 : i32 to vector<16x1xi32>
    %3 = arith.cmpi eq, %0, %2 : vector<16x1xi32>
    %4 = arith.extui %3 : vector<16x1xi1> to vector<16x1xi32>
    %5 = arith.sitofp %4 : vector<16x1xi32> to vector<16x1xf32>
    %c1_i32 = arith.constant 1 : i32
    %6 = vector.broadcast %c1_i32 : i32 to vector<16x1xi32>
    %7 = arith.cmpi eq, %0, %6 : vector<16x1xi32>
    %8 = arith.extui %7 : vector<16x1xi1> to vector<16x1xi32>
    %9 = arith.sitofp %8 : vector<16x1xi32> to vector<16x1xf32>
    %cst = arith.constant 1.000000e+00 : f32
    %10 = vector.broadcast %cst : f32 to vector<16x1xf32>
    %11 = arith.subf %10, %5 : vector<16x1xf32>
    %12 = arith.subf %11, %9 : vector<16x1xf32>
    %13 = vector.extract_strided_slice %1 {offsets = [0, 0], sizes = [1, 32], strides = [1, 1]} : vector<3x32xf32> to vector<1x32xf32>
    %14 = vector.broadcast %5 : vector<16x1xf32> to vector<16x32xf32>
    %15 = vector.broadcast %13 : vector<1x32xf32> to vector<16x32xf32>
    %16 = arith.mulf %14, %15 : vector<16x32xf32>
    %17 = vector.extract_strided_slice %1 {offsets = [1, 0], sizes = [1, 32], strides = [1, 1]} : vector<3x32xf32> to vector<1x32xf32>
    %18 = vector.broadcast %9 : vector<16x1xf32> to vector<16x32xf32>
    %19 = vector.broadcast %17 : vector<1x32xf32> to vector<16x32xf32>
    %20 = arith.mulf %18, %19 : vector<16x32xf32>
    %21 = arith.addf %16, %20 : vector<16x32xf32>
    %22 = vector.extract_strided_slice %1 {offsets = [2, 0], sizes = [1, 32], strides = [1, 1]} : vector<3x32xf32> to vector<1x32xf32>
    %23 = vector.broadcast %12 : vector<16x1xf32> to vector<16x32xf32>
    %24 = vector.broadcast %22 : vector<1x32xf32> to vector<16x32xf32>
    %25 = arith.mulf %23, %24 : vector<16x32xf32>
    %26 = arith.addf %21, %25 : vector<16x32xf32>
    %27 = vector.shape_cast %26 : vector<16x32xf32> to vector<2x8x32xf32>
    %c0_3 = arith.constant 0 : index
    %c0_4 = arith.constant 0 : index
    %28 = vector.load %arg2[%c0_3, %c0_4] : memref<8x32xf32, #tpu.memory_space<vmem>>, vector<8x32xf32>
    %29 = vector.shape_cast %28 : vector<8x32xf32> to vector<1x8x32xf32>
    %30 = vector.broadcast %29 : vector<1x8x32xf32> to vector<2x8x32xf32>
    %31 = arith.addf %27, %30 : vector<2x8x32xf32>
    %32 = vector.shape_cast %31 : vector<2x8x32xf32> to vector<16x32xf32>
    %c0_5 = arith.constant 0 : index
    %c0_6 = arith.constant 0 : index
    %33 = vector.load %arg3[%c0_5, %c0_6] : memref<2x8xf32, #tpu.memory_space<vmem>>, vector<2x8xf32>
    %cst_7 = arith.constant 5.000000e-01 : f32
    %34 = vector.broadcast %cst_7 : f32 to vector<2x8xf32>
    %35 = arith.cmpf ogt, %33, %34 : vector<2x8xf32>
    %cst_8 = arith.constant -1.000000e+09 : f32
    %cst_9 = arith.constant 0.000000e+00 : f32
    %36 = vector.broadcast %cst_8 : f32 to vector<2x8xf32>
    %37 = vector.broadcast %cst_9 : f32 to vector<2x8xf32>
    %38 = arith.select %35, %36, %37 : vector<2x8xi1>, vector<2x8xf32>
    %39 = vector.shape_cast %38 : vector<2x8xf32> to vector<2x1x8xf32>
    %c0_10 = arith.constant 0 : index
    %c0_11 = arith.constant 0 : index
    %c0_12 = arith.constant 0 : index
    %40 = vector.load %arg10[%c0_10, %c0_11, %c0_12] : memref<2x8x128xf32, #tpu.memory_space<vmem>>, vector<1x8x128xf32>
    %41 = vector.shape_cast %40 : vector<1x8x128xf32> to vector<8x128xf32>
    %42 = vector.extract_strided_slice %41 {offsets = [0, 0], sizes = [1, 32], strides = [1, 1]} : vector<8x128xf32> to vector<1x32xf32>
    %43 = vector.extract_strided_slice %41 {offsets = [1, 0], sizes = [1, 32], strides = [1, 1]} : vector<8x128xf32> to vector<1x32xf32>
    %44 = vector.extract_strided_slice %41 {offsets = [2, 0], sizes = [1, 32], strides = [1, 1]} : vector<8x128xf32> to vector<1x32xf32>
    %45 = vector.extract_strided_slice %41 {offsets = [3, 0], sizes = [1, 32], strides = [1, 1]} : vector<8x128xf32> to vector<1x32xf32>
    %46 = vector.extract_strided_slice %41 {offsets = [4, 0], sizes = [1, 96], strides = [1, 1]} : vector<8x128xf32> to vector<1x96xf32>
    %47 = vector.extract_strided_slice %41 {offsets = [5, 0], sizes = [1, 32], strides = [1, 1]} : vector<8x128xf32> to vector<1x32xf32>
    %48 = vector.extract_strided_slice %41 {offsets = [6, 0], sizes = [1, 128], strides = [1, 1]} : vector<8x128xf32> to vector<1x128xf32>
    %49 = vector.extract_strided_slice %41 {offsets = [7, 0], sizes = [1, 32], strides = [1, 1]} : vector<8x128xf32> to vector<1x32xf32>
    %c0_13 = arith.constant 0 : index
    %c0_14 = arith.constant 0 : index
    %c0_15 = arith.constant 0 : index
    %50 = vector.load %arg7[%c0_13, %c0_14, %c0_15] : memref<2x32x32xf32, #tpu.memory_space<vmem>>, vector<1x32x32xf32>
    %51 = vector.shape_cast %50 : vector<1x32x32xf32> to vector<32x32xf32>
    %cst_16 = arith.constant dense<0.000000e+00> : vector<16xf32>
    %52 = vector.multi_reduction <add>, %32, %cst_16 [1] : vector<16x32xf32> to vector<16xf32>
    %53 = vector.shape_cast %52 : vector<16xf32> to vector<16x1xf32>
    %cst_17 = arith.constant 3.200000e+01 : f32
    %54 = vector.broadcast %cst_17 : f32 to vector<16x1xf32>
    %55 = arith.divf %53, %54 : vector<16x1xf32>
    %56 = vector.broadcast %55 : vector<16x1xf32> to vector<16x32xf32>
    %57 = arith.subf %32, %56 : vector<16x32xf32>
    %58 = arith.mulf %57, %57 : vector<16x32xf32>
    %cst_18 = arith.constant dense<0.000000e+00> : vector<16xf32>
    %59 = vector.multi_reduction <add>, %58, %cst_18 [1] : vector<16x32xf32> to vector<16xf32>
    %60 = vector.shape_cast %59 : vector<16xf32> to vector<16x1xf32>
    %cst_19 = arith.constant 3.200000e+01 : f32
    %61 = vector.broadcast %cst_19 : f32 to vector<16x1xf32>
    %62 = arith.divf %60, %61 : vector<16x1xf32>
    %63 = vector.broadcast %55 : vector<16x1xf32> to vector<16x32xf32>
    %64 = arith.subf %32, %63 : vector<16x32xf32>
    %cst_20 = arith.constant 9.99999974E-6 : f32
    %65 = vector.broadcast %cst_20 : f32 to vector<16x1xf32>
    %66 = arith.addf %62, %65 : vector<16x1xf32>
    %67 = math.rsqrt %66 : vector<16x1xf32>
    %68 = vector.broadcast %67 : vector<16x1xf32> to vector<16x32xf32>
    %69 = arith.mulf %64, %68 : vector<16x32xf32>
    %70 = vector.broadcast %42 : vector<1x32xf32> to vector<16x32xf32>
    %71 = arith.mulf %69, %70 : vector<16x32xf32>
    %72 = vector.broadcast %43 : vector<1x32xf32> to vector<16x32xf32>
    %73 = arith.addf %71, %72 : vector<16x32xf32>
    %c0_21 = arith.constant 0 : index
    %c0_22 = arith.constant 0 : index
    %c0_23 = arith.constant 0 : index
    %74 = vector.load %arg6[%c0_21, %c0_22, %c0_23] : memref<2x32x96xf32, #tpu.memory_space<vmem>>, vector<1x32x96xf32>
    %75 = vector.shape_cast %74 : vector<1x32x96xf32> to vector<32x96xf32>
    %cst_24 = arith.constant dense<0.000000e+00> : vector<16x96xf32>
    %76 = tpu.matmul %73, %75, %cst_24 {dimension_numbers = #tpu.dot_dimension_numbers<[1], [0], [0], [1], [0, 0, 1, 1], [], []>} : vector<16x32xf32>, vector<32x96xf32>, vector<16x96xf32> -> vector<16x96xf32>
    %77 = vector.broadcast %46 : vector<1x96xf32> to vector<16x96xf32>
    %78 = arith.addf %76, %77 : vector<16x96xf32>
    %79 = vector.extract_strided_slice %78 {offsets = [0, 0], sizes = [16, 32], strides = [1, 1]} : vector<16x96xf32> to vector<16x32xf32>
    %80 = vector.shape_cast %79 : vector<16x32xf32> to vector<2x8x32xf32>
    %81 = vector.extract_strided_slice %78 {offsets = [0, 32], sizes = [16, 32], strides = [1, 1]} : vector<16x96xf32> to vector<16x32xf32>
    %82 = vector.shape_cast %81 : vector<16x32xf32> to vector<2x8x32xf32>
    %83 = vector.extract_strided_slice %78 {offsets = [0, 64], sizes = [16, 32], strides = [1, 1]} : vector<16x96xf32> to vector<16x32xf32>
    %84 = vector.shape_cast %83 : vector<16x32xf32> to vector<2x8x32xf32>
    %85 = vector.extract_strided_slice %80 {offsets = [0, 0, 0], sizes = [2, 8, 8], strides = [1, 1, 1]} : vector<2x8x32xf32> to vector<2x8x8xf32>
    %86 = vector.extract_strided_slice %82 {offsets = [0, 0, 0], sizes = [2, 8, 8], strides = [1, 1, 1]} : vector<2x8x32xf32> to vector<2x8x8xf32>
    "tpu.trace_start"() <{level = 10 : i32, message = "bqd,bkd->bqk"}> : () -> ()
    %cst_25 = arith.constant dense<0.000000e+00> : vector<2x8x8xf32>
    %87 = tpu.matmul %85, %86, %cst_25 {dimension_numbers = #tpu.dot_dimension_numbers<[2], [2], [1], [1], [0, 0, 0, 1, 1, 1], [0], [0]>} : vector<2x8x8xf32>, vector<2x8x8xf32>, vector<2x8x8xf32> -> vector<2x8x8xf32>
    "tpu.trace_stop"() : () -> ()
    %88 = vector.broadcast %39 : vector<2x1x8xf32> to vector<2x8x8xf32>
    %89 = arith.addf %87, %88 : vector<2x8x8xf32>
    %cst_26 = arith.constant dense<0xFF800000> : vector<2x8xf32>
    %90 = vector.multi_reduction <maximumf>, %89, %cst_26 [2] : vector<2x8x8xf32> to vector<2x8xf32>
    %91 = vector.shape_cast %90 : vector<2x8xf32> to vector<2x8x1xf32>
    %92 = vector.broadcast %91 : vector<2x8x1xf32> to vector<2x8x8xf32>
    %93 = arith.subf %89, %92 : vector<2x8x8xf32>
    %94 = math.exp %93 : vector<2x8x8xf32>
    %cst_27 = arith.constant dense<0.000000e+00> : vector<2x8xf32>
    %95 = vector.multi_reduction <add>, %94, %cst_27 [2] : vector<2x8x8xf32> to vector<2x8xf32>
    %96 = vector.shape_cast %95 : vector<2x8xf32> to vector<2x8x1xf32>
    %97 = tpu.reciprocal %96 {approx = true} : vector<2x8x1xf32> -> vector<2x8x1xf32>
    %98 = vector.broadcast %97 : vector<2x8x1xf32> to vector<2x8x8xf32>
    %99 = arith.mulf %94, %98 : vector<2x8x8xf32>
    %100 = vector.extract_strided_slice %84 {offsets = [0, 0, 0], sizes = [2, 8, 8], strides = [1, 1, 1]} : vector<2x8x32xf32> to vector<2x8x8xf32>
    "tpu.trace_start"() <{level = 10 : i32, message = "bqk,bkd->bqd"}> : () -> ()
    %cst_28 = arith.constant dense<0.000000e+00> : vector<2x8x8xf32>
    %101 = tpu.matmul %99, %100, %cst_28 {dimension_numbers = #tpu.dot_dimension_numbers<[2], [1], [1], [2], [0, 0, 0, 1, 1, 2], [0], [0]>} : vector<2x8x8xf32>, vector<2x8x8xf32>, vector<2x8x8xf32> -> vector<2x8x8xf32>
    "tpu.trace_stop"() : () -> ()
    %102 = vector.shape_cast %101 : vector<2x8x8xf32> to vector<16x8xf32>
    %103 = vector.extract_strided_slice %51 {offsets = [0, 0], sizes = [8, 32], strides = [1, 1]} : vector<32x32xf32> to vector<8x32xf32>
    %cst_29 = arith.constant dense<0.000000e+00> : vector<16x32xf32>
    %104 = tpu.matmul %102, %103, %cst_29 {dimension_numbers = #tpu.dot_dimension_numbers<[1], [0], [0], [1], [0, 0, 1, 1], [], []>} : vector<16x8xf32>, vector<8x32xf32>, vector<16x32xf32> -> vector<16x32xf32>
    %105 = vector.extract_strided_slice %80 {offsets = [0, 0, 8], sizes = [2, 8, 8], strides = [1, 1, 1]} : vector<2x8x32xf32> to vector<2x8x8xf32>
    %106 = vector.extract_strided_slice %82 {offsets = [0, 0, 8], sizes = [2, 8, 8], strides = [1, 1, 1]} : vector<2x8x32xf32> to vector<2x8x8xf32>
    "tpu.trace_start"() <{level = 10 : i32, message = "bqd,bkd->bqk"}> : () -> ()
    %cst_30 = arith.constant dense<0.000000e+00> : vector<2x8x8xf32>
    %107 = tpu.matmul %105, %106, %cst_30 {dimension_numbers = #tpu.dot_dimension_numbers<[2], [2], [1], [1], [0, 0, 0, 1, 1, 1], [0], [0]>} : vector<2x8x8xf32>, vector<2x8x8xf32>, vector<2x8x8xf32> -> vector<2x8x8xf32>
    "tpu.trace_stop"() : () -> ()
    %108 = vector.broadcast %39 : vector<2x1x8xf32> to vector<2x8x8xf32>
    %109 = arith.addf %107, %108 : vector<2x8x8xf32>
    %cst_31 = arith.constant dense<0xFF800000> : vector<2x8xf32>
    %110 = vector.multi_reduction <maximumf>, %109, %cst_31 [2] : vector<2x8x8xf32> to vector<2x8xf32>
    %111 = vector.shape_cast %110 : vector<2x8xf32> to vector<2x8x1xf32>
    %112 = vector.broadcast %111 : vector<2x8x1xf32> to vector<2x8x8xf32>
    %113 = arith.subf %109, %112 : vector<2x8x8xf32>
    %114 = math.exp %113 : vector<2x8x8xf32>
    %cst_32 = arith.constant dense<0.000000e+00> : vector<2x8xf32>
    %115 = vector.multi_reduction <add>, %114, %cst_32 [2] : vector<2x8x8xf32> to vector<2x8xf32>
    %116 = vector.shape_cast %115 : vector<2x8xf32> to vector<2x8x1xf32>
    %117 = tpu.reciprocal %116 {approx = true} : vector<2x8x1xf32> -> vector<2x8x1xf32>
    %118 = vector.broadcast %117 : vector<2x8x1xf32> to vector<2x8x8xf32>
    %119 = arith.mulf %114, %118 : vector<2x8x8xf32>
    %120 = vector.extract_strided_slice %84 {offsets = [0, 0, 8], sizes = [2, 8, 8], strides = [1, 1, 1]} : vector<2x8x32xf32> to vector<2x8x8xf32>
    "tpu.trace_start"() <{level = 10 : i32, message = "bqk,bkd->bqd"}> : () -> ()
    %cst_33 = arith.constant dense<0.000000e+00> : vector<2x8x8xf32>
    %121 = tpu.matmul %119, %120, %cst_33 {dimension_numbers = #tpu.dot_dimension_numbers<[2], [1], [1], [2], [0, 0, 0, 1, 1, 2], [0], [0]>} : vector<2x8x8xf32>, vector<2x8x8xf32>, vector<2x8x8xf32> -> vector<2x8x8xf32>
    "tpu.trace_stop"() : () -> ()
    %122 = vector.shape_cast %121 : vector<2x8x8xf32> to vector<16x8xf32>
    %123 = vector.extract_strided_slice %51 {offsets = [8, 0], sizes = [8, 32], strides = [1, 1]} : vector<32x32xf32> to vector<8x32xf32>
    %cst_34 = arith.constant dense<0.000000e+00> : vector<16x32xf32>
    %124 = tpu.matmul %122, %123, %cst_34 {dimension_numbers = #tpu.dot_dimension_numbers<[1], [0], [0], [1], [0, 0, 1, 1], [], []>} : vector<16x8xf32>, vector<8x32xf32>, vector<16x32xf32> -> vector<16x32xf32>
    %125 = arith.addf %104, %124 : vector<16x32xf32>
    %126 = vector.extract_strided_slice %80 {offsets = [0, 0, 16], sizes = [2, 8, 8], strides = [1, 1, 1]} : vector<2x8x32xf32> to vector<2x8x8xf32>
    %127 = vector.extract_strided_slice %82 {offsets = [0, 0, 16], sizes = [2, 8, 8], strides = [1, 1, 1]} : vector<2x8x32xf32> to vector<2x8x8xf32>
    "tpu.trace_start"() <{level = 10 : i32, message = "bqd,bkd->bqk"}> : () -> ()
    %cst_35 = arith.constant dense<0.000000e+00> : vector<2x8x8xf32>
    %128 = tpu.matmul %126, %127, %cst_35 {dimension_numbers = #tpu.dot_dimension_numbers<[2], [2], [1], [1], [0, 0, 0, 1, 1, 1], [0], [0]>} : vector<2x8x8xf32>, vector<2x8x8xf32>, vector<2x8x8xf32> -> vector<2x8x8xf32>
    "tpu.trace_stop"() : () -> ()
    %129 = vector.broadcast %39 : vector<2x1x8xf32> to vector<2x8x8xf32>
    %130 = arith.addf %128, %129 : vector<2x8x8xf32>
    %cst_36 = arith.constant dense<0xFF800000> : vector<2x8xf32>
    %131 = vector.multi_reduction <maximumf>, %130, %cst_36 [2] : vector<2x8x8xf32> to vector<2x8xf32>
    %132 = vector.shape_cast %131 : vector<2x8xf32> to vector<2x8x1xf32>
    %133 = vector.broadcast %132 : vector<2x8x1xf32> to vector<2x8x8xf32>
    %134 = arith.subf %130, %133 : vector<2x8x8xf32>
    %135 = math.exp %134 : vector<2x8x8xf32>
    %cst_37 = arith.constant dense<0.000000e+00> : vector<2x8xf32>
    %136 = vector.multi_reduction <add>, %135, %cst_37 [2] : vector<2x8x8xf32> to vector<2x8xf32>
    %137 = vector.shape_cast %136 : vector<2x8xf32> to vector<2x8x1xf32>
    %138 = tpu.reciprocal %137 {approx = true} : vector<2x8x1xf32> -> vector<2x8x1xf32>
    %139 = vector.broadcast %138 : vector<2x8x1xf32> to vector<2x8x8xf32>
    %140 = arith.mulf %135, %139 : vector<2x8x8xf32>
    %141 = vector.extract_strided_slice %84 {offsets = [0, 0, 16], sizes = [2, 8, 8], strides = [1, 1, 1]} : vector<2x8x32xf32> to vector<2x8x8xf32>
    "tpu.trace_start"() <{level = 10 : i32, message = "bqk,bkd->bqd"}> : () -> ()
    %cst_38 = arith.constant dense<0.000000e+00> : vector<2x8x8xf32>
    %142 = tpu.matmul %140, %141, %cst_38 {dimension_numbers = #tpu.dot_dimension_numbers<[2], [1], [1], [2], [0, 0, 0, 1, 1, 2], [0], [0]>} : vector<2x8x8xf32>, vector<2x8x8xf32>, vector<2x8x8xf32> -> vector<2x8x8xf32>
    "tpu.trace_stop"() : () -> ()
    %143 = vector.shape_cast %142 : vector<2x8x8xf32> to vector<16x8xf32>
    %144 = vector.extract_strided_slice %51 {offsets = [16, 0], sizes = [8, 32], strides = [1, 1]} : vector<32x32xf32> to vector<8x32xf32>
    %cst_39 = arith.constant dense<0.000000e+00> : vector<16x32xf32>
    %145 = tpu.matmul %143, %144, %cst_39 {dimension_numbers = #tpu.dot_dimension_numbers<[1], [0], [0], [1], [0, 0, 1, 1], [], []>} : vector<16x8xf32>, vector<8x32xf32>, vector<16x32xf32> -> vector<16x32xf32>
    %146 = arith.addf %125, %145 : vector<16x32xf32>
    %147 = vector.extract_strided_slice %80 {offsets = [0, 0, 24], sizes = [2, 8, 8], strides = [1, 1, 1]} : vector<2x8x32xf32> to vector<2x8x8xf32>
    %148 = vector.extract_strided_slice %82 {offsets = [0, 0, 24], sizes = [2, 8, 8], strides = [1, 1, 1]} : vector<2x8x32xf32> to vector<2x8x8xf32>
    "tpu.trace_start"() <{level = 10 : i32, message = "bqd,bkd->bqk"}> : () -> ()
    %cst_40 = arith.constant dense<0.000000e+00> : vector<2x8x8xf32>
    %149 = tpu.matmul %147, %148, %cst_40 {dimension_numbers = #tpu.dot_dimension_numbers<[2], [2], [1], [1], [0, 0, 0, 1, 1, 1], [0], [0]>} : vector<2x8x8xf32>, vector<2x8x8xf32>, vector<2x8x8xf32> -> vector<2x8x8xf32>
    "tpu.trace_stop"() : () -> ()
    %150 = vector.broadcast %39 : vector<2x1x8xf32> to vector<2x8x8xf32>
    %151 = arith.addf %149, %150 : vector<2x8x8xf32>
    %cst_41 = arith.constant dense<0xFF800000> : vector<2x8xf32>
    %152 = vector.multi_reduction <maximumf>, %151, %cst_41 [2] : vector<2x8x8xf32> to vector<2x8xf32>
    %153 = vector.shape_cast %152 : vector<2x8xf32> to vector<2x8x1xf32>
    %154 = vector.broadcast %153 : vector<2x8x1xf32> to vector<2x8x8xf32>
    %155 = arith.subf %151, %154 : vector<2x8x8xf32>
    %156 = math.exp %155 : vector<2x8x8xf32>
    %cst_42 = arith.constant dense<0.000000e+00> : vector<2x8xf32>
    %157 = vector.multi_reduction <add>, %156, %cst_42 [2] : vector<2x8x8xf32> to vector<2x8xf32>
    %158 = vector.shape_cast %157 : vector<2x8xf32> to vector<2x8x1xf32>
    %159 = tpu.reciprocal %158 {approx = true} : vector<2x8x1xf32> -> vector<2x8x1xf32>
    %160 = vector.broadcast %159 : vector<2x8x1xf32> to vector<2x8x8xf32>
    %161 = arith.mulf %156, %160 : vector<2x8x8xf32>
    %162 = vector.extract_strided_slice %84 {offsets = [0, 0, 24], sizes = [2, 8, 8], strides = [1, 1, 1]} : vector<2x8x32xf32> to vector<2x8x8xf32>
    "tpu.trace_start"() <{level = 10 : i32, message = "bqk,bkd->bqd"}> : () -> ()
    %cst_43 = arith.constant dense<0.000000e+00> : vector<2x8x8xf32>
    %163 = tpu.matmul %161, %162, %cst_43 {dimension_numbers = #tpu.dot_dimension_numbers<[2], [1], [1], [2], [0, 0, 0, 1, 1, 2], [0], [0]>} : vector<2x8x8xf32>, vector<2x8x8xf32>, vector<2x8x8xf32> -> vector<2x8x8xf32>
    "tpu.trace_stop"() : () -> ()
    %164 = vector.shape_cast %163 : vector<2x8x8xf32> to vector<16x8xf32>
    %165 = vector.extract_strided_slice %51 {offsets = [24, 0], sizes = [8, 32], strides = [1, 1]} : vector<32x32xf32> to vector<8x32xf32>
    %cst_44 = arith.constant dense<0.000000e+00> : vector<16x32xf32>
    %166 = tpu.matmul %164, %165, %cst_44 {dimension_numbers = #tpu.dot_dimension_numbers<[1], [0], [0], [1], [0, 0, 1, 1], [], []>} : vector<16x8xf32>, vector<8x32xf32>, vector<16x32xf32> -> vector<16x32xf32>
    %167 = arith.addf %146, %166 : vector<16x32xf32>
    %168 = arith.addf %32, %167 : vector<16x32xf32>
    %169 = vector.broadcast %47 : vector<1x32xf32> to vector<16x32xf32>
    %170 = arith.addf %168, %169 : vector<16x32xf32>
    %cst_45 = arith.constant dense<0.000000e+00> : vector<16xf32>
    %171 = vector.multi_reduction <add>, %170, %cst_45 [1] : vector<16x32xf32> to vector<16xf32>
    %172 = vector.shape_cast %171 : vector<16xf32> to vector<16x1xf32>
    %cst_46 = arith.constant 3.200000e+01 : f32
    %173 = vector.broadcast %cst_46 : f32 to vector<16x1xf32>
    %174 = arith.divf %172, %173 : vector<16x1xf32>
    %175 = vector.broadcast %174 : vector<16x1xf32> to vector<16x32xf32>
    %176 = arith.subf %170, %175 : vector<16x32xf32>
    %177 = arith.mulf %176, %176 : vector<16x32xf32>
    %cst_47 = arith.constant dense<0.000000e+00> : vector<16xf32>
    %178 = vector.multi_reduction <add>, %177, %cst_47 [1] : vector<16x32xf32> to vector<16xf32>
    %179 = vector.shape_cast %178 : vector<16xf32> to vector<16x1xf32>
    %cst_48 = arith.constant 3.200000e+01 : f32
    %180 = vector.broadcast %cst_48 : f32 to vector<16x1xf32>
    %181 = arith.divf %179, %180 : vector<16x1xf32>
    %182 = vector.broadcast %174 : vector<16x1xf32> to vector<16x32xf32>
    %183 = arith.subf %170, %182 : vector<16x32xf32>
    %cst_49 = arith.constant 9.99999974E-6 : f32
    %184 = vector.broadcast %cst_49 : f32 to vector<16x1xf32>
    %185 = arith.addf %181, %184 : vector<16x1xf32>
    %186 = math.rsqrt %185 : vector<16x1xf32>
    %187 = vector.broadcast %186 : vector<16x1xf32> to vector<16x32xf32>
    %188 = arith.mulf %183, %187 : vector<16x32xf32>
    %189 = vector.broadcast %44 : vector<1x32xf32> to vector<16x32xf32>
    %190 = arith.mulf %188, %189 : vector<16x32xf32>
    %191 = vector.broadcast %45 : vector<1x32xf32> to vector<16x32xf32>
    %192 = arith.addf %190, %191 : vector<16x32xf32>
    %c0_50 = arith.constant 0 : index
    %c0_51 = arith.constant 0 : index
    %c0_52 = arith.constant 0 : index
    %193 = vector.load %arg8[%c0_50, %c0_51, %c0_52] : memref<2x32x128xf32, #tpu.memory_space<vmem>>, vector<1x32x128xf32>
    %194 = vector.shape_cast %193 : vector<1x32x128xf32> to vector<32x128xf32>
    %cst_53 = arith.constant dense<0.000000e+00> : vector<16x128xf32>
    %195 = tpu.matmul %192, %194, %cst_53 {dimension_numbers = #tpu.dot_dimension_numbers<[1], [0], [0], [1], [0, 0, 1, 1], [], []>} : vector<16x32xf32>, vector<32x128xf32>, vector<16x128xf32> -> vector<16x128xf32>
    %196 = vector.broadcast %48 : vector<1x128xf32> to vector<16x128xf32>
    %197 = arith.addf %195, %196 : vector<16x128xf32>
    %cst_54 = arith.constant 0.000000e+00 : f32
    %198 = vector.broadcast %cst_54 : f32 to vector<16x128xf32>
    %199 = arith.maximumf %197, %198 : vector<16x128xf32>
    %c0_55 = arith.constant 0 : index
    %c0_56 = arith.constant 0 : index
    %c0_57 = arith.constant 0 : index
    %200 = vector.load %arg9[%c0_55, %c0_56, %c0_57] : memref<2x128x32xf32, #tpu.memory_space<vmem>>, vector<1x128x32xf32>
    %201 = vector.shape_cast %200 : vector<1x128x32xf32> to vector<128x32xf32>
    %cst_58 = arith.constant dense<0.000000e+00> : vector<16x32xf32>
    %202 = tpu.matmul %199, %201, %cst_58 {dimension_numbers = #tpu.dot_dimension_numbers<[1], [0], [0], [1], [0, 0, 1, 1], [], []>} : vector<16x128xf32>, vector<128x32xf32>, vector<16x32xf32> -> vector<16x32xf32>
    %203 = arith.addf %170, %202 : vector<16x32xf32>
    %204 = vector.broadcast %49 : vector<1x32xf32> to vector<16x32xf32>
    %205 = arith.addf %203, %204 : vector<16x32xf32>
    %c1 = arith.constant 1 : index
    %c0_59 = arith.constant 0 : index
    %c0_60 = arith.constant 0 : index
    %206 = vector.load %arg10[%c1, %c0_59, %c0_60] : memref<2x8x128xf32, #tpu.memory_space<vmem>>, vector<1x8x128xf32>
    %207 = vector.shape_cast %206 : vector<1x8x128xf32> to vector<8x128xf32>
    %208 = vector.extract_strided_slice %207 {offsets = [0, 0], sizes = [1, 32], strides = [1, 1]} : vector<8x128xf32> to vector<1x32xf32>
    %209 = vector.extract_strided_slice %207 {offsets = [1, 0], sizes = [1, 32], strides = [1, 1]} : vector<8x128xf32> to vector<1x32xf32>
    %210 = vector.extract_strided_slice %207 {offsets = [2, 0], sizes = [1, 32], strides = [1, 1]} : vector<8x128xf32> to vector<1x32xf32>
    %211 = vector.extract_strided_slice %207 {offsets = [3, 0], sizes = [1, 32], strides = [1, 1]} : vector<8x128xf32> to vector<1x32xf32>
    %212 = vector.extract_strided_slice %207 {offsets = [4, 0], sizes = [1, 96], strides = [1, 1]} : vector<8x128xf32> to vector<1x96xf32>
    %213 = vector.extract_strided_slice %207 {offsets = [5, 0], sizes = [1, 32], strides = [1, 1]} : vector<8x128xf32> to vector<1x32xf32>
    %214 = vector.extract_strided_slice %207 {offsets = [6, 0], sizes = [1, 128], strides = [1, 1]} : vector<8x128xf32> to vector<1x128xf32>
    %215 = vector.extract_strided_slice %207 {offsets = [7, 0], sizes = [1, 32], strides = [1, 1]} : vector<8x128xf32> to vector<1x32xf32>
    %c1_61 = arith.constant 1 : index
    %c0_62 = arith.constant 0 : index
    %c0_63 = arith.constant 0 : index
    %216 = vector.load %arg7[%c1_61, %c0_62, %c0_63] : memref<2x32x32xf32, #tpu.memory_space<vmem>>, vector<1x32x32xf32>
    %217 = vector.shape_cast %216 : vector<1x32x32xf32> to vector<32x32xf32>
    %cst_64 = arith.constant dense<0.000000e+00> : vector<16xf32>
    %218 = vector.multi_reduction <add>, %205, %cst_64 [1] : vector<16x32xf32> to vector<16xf32>
    %219 = vector.shape_cast %218 : vector<16xf32> to vector<16x1xf32>
    %cst_65 = arith.constant 3.200000e+01 : f32
    %220 = vector.broadcast %cst_65 : f32 to vector<16x1xf32>
    %221 = arith.divf %219, %220 : vector<16x1xf32>
    %222 = vector.broadcast %221 : vector<16x1xf32> to vector<16x32xf32>
    %223 = arith.subf %205, %222 : vector<16x32xf32>
    %224 = arith.mulf %223, %223 : vector<16x32xf32>
    %cst_66 = arith.constant dense<0.000000e+00> : vector<16xf32>
    %225 = vector.multi_reduction <add>, %224, %cst_66 [1] : vector<16x32xf32> to vector<16xf32>
    %226 = vector.shape_cast %225 : vector<16xf32> to vector<16x1xf32>
    %cst_67 = arith.constant 3.200000e+01 : f32
    %227 = vector.broadcast %cst_67 : f32 to vector<16x1xf32>
    %228 = arith.divf %226, %227 : vector<16x1xf32>
    %229 = vector.broadcast %221 : vector<16x1xf32> to vector<16x32xf32>
    %230 = arith.subf %205, %229 : vector<16x32xf32>
    %cst_68 = arith.constant 9.99999974E-6 : f32
    %231 = vector.broadcast %cst_68 : f32 to vector<16x1xf32>
    %232 = arith.addf %228, %231 : vector<16x1xf32>
    %233 = math.rsqrt %232 : vector<16x1xf32>
    %234 = vector.broadcast %233 : vector<16x1xf32> to vector<16x32xf32>
    %235 = arith.mulf %230, %234 : vector<16x32xf32>
    %236 = vector.broadcast %208 : vector<1x32xf32> to vector<16x32xf32>
    %237 = arith.mulf %235, %236 : vector<16x32xf32>
    %238 = vector.broadcast %209 : vector<1x32xf32> to vector<16x32xf32>
    %239 = arith.addf %237, %238 : vector<16x32xf32>
    %c1_69 = arith.constant 1 : index
    %c0_70 = arith.constant 0 : index
    %c0_71 = arith.constant 0 : index
    %240 = vector.load %arg6[%c1_69, %c0_70, %c0_71] : memref<2x32x96xf32, #tpu.memory_space<vmem>>, vector<1x32x96xf32>
    %241 = vector.shape_cast %240 : vector<1x32x96xf32> to vector<32x96xf32>
    %cst_72 = arith.constant dense<0.000000e+00> : vector<16x96xf32>
    %242 = tpu.matmul %239, %241, %cst_72 {dimension_numbers = #tpu.dot_dimension_numbers<[1], [0], [0], [1], [0, 0, 1, 1], [], []>} : vector<16x32xf32>, vector<32x96xf32>, vector<16x96xf32> -> vector<16x96xf32>
    %243 = vector.broadcast %212 : vector<1x96xf32> to vector<16x96xf32>
    %244 = arith.addf %242, %243 : vector<16x96xf32>
    %245 = vector.extract_strided_slice %244 {offsets = [0, 0], sizes = [16, 32], strides = [1, 1]} : vector<16x96xf32> to vector<16x32xf32>
    %246 = vector.shape_cast %245 : vector<16x32xf32> to vector<2x8x32xf32>
    %247 = vector.extract_strided_slice %244 {offsets = [0, 32], sizes = [16, 32], strides = [1, 1]} : vector<16x96xf32> to vector<16x32xf32>
    %248 = vector.shape_cast %247 : vector<16x32xf32> to vector<2x8x32xf32>
    %249 = vector.extract_strided_slice %244 {offsets = [0, 64], sizes = [16, 32], strides = [1, 1]} : vector<16x96xf32> to vector<16x32xf32>
    %250 = vector.shape_cast %249 : vector<16x32xf32> to vector<2x8x32xf32>
    %251 = vector.extract_strided_slice %246 {offsets = [0, 0, 0], sizes = [2, 8, 8], strides = [1, 1, 1]} : vector<2x8x32xf32> to vector<2x8x8xf32>
    %252 = vector.extract_strided_slice %248 {offsets = [0, 0, 0], sizes = [2, 8, 8], strides = [1, 1, 1]} : vector<2x8x32xf32> to vector<2x8x8xf32>
    "tpu.trace_start"() <{level = 10 : i32, message = "bqd,bkd->bqk"}> : () -> ()
    %cst_73 = arith.constant dense<0.000000e+00> : vector<2x8x8xf32>
    %253 = tpu.matmul %251, %252, %cst_73 {dimension_numbers = #tpu.dot_dimension_numbers<[2], [2], [1], [1], [0, 0, 0, 1, 1, 1], [0], [0]>} : vector<2x8x8xf32>, vector<2x8x8xf32>, vector<2x8x8xf32> -> vector<2x8x8xf32>
    "tpu.trace_stop"() : () -> ()
    %254 = vector.broadcast %39 : vector<2x1x8xf32> to vector<2x8x8xf32>
    %255 = arith.addf %253, %254 : vector<2x8x8xf32>
    %cst_74 = arith.constant dense<0xFF800000> : vector<2x8xf32>
    %256 = vector.multi_reduction <maximumf>, %255, %cst_74 [2] : vector<2x8x8xf32> to vector<2x8xf32>
    %257 = vector.shape_cast %256 : vector<2x8xf32> to vector<2x8x1xf32>
    %258 = vector.broadcast %257 : vector<2x8x1xf32> to vector<2x8x8xf32>
    %259 = arith.subf %255, %258 : vector<2x8x8xf32>
    %260 = math.exp %259 : vector<2x8x8xf32>
    %cst_75 = arith.constant dense<0.000000e+00> : vector<2x8xf32>
    %261 = vector.multi_reduction <add>, %260, %cst_75 [2] : vector<2x8x8xf32> to vector<2x8xf32>
    %262 = vector.shape_cast %261 : vector<2x8xf32> to vector<2x8x1xf32>
    %263 = tpu.reciprocal %262 {approx = true} : vector<2x8x1xf32> -> vector<2x8x1xf32>
    %264 = vector.broadcast %263 : vector<2x8x1xf32> to vector<2x8x8xf32>
    %265 = arith.mulf %260, %264 : vector<2x8x8xf32>
    %266 = vector.extract_strided_slice %250 {offsets = [0, 0, 0], sizes = [2, 8, 8], strides = [1, 1, 1]} : vector<2x8x32xf32> to vector<2x8x8xf32>
    "tpu.trace_start"() <{level = 10 : i32, message = "bqk,bkd->bqd"}> : () -> ()
    %cst_76 = arith.constant dense<0.000000e+00> : vector<2x8x8xf32>
    %267 = tpu.matmul %265, %266, %cst_76 {dimension_numbers = #tpu.dot_dimension_numbers<[2], [1], [1], [2], [0, 0, 0, 1, 1, 2], [0], [0]>} : vector<2x8x8xf32>, vector<2x8x8xf32>, vector<2x8x8xf32> -> vector<2x8x8xf32>
    "tpu.trace_stop"() : () -> ()
    %268 = vector.shape_cast %267 : vector<2x8x8xf32> to vector<16x8xf32>
    %269 = vector.extract_strided_slice %217 {offsets = [0, 0], sizes = [8, 32], strides = [1, 1]} : vector<32x32xf32> to vector<8x32xf32>
    %cst_77 = arith.constant dense<0.000000e+00> : vector<16x32xf32>
    %270 = tpu.matmul %268, %269, %cst_77 {dimension_numbers = #tpu.dot_dimension_numbers<[1], [0], [0], [1], [0, 0, 1, 1], [], []>} : vector<16x8xf32>, vector<8x32xf32>, vector<16x32xf32> -> vector<16x32xf32>
    %271 = vector.extract_strided_slice %246 {offsets = [0, 0, 8], sizes = [2, 8, 8], strides = [1, 1, 1]} : vector<2x8x32xf32> to vector<2x8x8xf32>
    %272 = vector.extract_strided_slice %248 {offsets = [0, 0, 8], sizes = [2, 8, 8], strides = [1, 1, 1]} : vector<2x8x32xf32> to vector<2x8x8xf32>
    "tpu.trace_start"() <{level = 10 : i32, message = "bqd,bkd->bqk"}> : () -> ()
    %cst_78 = arith.constant dense<0.000000e+00> : vector<2x8x8xf32>
    %273 = tpu.matmul %271, %272, %cst_78 {dimension_numbers = #tpu.dot_dimension_numbers<[2], [2], [1], [1], [0, 0, 0, 1, 1, 1], [0], [0]>} : vector<2x8x8xf32>, vector<2x8x8xf32>, vector<2x8x8xf32> -> vector<2x8x8xf32>
    "tpu.trace_stop"() : () -> ()
    %274 = vector.broadcast %39 : vector<2x1x8xf32> to vector<2x8x8xf32>
    %275 = arith.addf %273, %274 : vector<2x8x8xf32>
    %cst_79 = arith.constant dense<0xFF800000> : vector<2x8xf32>
    %276 = vector.multi_reduction <maximumf>, %275, %cst_79 [2] : vector<2x8x8xf32> to vector<2x8xf32>
    %277 = vector.shape_cast %276 : vector<2x8xf32> to vector<2x8x1xf32>
    %278 = vector.broadcast %277 : vector<2x8x1xf32> to vector<2x8x8xf32>
    %279 = arith.subf %275, %278 : vector<2x8x8xf32>
    %280 = math.exp %279 : vector<2x8x8xf32>
    %cst_80 = arith.constant dense<0.000000e+00> : vector<2x8xf32>
    %281 = vector.multi_reduction <add>, %280, %cst_80 [2] : vector<2x8x8xf32> to vector<2x8xf32>
    %282 = vector.shape_cast %281 : vector<2x8xf32> to vector<2x8x1xf32>
    %283 = tpu.reciprocal %282 {approx = true} : vector<2x8x1xf32> -> vector<2x8x1xf32>
    %284 = vector.broadcast %283 : vector<2x8x1xf32> to vector<2x8x8xf32>
    %285 = arith.mulf %280, %284 : vector<2x8x8xf32>
    %286 = vector.extract_strided_slice %250 {offsets = [0, 0, 8], sizes = [2, 8, 8], strides = [1, 1, 1]} : vector<2x8x32xf32> to vector<2x8x8xf32>
    "tpu.trace_start"() <{level = 10 : i32, message = "bqk,bkd->bqd"}> : () -> ()
    %cst_81 = arith.constant dense<0.000000e+00> : vector<2x8x8xf32>
    %287 = tpu.matmul %285, %286, %cst_81 {dimension_numbers = #tpu.dot_dimension_numbers<[2], [1], [1], [2], [0, 0, 0, 1, 1, 2], [0], [0]>} : vector<2x8x8xf32>, vector<2x8x8xf32>, vector<2x8x8xf32> -> vector<2x8x8xf32>
    "tpu.trace_stop"() : () -> ()
    %288 = vector.shape_cast %287 : vector<2x8x8xf32> to vector<16x8xf32>
    %289 = vector.extract_strided_slice %217 {offsets = [8, 0], sizes = [8, 32], strides = [1, 1]} : vector<32x32xf32> to vector<8x32xf32>
    %cst_82 = arith.constant dense<0.000000e+00> : vector<16x32xf32>
    %290 = tpu.matmul %288, %289, %cst_82 {dimension_numbers = #tpu.dot_dimension_numbers<[1], [0], [0], [1], [0, 0, 1, 1], [], []>} : vector<16x8xf32>, vector<8x32xf32>, vector<16x32xf32> -> vector<16x32xf32>
    %291 = arith.addf %270, %290 : vector<16x32xf32>
    %292 = vector.extract_strided_slice %246 {offsets = [0, 0, 16], sizes = [2, 8, 8], strides = [1, 1, 1]} : vector<2x8x32xf32> to vector<2x8x8xf32>
    %293 = vector.extract_strided_slice %248 {offsets = [0, 0, 16], sizes = [2, 8, 8], strides = [1, 1, 1]} : vector<2x8x32xf32> to vector<2x8x8xf32>
    "tpu.trace_start"() <{level = 10 : i32, message = "bqd,bkd->bqk"}> : () -> ()
    %cst_83 = arith.constant dense<0.000000e+00> : vector<2x8x8xf32>
    %294 = tpu.matmul %292, %293, %cst_83 {dimension_numbers = #tpu.dot_dimension_numbers<[2], [2], [1], [1], [0, 0, 0, 1, 1, 1], [0], [0]>} : vector<2x8x8xf32>, vector<2x8x8xf32>, vector<2x8x8xf32> -> vector<2x8x8xf32>
    "tpu.trace_stop"() : () -> ()
    %295 = vector.broadcast %39 : vector<2x1x8xf32> to vector<2x8x8xf32>
    %296 = arith.addf %294, %295 : vector<2x8x8xf32>
    %cst_84 = arith.constant dense<0xFF800000> : vector<2x8xf32>
    %297 = vector.multi_reduction <maximumf>, %296, %cst_84 [2] : vector<2x8x8xf32> to vector<2x8xf32>
    %298 = vector.shape_cast %297 : vector<2x8xf32> to vector<2x8x1xf32>
    %299 = vector.broadcast %298 : vector<2x8x1xf32> to vector<2x8x8xf32>
    %300 = arith.subf %296, %299 : vector<2x8x8xf32>
    %301 = math.exp %300 : vector<2x8x8xf32>
    %cst_85 = arith.constant dense<0.000000e+00> : vector<2x8xf32>
    %302 = vector.multi_reduction <add>, %301, %cst_85 [2] : vector<2x8x8xf32> to vector<2x8xf32>
    %303 = vector.shape_cast %302 : vector<2x8xf32> to vector<2x8x1xf32>
    %304 = tpu.reciprocal %303 {approx = true} : vector<2x8x1xf32> -> vector<2x8x1xf32>
    %305 = vector.broadcast %304 : vector<2x8x1xf32> to vector<2x8x8xf32>
    %306 = arith.mulf %301, %305 : vector<2x8x8xf32>
    %307 = vector.extract_strided_slice %250 {offsets = [0, 0, 16], sizes = [2, 8, 8], strides = [1, 1, 1]} : vector<2x8x32xf32> to vector<2x8x8xf32>
    "tpu.trace_start"() <{level = 10 : i32, message = "bqk,bkd->bqd"}> : () -> ()
    %cst_86 = arith.constant dense<0.000000e+00> : vector<2x8x8xf32>
    %308 = tpu.matmul %306, %307, %cst_86 {dimension_numbers = #tpu.dot_dimension_numbers<[2], [1], [1], [2], [0, 0, 0, 1, 1, 2], [0], [0]>} : vector<2x8x8xf32>, vector<2x8x8xf32>, vector<2x8x8xf32> -> vector<2x8x8xf32>
    "tpu.trace_stop"() : () -> ()
    %309 = vector.shape_cast %308 : vector<2x8x8xf32> to vector<16x8xf32>
    %310 = vector.extract_strided_slice %217 {offsets = [16, 0], sizes = [8, 32], strides = [1, 1]} : vector<32x32xf32> to vector<8x32xf32>
    %cst_87 = arith.constant dense<0.000000e+00> : vector<16x32xf32>
    %311 = tpu.matmul %309, %310, %cst_87 {dimension_numbers = #tpu.dot_dimension_numbers<[1], [0], [0], [1], [0, 0, 1, 1], [], []>} : vector<16x8xf32>, vector<8x32xf32>, vector<16x32xf32> -> vector<16x32xf32>
    %312 = arith.addf %291, %311 : vector<16x32xf32>
    %313 = vector.extract_strided_slice %246 {offsets = [0, 0, 24], sizes = [2, 8, 8], strides = [1, 1, 1]} : vector<2x8x32xf32> to vector<2x8x8xf32>
    %314 = vector.extract_strided_slice %248 {offsets = [0, 0, 24], sizes = [2, 8, 8], strides = [1, 1, 1]} : vector<2x8x32xf32> to vector<2x8x8xf32>
    "tpu.trace_start"() <{level = 10 : i32, message = "bqd,bkd->bqk"}> : () -> ()
    %cst_88 = arith.constant dense<0.000000e+00> : vector<2x8x8xf32>
    %315 = tpu.matmul %313, %314, %cst_88 {dimension_numbers = #tpu.dot_dimension_numbers<[2], [2], [1], [1], [0, 0, 0, 1, 1, 1], [0], [0]>} : vector<2x8x8xf32>, vector<2x8x8xf32>, vector<2x8x8xf32> -> vector<2x8x8xf32>
    "tpu.trace_stop"() : () -> ()
    %316 = vector.broadcast %39 : vector<2x1x8xf32> to vector<2x8x8xf32>
    %317 = arith.addf %315, %316 : vector<2x8x8xf32>
    %cst_89 = arith.constant dense<0xFF800000> : vector<2x8xf32>
    %318 = vector.multi_reduction <maximumf>, %317, %cst_89 [2] : vector<2x8x8xf32> to vector<2x8xf32>
    %319 = vector.shape_cast %318 : vector<2x8xf32> to vector<2x8x1xf32>
    %320 = vector.broadcast %319 : vector<2x8x1xf32> to vector<2x8x8xf32>
    %321 = arith.subf %317, %320 : vector<2x8x8xf32>
    %322 = math.exp %321 : vector<2x8x8xf32>
    %cst_90 = arith.constant dense<0.000000e+00> : vector<2x8xf32>
    %323 = vector.multi_reduction <add>, %322, %cst_90 [2] : vector<2x8x8xf32> to vector<2x8xf32>
    %324 = vector.shape_cast %323 : vector<2x8xf32> to vector<2x8x1xf32>
    %325 = tpu.reciprocal %324 {approx = true} : vector<2x8x1xf32> -> vector<2x8x1xf32>
    %326 = vector.broadcast %325 : vector<2x8x1xf32> to vector<2x8x8xf32>
    %327 = arith.mulf %322, %326 : vector<2x8x8xf32>
    %328 = vector.extract_strided_slice %250 {offsets = [0, 0, 24], sizes = [2, 8, 8], strides = [1, 1, 1]} : vector<2x8x32xf32> to vector<2x8x8xf32>
    "tpu.trace_start"() <{level = 10 : i32, message = "bqk,bkd->bqd"}> : () -> ()
    %cst_91 = arith.constant dense<0.000000e+00> : vector<2x8x8xf32>
    %329 = tpu.matmul %327, %328, %cst_91 {dimension_numbers = #tpu.dot_dimension_numbers<[2], [1], [1], [2], [0, 0, 0, 1, 1, 2], [0], [0]>} : vector<2x8x8xf32>, vector<2x8x8xf32>, vector<2x8x8xf32> -> vector<2x8x8xf32>
    "tpu.trace_stop"() : () -> ()
    %330 = vector.shape_cast %329 : vector<2x8x8xf32> to vector<16x8xf32>
    %331 = vector.extract_strided_slice %217 {offsets = [24, 0], sizes = [8, 32], strides = [1, 1]} : vector<32x32xf32> to vector<8x32xf32>
    %cst_92 = arith.constant dense<0.000000e+00> : vector<16x32xf32>
    %332 = tpu.matmul %330, %331, %cst_92 {dimension_numbers = #tpu.dot_dimension_numbers<[1], [0], [0], [1], [0, 0, 1, 1], [], []>} : vector<16x8xf32>, vector<8x32xf32>, vector<16x32xf32> -> vector<16x32xf32>
    %333 = arith.addf %312, %332 : vector<16x32xf32>
    %334 = arith.addf %205, %333 : vector<16x32xf32>
    %335 = vector.broadcast %213 : vector<1x32xf32> to vector<16x32xf32>
    %336 = arith.addf %334, %335 : vector<16x32xf32>
    %cst_93 = arith.constant dense<0.000000e+00> : vector<16xf32>
    %337 = vector.multi_reduction <add>, %336, %cst_93 [1] : vector<16x32xf32> to vector<16xf32>
    %338 = vector.shape_cast %337 : vector<16xf32> to vector<16x1xf32>
    %cst_94 = arith.constant 3.200000e+01 : f32
    %339 = vector.broadcast %cst_94 : f32 to vector<16x1xf32>
    %340 = arith.divf %338, %339 : vector<16x1xf32>
    %341 = vector.broadcast %340 : vector<16x1xf32> to vector<16x32xf32>
    %342 = arith.subf %336, %341 : vector<16x32xf32>
    %343 = arith.mulf %342, %342 : vector<16x32xf32>
    %cst_95 = arith.constant dense<0.000000e+00> : vector<16xf32>
    %344 = vector.multi_reduction <add>, %343, %cst_95 [1] : vector<16x32xf32> to vector<16xf32>
    %345 = vector.shape_cast %344 : vector<16xf32> to vector<16x1xf32>
    %cst_96 = arith.constant 3.200000e+01 : f32
    %346 = vector.broadcast %cst_96 : f32 to vector<16x1xf32>
    %347 = arith.divf %345, %346 : vector<16x1xf32>
    %348 = vector.broadcast %340 : vector<16x1xf32> to vector<16x32xf32>
    %349 = arith.subf %336, %348 : vector<16x32xf32>
    %cst_97 = arith.constant 9.99999974E-6 : f32
    %350 = vector.broadcast %cst_97 : f32 to vector<16x1xf32>
    %351 = arith.addf %347, %350 : vector<16x1xf32>
    %352 = math.rsqrt %351 : vector<16x1xf32>
    %353 = vector.broadcast %352 : vector<16x1xf32> to vector<16x32xf32>
    %354 = arith.mulf %349, %353 : vector<16x32xf32>
    %355 = vector.broadcast %210 : vector<1x32xf32> to vector<16x32xf32>
    %356 = arith.mulf %354, %355 : vector<16x32xf32>
    %357 = vector.broadcast %211 : vector<1x32xf32> to vector<16x32xf32>
    %358 = arith.addf %356, %357 : vector<16x32xf32>
    %c1_98 = arith.constant 1 : index
    %c0_99 = arith.constant 0 : index
    %c0_100 = arith.constant 0 : index
    %359 = vector.load %arg8[%c1_98, %c0_99, %c0_100] : memref<2x32x128xf32, #tpu.memory_space<vmem>>, vector<1x32x128xf32>
    %360 = vector.shape_cast %359 : vector<1x32x128xf32> to vector<32x128xf32>
    %cst_101 = arith.constant dense<0.000000e+00> : vector<16x128xf32>
    %361 = tpu.matmul %358, %360, %cst_101 {dimension_numbers = #tpu.dot_dimension_numbers<[1], [0], [0], [1], [0, 0, 1, 1], [], []>} : vector<16x32xf32>, vector<32x128xf32>, vector<16x128xf32> -> vector<16x128xf32>
    %362 = vector.broadcast %214 : vector<1x128xf32> to vector<16x128xf32>
    %363 = arith.addf %361, %362 : vector<16x128xf32>
    %cst_102 = arith.constant 0.000000e+00 : f32
    %364 = vector.broadcast %cst_102 : f32 to vector<16x128xf32>
    %365 = arith.maximumf %363, %364 : vector<16x128xf32>
    %c1_103 = arith.constant 1 : index
    %c0_104 = arith.constant 0 : index
    %c0_105 = arith.constant 0 : index
    %366 = vector.load %arg9[%c1_103, %c0_104, %c0_105] : memref<2x128x32xf32, #tpu.memory_space<vmem>>, vector<1x128x32xf32>
    %367 = vector.shape_cast %366 : vector<1x128x32xf32> to vector<128x32xf32>
    %cst_106 = arith.constant dense<0.000000e+00> : vector<16x32xf32>
    %368 = tpu.matmul %365, %367, %cst_106 {dimension_numbers = #tpu.dot_dimension_numbers<[1], [0], [0], [1], [0, 0, 1, 1], [], []>} : vector<16x128xf32>, vector<128x32xf32>, vector<16x32xf32> -> vector<16x32xf32>
    %369 = arith.addf %336, %368 : vector<16x32xf32>
    %370 = vector.broadcast %215 : vector<1x32xf32> to vector<16x32xf32>
    %371 = arith.addf %369, %370 : vector<16x32xf32>
    %c0_107 = arith.constant 0 : index
    %c0_108 = arith.constant 0 : index
    %372 = vector.load %arg12[%c0_107, %c0_108] : memref<9x128xf32, #tpu.memory_space<vmem>>, vector<9x128xf32>
    %373 = vector.extract_strided_slice %372 {offsets = [0, 0], sizes = [1, 12], strides = [1, 1]} : vector<9x128xf32> to vector<1x12xf32>
    %374 = vector.extract_strided_slice %372 {offsets = [1, 0], sizes = [1, 12], strides = [1, 1]} : vector<9x128xf32> to vector<1x12xf32>
    %375 = vector.extract_strided_slice %372 {offsets = [2, 0], sizes = [1, 48], strides = [1, 1]} : vector<9x128xf32> to vector<1x48xf32>
    %376 = vector.extract_strided_slice %372 {offsets = [3, 0], sizes = [1, 12], strides = [1, 1]} : vector<9x128xf32> to vector<1x12xf32>
    %377 = vector.extract_strided_slice %372 {offsets = [4, 0], sizes = [1, 32], strides = [1, 1]} : vector<9x128xf32> to vector<1x32xf32>
    %378 = vector.extract_strided_slice %372 {offsets = [5, 0], sizes = [1, 32], strides = [1, 1]} : vector<9x128xf32> to vector<1x32xf32>
    %379 = vector.extract_strided_slice %372 {offsets = [6, 0], sizes = [1, 64], strides = [1, 1]} : vector<9x128xf32> to vector<1x64xf32>
    %380 = vector.extract_strided_slice %372 {offsets = [7, 0], sizes = [1, 16], strides = [1, 1]} : vector<9x128xf32> to vector<1x16xf32>
    %381 = vector.extract_strided_slice %372 {offsets = [8, 0], sizes = [1, 1], strides = [1, 1]} : vector<9x128xf32> to vector<1x1xf32>
    %c0_109 = arith.constant 0 : index
    %c0_110 = arith.constant 0 : index
    %382 = vector.load %arg4[%c0_109, %c0_110] : memref<2x12xf32, #tpu.memory_space<vmem>>, vector<2x12xf32>
    %cst_111 = arith.constant dense<0.000000e+00> : vector<12xf32>
    %383 = vector.multi_reduction <add>, %382, %cst_111 [0] : vector<2x12xf32> to vector<12xf32>
    %384 = vector.shape_cast %383 : vector<12xf32> to vector<1x12xf32>
    %cst_112 = arith.constant 2.000000e+00 : f32
    %385 = vector.broadcast %cst_112 : f32 to vector<1x12xf32>
    %386 = arith.divf %384, %385 : vector<1x12xf32>
    %387 = vector.broadcast %386 : vector<1x12xf32> to vector<2x12xf32>
    %388 = arith.subf %382, %387 : vector<2x12xf32>
    %389 = arith.mulf %388, %388 : vector<2x12xf32>
    %cst_113 = arith.constant dense<0.000000e+00> : vector<12xf32>
    %390 = vector.multi_reduction <add>, %389, %cst_113 [0] : vector<2x12xf32> to vector<12xf32>
    %391 = vector.shape_cast %390 : vector<12xf32> to vector<1x12xf32>
    %cst_114 = arith.constant 2.000000e+00 : f32
    %392 = vector.broadcast %cst_114 : f32 to vector<1x12xf32>
    %393 = arith.divf %391, %392 : vector<1x12xf32>
    %394 = vector.broadcast %386 : vector<1x12xf32> to vector<2x12xf32>
    %395 = arith.subf %382, %394 : vector<2x12xf32>
    %cst_115 = arith.constant 9.99999974E-6 : f32
    %396 = vector.broadcast %cst_115 : f32 to vector<1x12xf32>
    %397 = arith.addf %393, %396 : vector<1x12xf32>
    %398 = math.rsqrt %397 : vector<1x12xf32>
    %399 = vector.broadcast %398 : vector<1x12xf32> to vector<2x12xf32>
    %400 = arith.mulf %395, %399 : vector<2x12xf32>
    %401 = vector.broadcast %373 : vector<1x12xf32> to vector<2x12xf32>
    %402 = arith.mulf %400, %401 : vector<2x12xf32>
    %403 = vector.broadcast %374 : vector<1x12xf32> to vector<2x12xf32>
    %404 = arith.addf %402, %403 : vector<2x12xf32>
    %c0_116 = arith.constant 0 : index
    %c0_117 = arith.constant 0 : index
    %c0_118 = arith.constant 0 : index
    %405 = vector.load %arg11[%c0_116, %c0_117, %c0_118] : memref<6x64x64xf32, #tpu.memory_space<vmem>>, vector<1x64x64xf32>
    %406 = vector.shape_cast %405 : vector<1x64x64xf32> to vector<64x64xf32>
    %407 = vector.extract_strided_slice %406 {offsets = [0, 0], sizes = [12, 48], strides = [1, 1]} : vector<64x64xf32> to vector<12x48xf32>
    %c1_119 = arith.constant 1 : index
    %c0_120 = arith.constant 0 : index
    %c0_121 = arith.constant 0 : index
    %408 = vector.load %arg11[%c1_119, %c0_120, %c0_121] : memref<6x64x64xf32, #tpu.memory_space<vmem>>, vector<1x64x64xf32>
    %409 = vector.shape_cast %408 : vector<1x64x64xf32> to vector<64x64xf32>
    %410 = vector.extract_strided_slice %409 {offsets = [0, 0], sizes = [48, 12], strides = [1, 1]} : vector<64x64xf32> to vector<48x12xf32>
    %c2 = arith.constant 2 : index
    %c0_122 = arith.constant 0 : index
    %c0_123 = arith.constant 0 : index
    %411 = vector.load %arg11[%c2, %c0_122, %c0_123] : memref<6x64x64xf32, #tpu.memory_space<vmem>>, vector<1x64x64xf32>
    %412 = vector.shape_cast %411 : vector<1x64x64xf32> to vector<64x64xf32>
    %413 = vector.extract_strided_slice %412 {offsets = [0, 0], sizes = [32, 64], strides = [1, 1]} : vector<64x64xf32> to vector<32x64xf32>
    %c3 = arith.constant 3 : index
    %c0_124 = arith.constant 0 : index
    %c0_125 = arith.constant 0 : index
    %414 = vector.load %arg11[%c3, %c0_124, %c0_125] : memref<6x64x64xf32, #tpu.memory_space<vmem>>, vector<1x64x64xf32>
    %415 = vector.shape_cast %414 : vector<1x64x64xf32> to vector<64x64xf32>
    %416 = vector.extract_strided_slice %415 {offsets = [0, 0], sizes = [12, 64], strides = [1, 1]} : vector<64x64xf32> to vector<12x64xf32>
    %c4 = arith.constant 4 : index
    %c0_126 = arith.constant 0 : index
    %c0_127 = arith.constant 0 : index
    %417 = vector.load %arg11[%c4, %c0_126, %c0_127] : memref<6x64x64xf32, #tpu.memory_space<vmem>>, vector<1x64x64xf32>
    %418 = vector.shape_cast %417 : vector<1x64x64xf32> to vector<64x64xf32>
    %419 = vector.extract_strided_slice %418 {offsets = [0, 0], sizes = [64, 16], strides = [1, 1]} : vector<64x64xf32> to vector<64x16xf32>
    %c5 = arith.constant 5 : index
    %c0_128 = arith.constant 0 : index
    %c0_129 = arith.constant 0 : index
    %420 = vector.load %arg11[%c5, %c0_128, %c0_129] : memref<6x64x64xf32, #tpu.memory_space<vmem>>, vector<1x64x64xf32>
    %421 = vector.shape_cast %420 : vector<1x64x64xf32> to vector<64x64xf32>
    %422 = vector.extract_strided_slice %421 {offsets = [0, 0], sizes = [16, 1], strides = [1, 1]} : vector<64x64xf32> to vector<16x1xf32>
    %cst_130 = arith.constant dense<0.000000e+00> : vector<2x48xf32>
    %423 = tpu.matmul %404, %407, %cst_130 {dimension_numbers = #tpu.dot_dimension_numbers<[1], [0], [0], [1], [0, 0, 1, 1], [], []>} : vector<2x12xf32>, vector<12x48xf32>, vector<2x48xf32> -> vector<2x48xf32>
    %424 = vector.broadcast %375 : vector<1x48xf32> to vector<2x48xf32>
    %425 = arith.addf %423, %424 : vector<2x48xf32>
    %cst_131 = arith.constant 0.000000e+00 : f32
    %426 = vector.broadcast %cst_131 : f32 to vector<2x48xf32>
    %427 = arith.maximumf %425, %426 : vector<2x48xf32>
    %cst_132 = arith.constant dense<0.000000e+00> : vector<2x12xf32>
    %428 = tpu.matmul %427, %410, %cst_132 {dimension_numbers = #tpu.dot_dimension_numbers<[1], [0], [0], [1], [0, 0, 1, 1], [], []>} : vector<2x48xf32>, vector<48x12xf32>, vector<2x12xf32> -> vector<2x12xf32>
    %429 = vector.broadcast %376 : vector<1x12xf32> to vector<2x12xf32>
    %430 = arith.addf %428, %429 : vector<2x12xf32>
    %cst_133 = arith.constant 0.000000e+00 : f32
    %431 = vector.broadcast %cst_133 : f32 to vector<2x12xf32>
    %432 = arith.maximumf %430, %431 : vector<2x12xf32>
    %433 = vector.shape_cast %371 : vector<16x32xf32> to vector<2x8x32xf32>
    %434 = vector.extract_strided_slice %433 {offsets = [0, 0, 0], sizes = [2, 1, 32], strides = [1, 1, 1]} : vector<2x8x32xf32> to vector<2x1x32xf32>
    %435 = vector.shape_cast %434 : vector<2x1x32xf32> to vector<2x32xf32>
    %cst_134 = arith.constant dense<0.000000e+00> : vector<2xf32>
    %436 = vector.multi_reduction <add>, %435, %cst_134 [1] : vector<2x32xf32> to vector<2xf32>
    %437 = vector.shape_cast %436 : vector<2xf32> to vector<2x1xf32>
    %cst_135 = arith.constant 3.200000e+01 : f32
    %438 = vector.broadcast %cst_135 : f32 to vector<2x1xf32>
    %439 = arith.divf %437, %438 : vector<2x1xf32>
    %440 = vector.broadcast %439 : vector<2x1xf32> to vector<2x32xf32>
    %441 = arith.subf %435, %440 : vector<2x32xf32>
    %442 = arith.mulf %441, %441 : vector<2x32xf32>
    %cst_136 = arith.constant dense<0.000000e+00> : vector<2xf32>
    %443 = vector.multi_reduction <add>, %442, %cst_136 [1] : vector<2x32xf32> to vector<2xf32>
    %444 = vector.shape_cast %443 : vector<2xf32> to vector<2x1xf32>
    %cst_137 = arith.constant 3.200000e+01 : f32
    %445 = vector.broadcast %cst_137 : f32 to vector<2x1xf32>
    %446 = arith.divf %444, %445 : vector<2x1xf32>
    %447 = vector.broadcast %439 : vector<2x1xf32> to vector<2x32xf32>
    %448 = arith.subf %435, %447 : vector<2x32xf32>
    %cst_138 = arith.constant 9.99999974E-6 : f32
    %449 = vector.broadcast %cst_138 : f32 to vector<2x1xf32>
    %450 = arith.addf %446, %449 : vector<2x1xf32>
    %451 = math.rsqrt %450 : vector<2x1xf32>
    %452 = vector.broadcast %451 : vector<2x1xf32> to vector<2x32xf32>
    %453 = arith.mulf %448, %452 : vector<2x32xf32>
    %454 = vector.broadcast %377 : vector<1x32xf32> to vector<2x32xf32>
    %455 = arith.mulf %453, %454 : vector<2x32xf32>
    %456 = vector.broadcast %378 : vector<1x32xf32> to vector<2x32xf32>
    %457 = arith.addf %455, %456 : vector<2x32xf32>
    %cst_139 = arith.constant dense<0.000000e+00> : vector<2x64xf32>
    %458 = tpu.matmul %457, %413, %cst_139 {dimension_numbers = #tpu.dot_dimension_numbers<[1], [0], [0], [1], [0, 0, 1, 1], [], []>} : vector<2x32xf32>, vector<32x64xf32>, vector<2x64xf32> -> vector<2x64xf32>
    %cst_140 = arith.constant dense<0.000000e+00> : vector<2x64xf32>
    %459 = tpu.matmul %432, %416, %cst_140 {dimension_numbers = #tpu.dot_dimension_numbers<[1], [0], [0], [1], [0, 0, 1, 1], [], []>} : vector<2x12xf32>, vector<12x64xf32>, vector<2x64xf32> -> vector<2x64xf32>
    %460 = arith.addf %458, %459 : vector<2x64xf32>
    %461 = vector.broadcast %379 : vector<1x64xf32> to vector<2x64xf32>
    %462 = arith.addf %460, %461 : vector<2x64xf32>
    %cst_141 = arith.constant 0.000000e+00 : f32
    %463 = vector.broadcast %cst_141 : f32 to vector<2x64xf32>
    %464 = arith.maximumf %462, %463 : vector<2x64xf32>
    %cst_142 = arith.constant dense<0.000000e+00> : vector<2x16xf32>
    %465 = tpu.matmul %464, %419, %cst_142 {dimension_numbers = #tpu.dot_dimension_numbers<[1], [0], [0], [1], [0, 0, 1, 1], [], []>} : vector<2x64xf32>, vector<64x16xf32>, vector<2x16xf32> -> vector<2x16xf32>
    %466 = vector.broadcast %380 : vector<1x16xf32> to vector<2x16xf32>
    %467 = arith.addf %465, %466 : vector<2x16xf32>
    %cst_143 = arith.constant 0.000000e+00 : f32
    %468 = vector.broadcast %cst_143 : f32 to vector<2x16xf32>
    %469 = arith.maximumf %467, %468 : vector<2x16xf32>
    %cst_144 = arith.constant dense<0.000000e+00> : vector<2x1xf32>
    %470 = tpu.matmul %469, %422, %cst_144 {dimension_numbers = #tpu.dot_dimension_numbers<[1], [0], [0], [1], [0, 0, 1, 1], [], []>} : vector<2x16xf32>, vector<16x1xf32>, vector<2x1xf32> -> vector<2x1xf32>
    %471 = vector.broadcast %381 : vector<1x1xf32> to vector<2x1xf32>
    %472 = arith.addf %470, %471 : vector<2x1xf32>
    %c0_145 = arith.constant 0 : index
    %c0_146 = arith.constant 0 : index
    %473 = vector.load %arg13[%c0_145, %c0_146] : memref<2x1xf32, #tpu.memory_space<vmem>>, vector<2x1xf32>
    tpu.vector_store %arg13[%c0_145, %c0_146], %472 {strides = array<i32>} : memref<2x1xf32, #tpu.memory_space<vmem>>, vector<2x1xf32>,
    return
  }
  func.func @transform_0(%arg0: i32) -> (i32, i32) {
    %c0_i32 = arith.constant 0 : i32
    %c0_i32_0 = arith.constant 0 : i32
    %c0_i32_1 = arith.constant 0 : i32
    return %c0_i32, %c0_i32_0 : i32, i32
  }
  func.func @transform_1(%arg0: i32) -> (i32, i32) {
    %c0_i32 = arith.constant 0 : i32
    %c0_i32_0 = arith.constant 0 : i32
    %c0_i32_1 = arith.constant 0 : i32
    return %c0_i32, %c0_i32_0 : i32, i32
  }
  func.func @transform_2(%arg0: i32) -> (i32, i32) {
    %c0_i32 = arith.constant 0 : i32
    %c0_i32_0 = arith.constant 0 : i32
    %c0_i32_1 = arith.constant 0 : i32
    return %c0_i32, %c0_i32_0 : i32, i32
  }
  func.func @transform_3(%arg0: i32) -> (i32, i32) {
    %c0_i32 = arith.constant 0 : i32
    %c0_i32_0 = arith.constant 0 : i32
    %c0_i32_1 = arith.constant 0 : i32
    return %c0_i32, %c0_i32_0 : i32, i32
  }
  func.func @transform_4(%arg0: i32) -> (i32, i32) {
    %c0_i32 = arith.constant 0 : i32
    %c0_i32_0 = arith.constant 0 : i32
    %c0_i32_1 = arith.constant 0 : i32
    return %c0_i32, %c0_i32_0 : i32, i32
  }
  func.func @transform_5(%arg0: i32) -> (i32, i32, i32) {
    %c0_i32 = arith.constant 0 : i32
    %c0_i32_0 = arith.constant 0 : i32
    %c0_i32_1 = arith.constant 0 : i32
    %c0_i32_2 = arith.constant 0 : i32
    return %c0_i32, %c0_i32_0, %c0_i32_1 : i32, i32, i32
  }
  func.func @transform_6(%arg0: i32) -> (i32, i32, i32) {
    %c0_i32 = arith.constant 0 : i32
    %c0_i32_0 = arith.constant 0 : i32
    %c0_i32_1 = arith.constant 0 : i32
    %c0_i32_2 = arith.constant 0 : i32
    return %c0_i32, %c0_i32_0, %c0_i32_1 : i32, i32, i32
  }
  func.func @transform_7(%arg0: i32) -> (i32, i32, i32) {
    %c0_i32 = arith.constant 0 : i32
    %c0_i32_0 = arith.constant 0 : i32
    %c0_i32_1 = arith.constant 0 : i32
    %c0_i32_2 = arith.constant 0 : i32
    return %c0_i32, %c0_i32_0, %c0_i32_1 : i32, i32, i32
  }
  func.func @transform_8(%arg0: i32) -> (i32, i32, i32) {
    %c0_i32 = arith.constant 0 : i32
    %c0_i32_0 = arith.constant 0 : i32
    %c0_i32_1 = arith.constant 0 : i32
    %c0_i32_2 = arith.constant 0 : i32
    return %c0_i32, %c0_i32_0, %c0_i32_1 : i32, i32, i32
  }
  func.func @transform_9(%arg0: i32) -> (i32, i32, i32) {
    %c0_i32 = arith.constant 0 : i32
    %c0_i32_0 = arith.constant 0 : i32
    %c0_i32_1 = arith.constant 0 : i32
    %c0_i32_2 = arith.constant 0 : i32
    return %c0_i32, %c0_i32_0, %c0_i32_1 : i32, i32, i32
  }
  func.func @transform_10(%arg0: i32) -> (i32, i32, i32) {
    %c0_i32 = arith.constant 0 : i32
    %c0_i32_0 = arith.constant 0 : i32
    %c0_i32_1 = arith.constant 0 : i32
    %c0_i32_2 = arith.constant 0 : i32
    return %c0_i32, %c0_i32_0, %c0_i32_1 : i32, i32, i32
  }
  func.func @transform_11(%arg0: i32) -> (i32, i32) {
    %c0_i32 = arith.constant 0 : i32
    %c0_i32_0 = arith.constant 0 : i32
    %c0_i32_1 = arith.constant 0 : i32
    return %c0_i32, %c0_i32_0 : i32, i32
  }
  func.func @transform_12(%arg0: i32) -> (i32, i32) {
    %c0_i32 = arith.constant 0 : i32
    %c0_i32_0 = arith.constant 0 : i32
    %c0_i32_1 = arith.constant 0 : i32
    return %c0_i32, %c0_i32_0 : i32, i32
  }
}

</mosaic_0001>

<llo_original>
// kernel: tpu_custom_call.1
$region0: #{tpu_custom_call.1}
  #allocation0 [shape = 'u32[]', space=smem, size = 0x4, offset = 0x4, fixed_abs, tag = 'smem constant byte address 0x4 - core index']
  #allocation1 [shape = 'u32[144,128]{1,0:T(1,128)}', space=vmem, size = 0x12000, scoped, tag = 'internal scratch']
  %s0 = inlined_call_operand.vmem [shape: s32[16,1], index: 0, kind: input, shape index: {}]
  %s1 = inlined_call_operand.vmem [shape: f32[8,32], index: 1, kind: input, shape index: {}]
  %s2 = inlined_call_operand.vmem [shape: f32[2,8], index: 2, kind: input, shape index: {}]
  %s3 = inlined_call_operand.vmem [shape: f32[2,12], index: 3, kind: input, shape index: {}]
  %s4 = inlined_call_operand.vmem [shape: f32[3,32], index: 4, kind: input, shape index: {}]
  %s5 = inlined_call_operand.vmem [shape: f32[2,32,96], index: 5, kind: input, shape index: {}]
  %s6 = inlined_call_operand.vmem [shape: f32[2,32,32], index: 6, kind: input, shape index: {}]
  %s7 = inlined_call_operand.vmem [shape: f32[2,32,128], index: 7, kind: input, shape index: {}]
  %s8 = inlined_call_operand.vmem [shape: f32[2,128,32], index: 8, kind: input, shape index: {}]
  %s9 = inlined_call_operand.vmem [shape: f32[2,8,128], index: 9, kind: input, shape index: {}]
  %s10 = inlined_call_operand.hbm [shape: f32[6,64,64], index: 10, kind: input, shape index: {}]
  %s11 = inlined_call_operand.vmem [shape: f32[9,128], index: 11, kind: input, shape index: {}]
  %s12 = inlined_call_operand.vmem [shape: f32[2,1], index: 12, kind: output, shape index: {}]
  %s13 = sld [smem:[#allocation0]]
  $region62: #{tpu_custom_call.1} parent=0
    _
  %s15 = ssub.s32 1, %s13
  %s16 = scalar_select 0, %s15, %s13
  $region1: #{tpu_custom_call.1} parent=0
    #allocation2 [shape = 'u8[196608]{0}', space=vmem, size = 0x30000, scoped, tag = 'input window, operand 10, single buffered']
    #allocation3 [shape = 's32[1]{0}', space=sflag, size = 0x4, scoped, tag = 'scoped memory for tpu_custom_call.1']
    %17 = vsyncpa [#allocation3], 0
    // Predicated region
    $region2: #{tpu_custom_call.1} parent=1 // pred_check
      _
    $region3: #{tpu_custom_call.1} parent=1 // pred_check_branch
      %19 = sbr.rel (0) target = $region5
    $region4: #{tpu_custom_call.1} parent=1 // pred_region
      _
    $region5: #{tpu_custom_call.1} parent=1 // pred_fallthru
      _
    // Predicated region
    $region6: #{tpu_custom_call.1} parent=1 // pred_check
      _
    $region7: #{tpu_custom_call.1} parent=1 // pred_check_branch
      %21 = sbr.rel (0) target = $region9
    $region8: #{tpu_custom_call.1} parent=1 // pred_region
      _
    $region9: #{tpu_custom_call.1} parent=1 // pred_fallthru
      _
    // Predicated region
    $region10: #{tpu_custom_call.1} parent=1 // pred_check
      _
    $region11: #{tpu_custom_call.1} parent=1 // pred_check_branch
      %23 = sbr.rel (0) target = $region13
    $region12: #{tpu_custom_call.1} parent=1 // pred_region
      _
    $region13: #{tpu_custom_call.1} parent=1 // pred_fallthru
      _
    // Predicated region
    $region14: #{tpu_custom_call.1} parent=1 // pred_check
      _
    $region15: #{tpu_custom_call.1} parent=1 // pred_check_branch
      %25 = sbr.rel (0) target = $region17
    $region16: #{tpu_custom_call.1} parent=1 // pred_region
      _
    $region17: #{tpu_custom_call.1} parent=1 // pred_fallthru
      _
    // Predicated region
    $region18: #{tpu_custom_call.1} parent=1 // pred_check
      _
    $region19: #{tpu_custom_call.1} parent=1 // pred_check_branch
      %27 = sbr.rel (0) target = $region21
    $region20: #{tpu_custom_call.1} parent=1 // pred_region
      _
    $region21: #{tpu_custom_call.1} parent=1 // pred_fallthru
      _
    // Predicated region
    $region22: #{tpu_custom_call.1} parent=1 // pred_check
      _
    $region23: #{tpu_custom_call.1} parent=1 // pred_check_branch
      %29 = sbr.rel (0) target = $region25
    $region24: #{tpu_custom_call.1} parent=1 // pred_region
      _
    $region25: #{tpu_custom_call.1} parent=1 // pred_fallthru
      _
    // Predicated region
    $region26: #{tpu_custom_call.1} parent=1 // pred_check
      _
    $region27: #{tpu_custom_call.1} parent=1 // pred_check_branch
      %31 = sbr.rel (0) target = $region29
    $region28: #{tpu_custom_call.1} parent=1 // pred_region
      _
    $region29: #{tpu_custom_call.1} parent=1 // pred_fallthru
      _
    // Predicated region
    $region30: #{tpu_custom_call.1} parent=1 // pred_check
      _
    $region31: #{tpu_custom_call.1} parent=1 // pred_check_branch
      %33 = sbr.rel (0) target = $region33
    $region32: #{tpu_custom_call.1} parent=1 // pred_region
      _
    $region33: #{tpu_custom_call.1} parent=1 // pred_fallthru
      _
    // Predicated region
    $region34: #{tpu_custom_call.1} parent=1 // pred_check
      _
    $region35: #{tpu_custom_call.1} parent=1 // pred_check_branch
      %35 = sbr.rel (0) target = $region37
    $region36: #{tpu_custom_call.1} parent=1 // pred_region
      _
    $region37: #{tpu_custom_call.1} parent=1 // pred_fallthru
      _
    // Predicated region
    $region38: #{tpu_custom_call.1} parent=1 // pred_check
      _
    $region39: #{tpu_custom_call.1} parent=1 // pred_check_branch
      %37 = sbr.rel (0) target = $region41
    $region40: #{tpu_custom_call.1} parent=1 // pred_region
      _
    $region41: #{tpu_custom_call.1} parent=1 // pred_fallthru
      _
    // Predicated region
    $region42: #{tpu_custom_call.1} parent=1 // pred_check
      _
    $region43: #{tpu_custom_call.1} parent=1 // pred_check_branch
      %39 = sbr.rel (0) target = $region45
    $region44: #{tpu_custom_call.1} parent=1 // pred_region
      %s41 = ssub.s32 6144, 6144
      %42 = vsyncadd [#allocation3], %s41
      %s43 = sshll.u32 [#allocation2], 4
      %s44 = int_to_ptr.vmem [resolvable:$true] %s43
      %49 = dma.hbm_to_vmem [thread:$0]  %s10, 6144, %s44, [#allocation3], 128, 128, 8
    $region45: #{tpu_custom_call.1} parent=1 // pred_fallthru
      _
    // Predicated region
    $region46: #{tpu_custom_call.1} parent=1 // pred_check
      _
    $region47: #{tpu_custom_call.1} parent=1 // pred_check_branch
      %51 = sbr.rel (0) target = $region49
    $region48: #{tpu_custom_call.1} parent=1 // pred_region
      _
    $region49: #{tpu_custom_call.1} parent=1 // pred_fallthru
      _
    // Predicated region
    $region50: #{tpu_custom_call.1} parent=1 // pred_check
      _
    $region51: #{tpu_custom_call.1} parent=1 // pred_check_branch
      %53 = sbr.rel (0) target = $region53
    $region52: #{tpu_custom_call.1} parent=1 // pred_region
      %54 = dma.done [#allocation3], 6144
    $region53: #{tpu_custom_call.1} parent=1 // pred_fallthru
      _
    %v55 = vld [vmem:[%s0] sm:$0xff]
    %v56 = vld [vmem:[%s0 + $0x8] sm:$0xff]
    %v57 = vld [vmem:[%s4] sm:$0x7]
    %vm58 = vcmp.eq.s32.totalorder %v55, 0
    %vm59 = vcmp.eq.s32.totalorder %v56, 0
    %v60 = vsel %vm58, 1, 0
    %v61 = vsel %vm59, 1, 0
    %v62 = vcvt.s32.f32 %v60
    %v63 = vcvt.s32.f32 %v61
    %vm64 = vcmp.eq.s32.totalorder %v55, 1
    %vm65 = vcmp.eq.s32.totalorder %v56, 1
    %v66 = vsel %vm64, 1, 0
    %v67 = vsel %vm65, 1, 0
    %v68 = vcvt.s32.f32 %v66
    %v69 = vcvt.s32.f32 %v67
    %v70 = vsub.f32 1.0, %v62
    %v71 = vsub.f32 1.0, %v63
    %v72 = vsub.f32 %v70, %v68
    %v73 = vsub.f32 %v71, %v69
    %75 = vset.pattern.permute.xlu0 0
    %76 = vperm.xlu0 %75, %v62
    %v77 = vpop.permute.xlu0 %76
    %80 = vset.pattern.permute.xlu0 0
    %81 = vperm.xlu0 %80, %v63
    %v82 = vpop.permute.xlu0 %81
    %v84 = vlaneseq
    %v85 = vshrl.u32 %v84, 7
    %v86 = vsub.s32 0, %v85
    %v87 = vrot.slane %v57, %v86
    %v88 = vmul.f32 %v77, %v87
    %v89 = vmul.f32 %v82, %v87
    %91 = vset.pattern.permute.xlu0 0
    %92 = vperm.xlu0 %91, %v68
    %v93 = vpop.permute.xlu0 %92
    %96 = vset.pattern.permute.xlu0 0
    %97 = vperm.xlu0 %96, %v69
    %v98 = vpop.permute.xlu0 %97
    %v100 = vlaneseq
    %v101 = vshrl.u32 %v100, 7
    %v102 = vsub.s32 1, %v101
    %v103 = vrot.slane %v57, %v102
    %v104 = vmul.f32 %v93, %v103
    %v105 = vmul.f32 %v98, %v103
    %v106 = vadd.f32 %v88, %v104
    %v107 = vadd.f32 %v89, %v105
    %109 = vset.pattern.permute.xlu0 0
    %110 = vperm.xlu0 %109, %v72
    %v111 = vpop.permute.xlu0 %110
    %114 = vset.pattern.permute.xlu0 0
    %115 = vperm.xlu0 %114, %v73
    %v116 = vpop.permute.xlu0 %115
    %v118 = vlaneseq
    %v119 = vshrl.u32 %v118, 7
    %v120 = vsub.s32 2, %v119
    %v121 = vrot.slane %v57, %v120
    %v122 = vmul.f32 %v111, %v121
    %v123 = vmul.f32 %v116, %v121
    %v124 = vadd.f32 %v106, %v122
    %v125 = vadd.f32 %v107, %v123
    %v126 = vld [vmem:[%s1] sm:$0xff]
    %v127 = vadd.f32 %v124, %v126
    %v128 = vadd.f32 %v125, %v126
    %v129 = vld [vmem:[%s2] sm:$0x3]
    %vm130 = vcmp.gt.f32.partialorder %v129, 0.5
    %v131 = vsel %vm130, -1e+09, 0.0
    %v134 = vunpack.c.l.s4 1966171168
    %v135 = vunpack.c.0.s8 %v134
    %v136 = vlaneseq
    %v137 = vshrl.u32 %v136, 7
    %v138 = vsub.s32 %v135, %v137
    %v139 = vrot.slane %v131, %v138
    %v140 = vcombine.high %v139, %v139
    %v142 = vunpack.c.l.s4 1966171168
    %v143 = vunpack.c.0.s8 %v142
    %v144 = vlaneseq
    %v145 = vshrl.u32 %v144, 7
    %v146 = vsub.s32 %v143, %v145
    %v147 = vrot.slane %v139, %v146
    %v149 = vunpack.c.l.s4 1966171168
    %v150 = vunpack.c.0.s8 %v149
    %v151 = vlaneseq
    %v152 = vshrl.u32 %v151, 7
    %v153 = vsub.s32 %v150, %v152
    %v154 = vrot.slane %v140, %v153
    %v155 = vld [vmem:[%s9] sm:$0xff]
    %v156 = vld [vmem:[%s6] sm:$0xff]
    %v157 = vld [vmem:[%s6 + $0x8] sm:$0xff]
    %v158 = vld [vmem:[%s6 + $0x10] sm:$0xff]
    %v159 = vld [vmem:[%s6 + $0x18] sm:$0xff]
    %vm160 = vcmask 261120
    %v161 = vsel %vm160, %v127, 0.0
    %162 = vadd.xlane.f32.xlu0 %v161
    %v163 = vpop.xlane.xlu0 %162
    %v164 = vsel %vm160, %v128, 0.0
    %165 = vadd.xlane.f32.xlu0 %v164
    %v166 = vpop.xlane.xlu0 %165
    %v167 = vrcp.pop 32.0
    %v168 = vmul.f32 %v163, %v167
    %v169 = vmul.f32 %v166, %v167
    %v170 = vsub.f32 %v127, %v168
    %v171 = vsub.f32 %v128, %v169
    %v172 = vmul.f32 %v170, %v170
    %v173 = vmul.f32 %v171, %v171
    %v174 = vsel %vm160, %v172, 0.0
    %175 = vadd.xlane.f32.xlu0 %v174
    %v176 = vpop.xlane.xlu0 %175
    %v177 = vsel %vm160, %v173, 0.0
    %178 = vadd.xlane.f32.xlu0 %v177
    %v179 = vpop.xlane.xlu0 %178
    %v180 = vmul.f32 %v176, %v167
    %v181 = vmul.f32 %v179, %v167
    %v182 = vadd.f32 %v180, 1e-05
    %v183 = vadd.f32 %v181, 1e-05
    %v184 = vrsqrt.pop %v182
    %v185 = vrsqrt.pop %v183
    %v186 = vmul.f32 %v170, %v184
    %v187 = vmul.f32 %v171, %v185
    %v188 = vlaneseq
    %v189 = vshrl.u32 %v188, 7
    %v190 = vsub.s32 0, %v189
    %v191 = vrot.slane %v155, %v190
    %v192 = vmul.f32 %v186, %v191
    %v193 = vmul.f32 %v187, %v191
    %v194 = vlaneseq
    %v195 = vshrl.u32 %v194, 7
    %v196 = vsub.s32 1, %v195
    %v197 = vrot.slane %v155, %v196
    %v198 = vadd.f32 %v192, %v197
    %v199 = vadd.f32 %v193, %v197
    %v200 = vld [vmem:[%s5] sm:$0xff]
    %v201 = vld [vmem:[%s5 + $0x8] sm:$0xff]
    %v202 = vld [vmem:[%s5 + $0x10] sm:$0xff]
    %v203 = vld [vmem:[%s5 + $0x18] sm:$0xff]
    %v204 = vlaneseq
    %v205 = vshrl.u32 %v204, 7
    %v206 = vsub.s32 4, %v205
    %v207 = vrot.slane %v155, %v206
    %v209 = vsel %vm160, %v198, 0
    %v212 = vsel %vm160, %v199, 0
    %214 = vmatprep.subr.mxu0 0.0
    %215 = vmatpush1.msra.mxu0 %v200
    %216 = vmatprep.subr.mxu0 0.0
    %217 = vmatpush1.msra.mxu0 %v201
    %218 = vmatprep.subr.mxu0 0.0
    %219 = vmatpush1.msra.mxu0 %v202
    %220 = vmatprep.subr.mxu0 0.0
    %221 = vmatpush1.msra.mxu0 %v203
    %222 = vmatprep.subr.mxu0 0.0
    %223 = vmatpush1.msra.mxu0 0.0
    %224 = vmatprep.subr.mxu0 0.0
    %225 = vmatpush1.msra.mxu0 0.0
    %226 = vmatprep.subr.mxu0 0.0
    %227 = vmatpush1.msra.mxu0 0.0
    %228 = vmatprep.subr.mxu0 0.0
    %229 = vmatpush1.msra.mxu0 0.0
    %230 = vmatprep.subr.mxu0 0.0
    %231 = vmatpush1.msra.mxu0 0.0
    %232 = vmatprep.subr.mxu0 0.0
    %233 = vmatpush1.msra.mxu0 0.0
    %234 = vmatprep.subr.mxu0 0.0
    %235 = vmatpush1.msra.mxu0 0.0
    %236 = vmatprep.subr.mxu0 0.0
    %237 = vmatpush1.msra.mxu0 0.0
    %238 = vmatprep.subr.mxu0 0.0
    %239 = vmatpush1.msra.mxu0 0.0
    %240 = vmatprep.subr.mxu0 0.0
    %241 = vmatpush1.msra.mxu0 0.0
    %242 = vmatprep.subr.mxu0 0.0
    %243 = vmatpush1.msra.mxu0 0.0
    %244 = vmatprep.subr.mxu0 0.0
    %245 = vmatpush1.msra.mxu0 0.0
    %246 = vmatprep.subr.mxu0 0.0
    %247 = vmatpush1.msra.mxu0 0.0
    %248 = vmatprep.subr.mxu0 0.0
    %249 = vmatpush1.msra.mxu0 0.0
    %250 = vmatprep.subr.mxu0 0.0
    %251 = vmatpush1.msra.mxu0 0.0
    %252 = vmatprep.subr.mxu0 0.0
    %253 = vmatpush1.msra.mxu0 0.0
    %254 = vmatprep.subr.mxu0 0.0
    %255 = vmatpush1.msra.mxu0 0.0
    %256 = vmatprep.subr.mxu0 0.0
    %257 = vmatpush1.msra.mxu0 0.0
    %258 = vmatprep.subr.mxu0 0.0
    %259 = vmatpush1.msra.mxu0 0.0
    %260 = vmatprep.subr.mxu0 0.0
    %261 = vmatpush1.msra.mxu0 0.0
    %262 = vmatprep.subr.mxu0 0.0
    %263 = vmatpush1.msra.mxu0 0.0
    %264 = vmatprep.subr.mxu0 0.0
    %265 = vmatpush1.msra.mxu0 0.0
    %266 = vmatprep.subr.mxu0 0.0
    %267 = vmatpush1.msra.mxu0 0.0
    %268 = vmatprep.subr.mxu0 0.0
    %269 = vmatpush1.msra.mxu0 0.0
    %270 = vmatprep.subr.mxu0 0.0
    %271 = vmatpush1.msra.mxu0 0.0
    %272 = vmatprep.subr.mxu0 0.0
    %273 = vmatpush1.msra.mxu0 0.0
    %274 = vmatprep.subr.mxu0 0.0
    %275 = vmatpush1.msra.mxu0 0.0
    %276 = vmatprep.subr.mxu0 0.0
    %277 = vmatpush1.msra.mxu0 0.0
    %278 = vmatprep.mubr.f32.mxu0 0.0
    %279 = vmatmul.mubr.f32.gmra.mrb[0].mxu0 %v209
    %v280 = vpop.f32.mrb[0].mxu0
    %v281 = vadd.f32 %v207, %v280
    %v282 = vpop.f32.mrb[0].mxu0
    %283 = vmatprep.mubr.f32.mxu0 0.0
    %284 = vmatmul.mubr.f32.gmra.mrb[0].mxu0 %v212
    %v285 = vpop.f32.mrb[0].mxu0
    %v286 = vadd.f32 %v207, %v285
    %v287 = vpop.f32.mrb[0].mxu0
    %288 = vdwg.mxu0
    %v289 = vlaneseq
    %v290 = vshrl.u32 %v289, 7
    %v291 = vsub.s32 0, %v290
    %v292 = vrot.slane %v147, %v291
    %v293 = vlaneseq
    %v294 = vshrl.u32 %v293, 7
    %v295 = vsub.s32 0, %v294
    %v296 = vrot.slane %v154, %v295
    %300 = vrot.lane.b32.xlu0 %v281, 96
    %v301 = vpop.permute.xlu0 %300
    %vm302 = vcmask 64512
    %v303 = vsel %vm302, %v281, 0
    %v305 = vsel %vm302, %v301, 0
    %307 = vmatprep.subr.mxu0 0.0
    %308 = vmatpush1.xpose.msra.mxu0 %v305
    %309 = vmatprep.subr.mxu0 0.0
    %310 = vmatpush1.xpose.msra.mxu0 0.0
    %311 = vmatprep.subr.mxu0 0.0
    %312 = vmatpush1.xpose.msra.mxu0 0.0
    %313 = vmatprep.subr.mxu0 0.0
    %314 = vmatpush1.xpose.msra.mxu0 0.0
    %315 = vmatprep.subr.mxu0 0.0
    %316 = vmatpush1.xpose.msra.mxu0 0.0
    %317 = vmatprep.subr.mxu0 0.0
    %318 = vmatpush1.xpose.msra.mxu0 0.0
    %319 = vmatprep.subr.mxu0 0.0
    %320 = vmatpush1.xpose.msra.mxu0 0.0
    %321 = vmatprep.subr.mxu0 0.0
    %322 = vmatpush1.xpose.msra.mxu0 0.0
    %323 = vmatprep.subr.mxu0 0.0
    %324 = vmatpush1.xpose.msra.mxu0 0.0
    %325 = vmatprep.subr.mxu0 0.0
    %326 = vmatpush1.xpose.msra.mxu0 0.0
    %327 = vmatprep.subr.mxu0 0.0
    %328 = vmatpush1.xpose.msra.mxu0 0.0
    %329 = vmatprep.subr.mxu0 0.0
    %330 = vmatpush1.xpose.msra.mxu0 0.0
    %331 = vmatprep.subr.mxu0 0.0
    %332 = vmatpush1.xpose.msra.mxu0 0.0
    %333 = vmatprep.subr.mxu0 0.0
    %334 = vmatpush1.xpose.msra.mxu0 0.0
    %335 = vmatprep.subr.mxu0 0.0
    %336 = vmatpush1.xpose.msra.mxu0 0.0
    %337 = vmatprep.subr.mxu0 0.0
    %338 = vmatpush1.xpose.msra.mxu0 0.0
    %339 = vmatprep.subr.mxu0 0.0
    %340 = vmatpush1.xpose.msra.mxu0 0.0
    %341 = vmatprep.subr.mxu0 0.0
    %342 = vmatpush1.xpose.msra.mxu0 0.0
    %343 = vmatprep.subr.mxu0 0.0
    %344 = vmatpush1.xpose.msra.mxu0 0.0
    %345 = vmatprep.subr.mxu0 0.0
    %346 = vmatpush1.xpose.msra.mxu0 0.0
    %347 = vmatprep.subr.mxu0 0.0
    %348 = vmatpush1.xpose.msra.mxu0 0.0
    %349 = vmatprep.subr.mxu0 0.0
    %350 = vmatpush1.xpose.msra.mxu0 0.0
    %351 = vmatprep.subr.mxu0 0.0
    %352 = vmatpush1.xpose.msra.mxu0 0.0
    %353 = vmatprep.subr.mxu0 0.0
    %354 = vmatpush1.xpose.msra.mxu0 0.0
    %355 = vmatprep.subr.mxu0 0.0
    %356 = vmatpush1.xpose.msra.mxu0 0.0
    %357 = vmatprep.subr.mxu0 0.0
    %358 = vmatpush1.xpose.msra.mxu0 0.0
    %359 = vmatprep.subr.mxu0 0.0
    %360 = vmatpush1.xpose.msra.mxu0 0.0
    %361 = vmatprep.subr.mxu0 0.0
    %362 = vmatpush1.xpose.msra.mxu0 0.0
    %363 = vmatprep.subr.mxu0 0.0
    %364 = vmatpush1.xpose.msra.mxu0 0.0
    %365 = vmatprep.subr.mxu0 0.0
    %366 = vmatpush1.xpose.msra.mxu0 0.0
    %367 = vmatprep.subr.mxu0 0.0
    %368 = vmatpush1.xpose.msra.mxu0 0.0
    %369 = vmatprep.subr.mxu0 0.0
    %370 = vmatpush1.xpose.msra.mxu0 0.0
    %371 = vmatprep.mubr.f32.mxu0 0.0
    %372 = vmatmul.mubr.f32.gmra.mrb[0].mxu0 %v303
    %v373 = vpop.f32.mrb[0].mxu0
    %v374 = vadd.f32 %v292, %v373
    %v375 = vpop.f32.mrb[0].mxu0
    %376 = vdwg.mxu0
    %378 = vrot.lane.b32.xlu0 %v286, 96
    %v379 = vpop.permute.xlu0 %378
    %v380 = vsel %vm302, %v286, 0
    %v382 = vsel %vm302, %v379, 0
    %384 = vmatprep.subr.mxu0 0.0
    %385 = vmatpush1.xpose.msra.mxu0 %v382
    %386 = vmatprep.subr.mxu0 0.0
    %387 = vmatpush1.xpose.msra.mxu0 0.0
    %388 = vmatprep.subr.mxu0 0.0
    %389 = vmatpush1.xpose.msra.mxu0 0.0
    %390 = vmatprep.subr.mxu0 0.0
    %391 = vmatpush1.xpose.msra.mxu0 0.0
    %392 = vmatprep.subr.mxu0 0.0
    %393 = vmatpush1.xpose.msra.mxu0 0.0
    %394 = vmatprep.subr.mxu0 0.0
    %395 = vmatpush1.xpose.msra.mxu0 0.0
    %396 = vmatprep.subr.mxu0 0.0
    %397 = vmatpush1.xpose.msra.mxu0 0.0
    %398 = vmatprep.subr.mxu0 0.0
    %399 = vmatpush1.xpose.msra.mxu0 0.0
    %400 = vmatprep.subr.mxu0 0.0
    %401 = vmatpush1.xpose.msra.mxu0 0.0
    %402 = vmatprep.subr.mxu0 0.0
    %403 = vmatpush1.xpose.msra.mxu0 0.0
    %404 = vmatprep.subr.mxu0 0.0
    %405 = vmatpush1.xpose.msra.mxu0 0.0
    %406 = vmatprep.subr.mxu0 0.0
    %407 = vmatpush1.xpose.msra.mxu0 0.0
    %408 = vmatprep.subr.mxu0 0.0
    %409 = vmatpush1.xpose.msra.mxu0 0.0
    %410 = vmatprep.subr.mxu0 0.0
    %411 = vmatpush1.xpose.msra.mxu0 0.0
    %412 = vmatprep.subr.mxu0 0.0
    %413 = vmatpush1.xpose.msra.mxu0 0.0
    %414 = vmatprep.subr.mxu0 0.0
    %415 = vmatpush1.xpose.msra.mxu0 0.0
    %416 = vmatprep.subr.mxu0 0.0
    %417 = vmatpush1.xpose.msra.mxu0 0.0
    %418 = vmatprep.subr.mxu0 0.0
    %419 = vmatpush1.xpose.msra.mxu0 0.0
    %420 = vmatprep.subr.mxu0 0.0
    %421 = vmatpush1.xpose.msra.mxu0 0.0
    %422 = vmatprep.subr.mxu0 0.0
    %423 = vmatpush1.xpose.msra.mxu0 0.0
    %424 = vmatprep.subr.mxu0 0.0
    %425 = vmatpush1.xpose.msra.mxu0 0.0
    %426 = vmatprep.subr.mxu0 0.0
    %427 = vmatpush1.xpose.msra.mxu0 0.0
    %428 = vmatprep.subr.mxu0 0.0
    %429 = vmatpush1.xpose.msra.mxu0 0.0
    %430 = vmatprep.subr.mxu0 0.0
    %431 = vmatpush1.xpose.msra.mxu0 0.0
    %432 = vmatprep.subr.mxu0 0.0
    %433 = vmatpush1.xpose.msra.mxu0 0.0
    %434 = vmatprep.subr.mxu0 0.0
    %435 = vmatpush1.xpose.msra.mxu0 0.0
    %436 = vmatprep.subr.mxu0 0.0
    %437 = vmatpush1.xpose.msra.mxu0 0.0
    %438 = vmatprep.subr.mxu0 0.0
    %439 = vmatpush1.xpose.msra.mxu0 0.0
    %440 = vmatprep.subr.mxu0 0.0
    %441 = vmatpush1.xpose.msra.mxu0 0.0
    %442 = vmatprep.subr.mxu0 0.0
    %443 = vmatpush1.xpose.msra.mxu0 0.0
    %444 = vmatprep.subr.mxu0 0.0
    %445 = vmatpush1.xpose.msra.mxu0 0.0
    %446 = vmatprep.subr.mxu0 0.0
    %447 = vmatpush1.xpose.msra.mxu0 0.0
    %448 = vmatprep.mubr.f32.mxu0 0.0
    %449 = vmatmul.mubr.f32.gmra.mrb[0].mxu0 %v380
    %v450 = vpop.f32.mrb[0].mxu0
    %v451 = vadd.f32 %v296, %v450
    %v452 = vpop.f32.mrb[0].mxu0
    %453 = vdwg.mxu0
    %v454 = vsel %vm302, %v374, -inf
    %455 = vmax.xlane.f32.xlu0 %v454
    %v456 = vpop.xlane.xlu0 %455
    %v457 = vsel %vm302, %v451, -inf
    %458 = vmax.xlane.f32.xlu0 %v457
    %v459 = vpop.xlane.xlu0 %458
    %v460 = vsub.f32 %v374, %v456
    %v461 = vsub.f32 %v451, %v459
    %v462 = vmul.f32 %v460, 1.442695
    %v463 = vpow.pop %v462
    %v464 = vmul.f32 %v461, 1.442695
    %v465 = vpow.pop %v464
    %v466 = vsel %vm302, %v463, 0.0
    %467 = vadd.xlane.f32.xlu0 %v466
    %v468 = vpop.xlane.xlu0 %467
    %v469 = vsel %vm302, %v465, 0.0
    %470 = vadd.xlane.f32.xlu0 %v469
    %v471 = vpop.xlane.xlu0 %470
    %v472 = vrcp.pop %v468
    %v473 = vrcp.pop %v471
    %v474 = vmul.f32 %v463, %v472
    %v475 = vmul.f32 %v465, %v473
    %476 = vrot.lane.b32.xlu0 %v281, 64
    %v477 = vpop.permute.xlu0 %476
    %v480 = vsel %vm302, %v474, 0
    %482 = vmatprep.subr.mxu0 0.0
    %483 = vmatpush1.msra.mxu0 %v477
    %484 = vmatprep.subr.mxu0 0.0
    %485 = vmatpush1.msra.mxu0 0.0
    %486 = vmatprep.subr.mxu0 0.0
    %487 = vmatpush1.msra.mxu0 0.0
    %488 = vmatprep.subr.mxu0 0.0
    %489 = vmatpush1.msra.mxu0 0.0
    %490 = vmatprep.subr.mxu0 0.0
    %491 = vmatpush1.msra.mxu0 0.0
    %492 = vmatprep.subr.mxu0 0.0
    %493 = vmatpush1.msra.mxu0 0.0
    %494 = vmatprep.subr.mxu0 0.0
    %495 = vmatpush1.msra.mxu0 0.0
    %496 = vmatprep.subr.mxu0 0.0
    %497 = vmatpush1.msra.mxu0 0.0
    %498 = vmatprep.subr.mxu0 0.0
    %499 = vmatpush1.msra.mxu0 0.0
    %500 = vmatprep.subr.mxu0 0.0
    %501 = vmatpush1.msra.mxu0 0.0
    %502 = vmatprep.subr.mxu0 0.0
    %503 = vmatpush1.msra.mxu0 0.0
    %504 = vmatprep.subr.mxu0 0.0
    %505 = vmatpush1.msra.mxu0 0.0
    %506 = vmatprep.subr.mxu0 0.0
    %507 = vmatpush1.msra.mxu0 0.0
    %508 = vmatprep.subr.mxu0 0.0
    %509 = vmatpush1.msra.mxu0 0.0
    %510 = vmatprep.subr.mxu0 0.0
    %511 = vmatpush1.msra.mxu0 0.0
    %512 = vmatprep.subr.mxu0 0.0
    %513 = vmatpush1.msra.mxu0 0.0
    %514 = vmatprep.subr.mxu0 0.0
    %515 = vmatpush1.msra.mxu0 0.0
    %516 = vmatprep.subr.mxu0 0.0
    %517 = vmatpush1.msra.mxu0 0.0
    %518 = vmatprep.subr.mxu0 0.0
    %519 = vmatpush1.msra.mxu0 0.0
    %520 = vmatprep.subr.mxu0 0.0
    %521 = vmatpush1.msra.mxu0 0.0
    %522 = vmatprep.subr.mxu0 0.0
    %523 = vmatpush1.msra.mxu0 0.0
    %524 = vmatprep.subr.mxu0 0.0
    %525 = vmatpush1.msra.mxu0 0.0
    %526 = vmatprep.subr.mxu0 0.0
    %527 = vmatpush1.msra.mxu0 0.0
    %528 = vmatprep.subr.mxu0 0.0
    %529 = vmatpush1.msra.mxu0 0.0
    %530 = vmatprep.subr.mxu0 0.0
    %531 = vmatpush1.msra.mxu0 0.0
    %532 = vmatprep.subr.mxu0 0.0
    %533 = vmatpush1.msra.mxu0 0.0
    %534 = vmatprep.subr.mxu0 0.0
    %535 = vmatpush1.msra.mxu0 0.0
    %536 = vmatprep.subr.mxu0 0.0
    %537 = vmatpush1.msra.mxu0 0.0
    %538 = vmatprep.subr.mxu0 0.0
    %539 = vmatpush1.msra.mxu0 0.0
    %540 = vmatprep.subr.mxu0 0.0
    %541 = vmatpush1.msra.mxu0 0.0
    %542 = vmatprep.subr.mxu0 0.0
    %543 = vmatpush1.msra.mxu0 0.0
    %544 = vmatprep.subr.mxu0 0.0
    %545 = vmatpush1.msra.mxu0 0.0
    %546 = vmatprep.mubr.f32.mxu0 0.0
    %547 = vmatmul.mubr.f32.gmra.mrb[0].mxu0 %v480
    %v548 = vpop.f32.mrb[0].mxu0
    %v549 = vadd.f32 0.0, %v548
    %v550 = vpop.f32.mrb[0].mxu0
    %551 = vdwg.mxu0
    %552 = vrot.lane.b32.xlu0 %v286, 64
    %v553 = vpop.permute.xlu0 %552
    %v556 = vsel %vm302, %v475, 0
    %558 = vmatprep.subr.mxu0 0.0
    %559 = vmatpush1.msra.mxu0 %v553
    %560 = vmatprep.subr.mxu0 0.0
    %561 = vmatpush1.msra.mxu0 0.0
    %562 = vmatprep.subr.mxu0 0.0
    %563 = vmatpush1.msra.mxu0 0.0
    %564 = vmatprep.subr.mxu0 0.0
    %565 = vmatpush1.msra.mxu0 0.0
    %566 = vmatprep.subr.mxu0 0.0
    %567 = vmatpush1.msra.mxu0 0.0
    %568 = vmatprep.subr.mxu0 0.0
    %569 = vmatpush1.msra.mxu0 0.0
    %570 = vmatprep.subr.mxu0 0.0
    %571 = vmatpush1.msra.mxu0 0.0
    %572 = vmatprep.subr.mxu0 0.0
    %573 = vmatpush1.msra.mxu0 0.0
    %574 = vmatprep.subr.mxu0 0.0
    %575 = vmatpush1.msra.mxu0 0.0
    %576 = vmatprep.subr.mxu0 0.0
    %577 = vmatpush1.msra.mxu0 0.0
    %578 = vmatprep.subr.mxu0 0.0
    %579 = vmatpush1.msra.mxu0 0.0
    %580 = vmatprep.subr.mxu0 0.0
    %581 = vmatpush1.msra.mxu0 0.0
    %582 = vmatprep.subr.mxu0 0.0
    %583 = vmatpush1.msra.mxu0 0.0
    %584 = vmatprep.subr.mxu0 0.0
    %585 = vmatpush1.msra.mxu0 0.0
    %586 = vmatprep.subr.mxu0 0.0
    %587 = vmatpush1.msra.mxu0 0.0
    %588 = vmatprep.subr.mxu0 0.0
    %589 = vmatpush1.msra.mxu0 0.0
    %590 = vmatprep.subr.mxu0 0.0
    %591 = vmatpush1.msra.mxu0 0.0
    %592 = vmatprep.subr.mxu0 0.0
    %593 = vmatpush1.msra.mxu0 0.0
    %594 = vmatprep.subr.mxu0 0.0
    %595 = vmatpush1.msra.mxu0 0.0
    %596 = vmatprep.subr.mxu0 0.0
    %597 = vmatpush1.msra.mxu0 0.0
    %598 = vmatprep.subr.mxu0 0.0
    %599 = vmatpush1.msra.mxu0 0.0
    %600 = vmatprep.subr.mxu0 0.0
    %601 = vmatpush1.msra.mxu0 0.0
    %602 = vmatprep.subr.mxu0 0.0
    %603 = vmatpush1.msra.mxu0 0.0
    %604 = vmatprep.subr.mxu0 0.0
    %605 = vmatpush1.msra.mxu0 0.0
    %606 = vmatprep.subr.mxu0 0.0
    %607 = vmatpush1.msra.mxu0 0.0
    %608 = vmatprep.subr.mxu0 0.0
    %609 = vmatpush1.msra.mxu0 0.0
    %610 = vmatprep.subr.mxu0 0.0
    %611 = vmatpush1.msra.mxu0 0.0
    %612 = vmatprep.subr.mxu0 0.0
    %613 = vmatpush1.msra.mxu0 0.0
    %614 = vmatprep.subr.mxu0 0.0
    %615 = vmatpush1.msra.mxu0 0.0
    %616 = vmatprep.subr.mxu0 0.0
    %617 = vmatpush1.msra.mxu0 0.0
    %618 = vmatprep.subr.mxu0 0.0
    %619 = vmatpush1.msra.mxu0 0.0
    %620 = vmatprep.subr.mxu0 0.0
    %621 = vmatpush1.msra.mxu0 0.0
    %622 = vmatprep.mubr.f32.mxu0 0.0
    %623 = vmatmul.mubr.f32.gmra.mrb[0].mxu0 %v556
    %v624 = vpop.f32.mrb[0].mxu0
    %v625 = vadd.f32 0.0, %v624
    %v626 = vpop.f32.mrb[0].mxu0
    %627 = vdwg.mxu0
    %628 = vrot.lane.b32.xlu0 %v281, 120
    %v629 = vpop.permute.xlu0 %628
    %630 = vrot.lane.b32.xlu0 %v281, 88
    %v631 = vpop.permute.xlu0 %630
    %v632 = vsel %vm302, %v629, 0
    %v634 = vsel %vm302, %v631, 0
    %636 = vmatprep.subr.mxu0 0.0
    %637 = vmatpush1.xpose.msra.mxu0 %v634
    %638 = vmatprep.subr.mxu0 0.0
    %639 = vmatpush1.xpose.msra.mxu0 0.0
    %640 = vmatprep.subr.mxu0 0.0
    %641 = vmatpush1.xpose.msra.mxu0 0.0
    %642 = vmatprep.subr.mxu0 0.0
    %643 = vmatpush1.xpose.msra.mxu0 0.0
    %644 = vmatprep.subr.mxu0 0.0
    %645 = vmatpush1.xpose.msra.mxu0 0.0
    %646 = vmatprep.subr.mxu0 0.0
    %647 = vmatpush1.xpose.msra.mxu0 0.0
    %648 = vmatprep.subr.mxu0 0.0
    %649 = vmatpush1.xpose.msra.mxu0 0.0
    %650 = vmatprep.subr.mxu0 0.0
    %651 = vmatpush1.xpose.msra.mxu0 0.0
    %652 = vmatprep.subr.mxu0 0.0
    %653 = vmatpush1.xpose.msra.mxu0 0.0
    %654 = vmatprep.subr.mxu0 0.0
    %655 = vmatpush1.xpose.msra.mxu0 0.0
    %656 = vmatprep.subr.mxu0 0.0
    %657 = vmatpush1.xpose.msra.mxu0 0.0
    %658 = vmatprep.subr.mxu0 0.0
    %659 = vmatpush1.xpose.msra.mxu0 0.0
    %660 = vmatprep.subr.mxu0 0.0
    %661 = vmatpush1.xpose.msra.mxu0 0.0
    %662 = vmatprep.subr.mxu0 0.0
    %663 = vmatpush1.xpose.msra.mxu0 0.0
    %664 = vmatprep.subr.mxu0 0.0
    %665 = vmatpush1.xpose.msra.mxu0 0.0
    %666 = vmatprep.subr.mxu0 0.0
    %667 = vmatpush1.xpose.msra.mxu0 0.0
    %668 = vmatprep.subr.mxu0 0.0
    %669 = vmatpush1.xpose.msra.mxu0 0.0
    %670 = vmatprep.subr.mxu0 0.0
    %671 = vmatpush1.xpose.msra.mxu0 0.0
    %672 = vmatprep.subr.mxu0 0.0
    %673 = vmatpush1.xpose.msra.mxu0 0.0
    %674 = vmatprep.subr.mxu0 0.0
    %675 = vmatpush1.xpose.msra.mxu0 0.0
    %676 = vmatprep.subr.mxu0 0.0
    %677 = vmatpush1.xpose.msra.mxu0 0.0
    %678 = vmatprep.subr.mxu0 0.0
    %679 = vmatpush1.xpose.msra.mxu0 0.0
    %680 = vmatprep.subr.mxu0 0.0
    %681 = vmatpush1.xpose.msra.mxu0 0.0
    %682 = vmatprep.subr.mxu0 0.0
    %683 = vmatpush1.xpose.msra.mxu0 0.0
    %684 = vmatprep.subr.mxu0 0.0
    %685 = vmatpush1.xpose.msra.mxu0 0.0
    %686 = vmatprep.subr.mxu0 0.0
    %687 = vmatpush1.xpose.msra.mxu0 0.0
    %688 = vmatprep.subr.mxu0 0.0
    %689 = vmatpush1.xpose.msra.mxu0 0.0
    %690 = vmatprep.subr.mxu0 0.0
    %691 = vmatpush1.xpose.msra.mxu0 0.0
    %692 = vmatprep.subr.mxu0 0.0
    %693 = vmatpush1.xpose.msra.mxu0 0.0
    %694 = vmatprep.subr.mxu0 0.0
    %695 = vmatpush1.xpose.msra.mxu0 0.0
    %696 = vmatprep.subr.mxu0 0.0
    %697 = vmatpush1.xpose.msra.mxu0 0.0
    %698 = vmatprep.subr.mxu0 0.0
    %699 = vmatpush1.xpose.msra.mxu0 0.0
    %700 = vmatprep.mubr.f32.mxu0 0.0
    %701 = vmatmul.mubr.f32.gmra.mrb[0].mxu0 %v632
    %v702 = vpop.f32.mrb[0].mxu0
    %v703 = vadd.f32 %v292, %v702
    %v704 = vpop.f32.mrb[0].mxu0
    %705 = vdwg.mxu0
    %706 = vrot.lane.b32.xlu0 %v286, 120
    %v707 = vpop.permute.xlu0 %706
    %708 = vrot.lane.b32.xlu0 %v286, 88
    %v709 = vpop.permute.xlu0 %708
    %v710 = vsel %vm302, %v707, 0
    %v712 = vsel %vm302, %v709, 0
    %714 = vmatprep.subr.mxu0 0.0
    %715 = vmatpush1.xpose.msra.mxu0 %v712
    %716 = vmatprep.subr.mxu0 0.0
    %717 = vmatpush1.xpose.msra.mxu0 0.0
    %718 = vmatprep.subr.mxu0 0.0
    %719 = vmatpush1.xpose.msra.mxu0 0.0
    %720 = vmatprep.subr.mxu0 0.0
    %721 = vmatpush1.xpose.msra.mxu0 0.0
    %722 = vmatprep.subr.mxu0 0.0
    %723 = vmatpush1.xpose.msra.mxu0 0.0
    %724 = vmatprep.subr.mxu0 0.0
    %725 = vmatpush1.xpose.msra.mxu0 0.0
    %726 = vmatprep.subr.mxu0 0.0
    %727 = vmatpush1.xpose.msra.mxu0 0.0
    %728 = vmatprep.subr.mxu0 0.0
    %729 = vmatpush1.xpose.msra.mxu0 0.0
    %730 = vmatprep.subr.mxu0 0.0
    %731 = vmatpush1.xpose.msra.mxu0 0.0
    %732 = vmatprep.subr.mxu0 0.0
    %733 = vmatpush1.xpose.msra.mxu0 0.0
    %734 = vmatprep.subr.mxu0 0.0
    %735 = vmatpush1.xpose.msra.mxu0 0.0
    %736 = vmatprep.subr.mxu0 0.0
    %737 = vmatpush1.xpose.msra.mxu0 0.0
    %738 = vmatprep.subr.mxu0 0.0
    %739 = vmatpush1.xpose.msra.mxu0 0.0
    %740 = vmatprep.subr.mxu0 0.0
    %741 = vmatpush1.xpose.msra.mxu0 0.0
    %742 = vmatprep.subr.mxu0 0.0
    %743 = vmatpush1.xpose.msra.mxu0 0.0
    %744 = vmatprep.subr.mxu0 0.0
    %745 = vmatpush1.xpose.msra.mxu0 0.0
    %746 = vmatprep.subr.mxu0 0.0
    %747 = vmatpush1.xpose.msra.mxu0 0.0
    %748 = vmatprep.subr.mxu0 0.0
    %749 = vmatpush1.xpose.msra.mxu0 0.0
    %750 = vmatprep.subr.mxu0 0.0
    %751 = vmatpush1.xpose.msra.mxu0 0.0
    %752 = vmatprep.subr.mxu0 0.0
    %753 = vmatpush1.xpose.msra.mxu0 0.0
    %754 = vmatprep.subr.mxu0 0.0
    %755 = vmatpush1.xpose.msra.mxu0 0.0
    %756 = vmatprep.subr.mxu0 0.0
    %757 = vmatpush1.xpose.msra.mxu0 0.0
    %758 = vmatprep.subr.mxu0 0.0
    %759 = vmatpush1.xpose.msra.mxu0 0.0
    %760 = vmatprep.subr.mxu0 0.0
    %761 = vmatpush1.xpose.msra.mxu0 0.0
    %762 = vmatprep.subr.mxu0 0.0
    %763 = vmatpush1.xpose.msra.mxu0 0.0
    %764 = vmatprep.subr.mxu0 0.0
    %765 = vmatpush1.xpose.msra.mxu0 0.0
    %766 = vmatprep.subr.mxu0 0.0
    %767 = vmatpush1.xpose.msra.mxu0 0.0
    %768 = vmatprep.subr.mxu0 0.0
    %769 = vmatpush1.xpose.msra.mxu0 0.0
    %770 = vmatprep.subr.mxu0 0.0
    %771 = vmatpush1.xpose.msra.mxu0 0.0
    %772 = vmatprep.subr.mxu0 0.0
    %773 = vmatpush1.xpose.msra.mxu0 0.0
    %774 = vmatprep.subr.mxu0 0.0
    %775 = vmatpush1.xpose.msra.mxu0 0.0
    %776 = vmatprep.subr.mxu0 0.0
    %777 = vmatpush1.xpose.msra.mxu0 0.0
    %778 = vmatprep.mubr.f32.mxu0 0.0
    %779 = vmatmul.mubr.f32.gmra.mrb[0].mxu0 %v710
    %v780 = vpop.f32.mrb[0].mxu0
    %v781 = vadd.f32 %v296, %v780
    %v782 = vpop.f32.mrb[0].mxu0
    %783 = vdwg.mxu0
    %v784 = vsel %vm302, %v703, -inf
    %785 = vmax.xlane.f32.xlu0 %v784
    %v786 = vpop.xlane.xlu0 %785
    %v787 = vsel %vm302, %v781, -inf
    %788 = vmax.xlane.f32.xlu0 %v787
    %v789 = vpop.xlane.xlu0 %788
    %v790 = vsub.f32 %v703, %v786
    %v791 = vsub.f32 %v781, %v789
    %v792 = vmul.f32 %v790, 1.442695
    %v793 = vpow.pop %v792
    %v794 = vmul.f32 %v791, 1.442695
    %v795 = vpow.pop %v794
    %v796 = vsel %vm302, %v793, 0.0
    %797 = vadd.xlane.f32.xlu0 %v796
    %v798 = vpop.xlane.xlu0 %797
    %v799 = vsel %vm302, %v795, 0.0
    %800 = vadd.xlane.f32.xlu0 %v799
    %v801 = vpop.xlane.xlu0 %800
    %v802 = vrcp.pop %v798
    %v803 = vrcp.pop %v801
    %v804 = vmul.f32 %v793, %v802
    %v805 = vmul.f32 %v795, %v803
    %806 = vrot.lane.b32.xlu0 %v281, 56
    %v807 = vpop.permute.xlu0 %806
    %v810 = vsel %vm302, %v804, 0
    %812 = vmatprep.subr.mxu0 0.0
    %813 = vmatpush1.msra.mxu0 %v807
    %814 = vmatprep.subr.mxu0 0.0
    %815 = vmatpush1.msra.mxu0 0.0
    %816 = vmatprep.subr.mxu0 0.0
    %817 = vmatpush1.msra.mxu0 0.0
    %818 = vmatprep.subr.mxu0 0.0
    %819 = vmatpush1.msra.mxu0 0.0
    %820 = vmatprep.subr.mxu0 0.0
    %821 = vmatpush1.msra.mxu0 0.0
    %822 = vmatprep.subr.mxu0 0.0
    %823 = vmatpush1.msra.mxu0 0.0
    %824 = vmatprep.subr.mxu0 0.0
    %825 = vmatpush1.msra.mxu0 0.0
    %826 = vmatprep.subr.mxu0 0.0
    %827 = vmatpush1.msra.mxu0 0.0
    %828 = vmatprep.subr.mxu0 0.0
    %829 = vmatpush1.msra.mxu0 0.0
    %830 = vmatprep.subr.mxu0 0.0
    %831 = vmatpush1.msra.mxu0 0.0
    %832 = vmatprep.subr.mxu0 0.0
    %833 = vmatpush1.msra.mxu0 0.0
    %834 = vmatprep.subr.mxu0 0.0
    %835 = vmatpush1.msra.mxu0 0.0
    %836 = vmatprep.subr.mxu0 0.0
    %837 = vmatpush1.msra.mxu0 0.0
    %838 = vmatprep.subr.mxu0 0.0
    %839 = vmatpush1.msra.mxu0 0.0
    %840 = vmatprep.subr.mxu0 0.0
    %841 = vmatpush1.msra.mxu0 0.0
    %842 = vmatprep.subr.mxu0 0.0
    %843 = vmatpush1.msra.mxu0 0.0
    %844 = vmatprep.subr.mxu0 0.0
    %845 = vmatpush1.msra.mxu0 0.0
    %846 = vmatprep.subr.mxu0 0.0
    %847 = vmatpush1.msra.mxu0 0.0
    %848 = vmatprep.subr.mxu0 0.0
    %849 = vmatpush1.msra.mxu0 0.0
    %850 = vmatprep.subr.mxu0 0.0
    %851 = vmatpush1.msra.mxu0 0.0
    %852 = vmatprep.subr.mxu0 0.0
    %853 = vmatpush1.msra.mxu0 0.0
    %854 = vmatprep.subr.mxu0 0.0
    %855 = vmatpush1.msra.mxu0 0.0
    %856 = vmatprep.subr.mxu0 0.0
    %857 = vmatpush1.msra.mxu0 0.0
    %858 = vmatprep.subr.mxu0 0.0
    %859 = vmatpush1.msra.mxu0 0.0
    %860 = vmatprep.subr.mxu0 0.0
    %861 = vmatpush1.msra.mxu0 0.0
    %862 = vmatprep.subr.mxu0 0.0
    %863 = vmatpush1.msra.mxu0 0.0
    %864 = vmatprep.subr.mxu0 0.0
    %865 = vmatpush1.msra.mxu0 0.0
    %866 = vmatprep.subr.mxu0 0.0
    %867 = vmatpush1.msra.mxu0 0.0
    %868 = vmatprep.subr.mxu0 0.0
    %869 = vmatpush1.msra.mxu0 0.0
    %870 = vmatprep.subr.mxu0 0.0
    %871 = vmatpush1.msra.mxu0 0.0
    %872 = vmatprep.subr.mxu0 0.0
    %873 = vmatpush1.msra.mxu0 0.0
    %874 = vmatprep.subr.mxu0 0.0
    %875 = vmatpush1.msra.mxu0 0.0
    %876 = vmatprep.mubr.f32.mxu0 0.0
    %877 = vmatmul.mubr.f32.gmra.mrb[0].mxu0 %v810
    %v878 = vpop.f32.mrb[0].mxu0
    %v879 = vadd.f32 0.0, %v878
    %v880 = vpop.f32.mrb[0].mxu0
    %881 = vdwg.mxu0
    %882 = vrot.lane.b32.xlu0 %v286, 56
    %v883 = vpop.permute.xlu0 %882
    %v886 = vsel %vm302, %v805, 0
    %888 = vmatprep.subr.mxu0 0.0
    %889 = vmatpush1.msra.mxu0 %v883
    %890 = vmatprep.subr.mxu0 0.0
    %891 = vmatpush1.msra.mxu0 0.0
    %892 = vmatprep.subr.mxu0 0.0
    %893 = vmatpush1.msra.mxu0 0.0
    %894 = vmatprep.subr.mxu0 0.0
    %895 = vmatpush1.msra.mxu0 0.0
    %896 = vmatprep.subr.mxu0 0.0
    %897 = vmatpush1.msra.mxu0 0.0
    %898 = vmatprep.subr.mxu0 0.0
    %899 = vmatpush1.msra.mxu0 0.0
    %900 = vmatprep.subr.mxu0 0.0
    %901 = vmatpush1.msra.mxu0 0.0
    %902 = vmatprep.subr.mxu0 0.0
    %903 = vmatpush1.msra.mxu0 0.0
    %904 = vmatprep.subr.mxu0 0.0
    %905 = vmatpush1.msra.mxu0 0.0
    %906 = vmatprep.subr.mxu0 0.0
    %907 = vmatpush1.msra.mxu0 0.0
    %908 = vmatprep.subr.mxu0 0.0
    %909 = vmatpush1.msra.mxu0 0.0
    %910 = vmatprep.subr.mxu0 0.0
    %911 = vmatpush1.msra.mxu0 0.0
    %912 = vmatprep.subr.mxu0 0.0
    %913 = vmatpush1.msra.mxu0 0.0
    %914 = vmatprep.subr.mxu0 0.0
    %915 = vmatpush1.msra.mxu0 0.0
    %916 = vmatprep.subr.mxu0 0.0
    %917 = vmatpush1.msra.mxu0 0.0
    %918 = vmatprep.subr.mxu0 0.0
    %919 = vmatpush1.msra.mxu0 0.0
    %920 = vmatprep.subr.mxu0 0.0
    %921 = vmatpush1.msra.mxu0 0.0
    %922 = vmatprep.subr.mxu0 0.0
    %923 = vmatpush1.msra.mxu0 0.0
    %924 = vmatprep.subr.mxu0 0.0
    %925 = vmatpush1.msra.mxu0 0.0
    %926 = vmatprep.subr.mxu0 0.0
    %927 = vmatpush1.msra.mxu0 0.0
    %928 = vmatprep.subr.mxu0 0.0
    %929 = vmatpush1.msra.mxu0 0.0
    %930 = vmatprep.subr.mxu0 0.0
    %931 = vmatpush1.msra.mxu0 0.0
    %932 = vmatprep.subr.mxu0 0.0
    %933 = vmatpush1.msra.mxu0 0.0
    %934 = vmatprep.subr.mxu0 0.0
    %935 = vmatpush1.msra.mxu0 0.0
    %936 = vmatprep.subr.mxu0 0.0
    %937 = vmatpush1.msra.mxu0 0.0
    %938 = vmatprep.subr.mxu0 0.0
    %939 = vmatpush1.msra.mxu0 0.0
    %940 = vmatprep.subr.mxu0 0.0
    %941 = vmatpush1.msra.mxu0 0.0
    %942 = vmatprep.subr.mxu0 0.0
    %943 = vmatpush1.msra.mxu0 0.0
    %944 = vmatprep.subr.mxu0 0.0
    %945 = vmatpush1.msra.mxu0 0.0
    %946 = vmatprep.subr.mxu0 0.0
    %947 = vmatpush1.msra.mxu0 0.0
    %948 = vmatprep.subr.mxu0 0.0
    %949 = vmatpush1.msra.mxu0 0.0
    %950 = vmatprep.subr.mxu0 0.0
    %951 = vmatpush1.msra.mxu0 0.0
    %952 = vmatprep.mubr.f32.mxu0 0.0
    %953 = vmatmul.mubr.f32.gmra.mrb[0].mxu0 %v886
    %v954 = vpop.f32.mrb[0].mxu0
    %v955 = vadd.f32 0.0, %v954
    %v956 = vpop.f32.mrb[0].mxu0
    %957 = vdwg.mxu0
    %v959 = vsel %vm302, %v879, 0
    %v962 = vsel %vm302, %v955, 0
    %964 = vmatprep.subr.mxu0 0.0
    %965 = vmatpush1.msra.mxu0 %v157
    %966 = vmatprep.subr.mxu0 0.0
    %967 = vmatpush1.msra.mxu0 0.0
    %968 = vmatprep.subr.mxu0 0.0
    %969 = vmatpush1.msra.mxu0 0.0
    %970 = vmatprep.subr.mxu0 0.0
    %971 = vmatpush1.msra.mxu0 0.0
    %972 = vmatprep.subr.mxu0 0.0
    %973 = vmatpush1.msra.mxu0 0.0
    %974 = vmatprep.subr.mxu0 0.0
    %975 = vmatpush1.msra.mxu0 0.0
    %976 = vmatprep.subr.mxu0 0.0
    %977 = vmatpush1.msra.mxu0 0.0
    %978 = vmatprep.subr.mxu0 0.0
    %979 = vmatpush1.msra.mxu0 0.0
    %980 = vmatprep.subr.mxu0 0.0
    %981 = vmatpush1.msra.mxu0 0.0
    %982 = vmatprep.subr.mxu0 0.0
    %983 = vmatpush1.msra.mxu0 0.0
    %984 = vmatprep.subr.mxu0 0.0
    %985 = vmatpush1.msra.mxu0 0.0
    %986 = vmatprep.subr.mxu0 0.0
    %987 = vmatpush1.msra.mxu0 0.0
    %988 = vmatprep.subr.mxu0 0.0
    %989 = vmatpush1.msra.mxu0 0.0
    %990 = vmatprep.subr.mxu0 0.0
    %991 = vmatpush1.msra.mxu0 0.0
    %992 = vmatprep.subr.mxu0 0.0
    %993 = vmatpush1.msra.mxu0 0.0
    %994 = vmatprep.subr.mxu0 0.0
    %995 = vmatpush1.msra.mxu0 0.0
    %996 = vmatprep.subr.mxu0 0.0
    %997 = vmatpush1.msra.mxu0 0.0
    %998 = vmatprep.subr.mxu0 0.0
    %999 = vmatpush1.msra.mxu0 0.0
    %1000 = vmatprep.subr.mxu0 0.0
    %1001 = vmatpush1.msra.mxu0 0.0
    %1002 = vmatprep.subr.mxu0 0.0
    %1003 = vmatpush1.msra.mxu0 0.0
    %1004 = vmatprep.subr.mxu0 0.0
    %1005 = vmatpush1.msra.mxu0 0.0
    %1006 = vmatprep.subr.mxu0 0.0
    %1007 = vmatpush1.msra.mxu0 0.0
    %1008 = vmatprep.subr.mxu0 0.0
    %1009 = vmatpush1.msra.mxu0 0.0
    %1010 = vmatprep.subr.mxu0 0.0
    %1011 = vmatpush1.msra.mxu0 0.0
    %1012 = vmatprep.subr.mxu0 0.0
    %1013 = vmatpush1.msra.mxu0 0.0
    %1014 = vmatprep.subr.mxu0 0.0
    %1015 = vmatpush1.msra.mxu0 0.0
    %1016 = vmatprep.subr.mxu0 0.0
    %1017 = vmatpush1.msra.mxu0 0.0
    %1018 = vmatprep.subr.mxu0 0.0
    %1019 = vmatpush1.msra.mxu0 0.0
    %1020 = vmatprep.subr.mxu0 0.0
    %1021 = vmatpush1.msra.mxu0 0.0
    %1022 = vmatprep.subr.mxu0 0.0
    %1023 = vmatpush1.msra.mxu0 0.0
    %1024 = vmatprep.subr.mxu0 0.0
    %1025 = vmatpush1.msra.mxu0 0.0
    %1026 = vmatprep.subr.mxu0 0.0
    %1027 = vmatpush1.msra.mxu0 0.0
    %1028 = vmatprep.mubr.f32.mxu0 0.0
    %1029 = vmatmul.mubr.f32.gmra.mrb[0].mxu0 %v959
    %v1030 = vpop.f32.mrb[0].mxu0
    %v1031 = vadd.f32 0.0, %v1030
    %v1032 = vpop.f32.mrb[0].mxu0
    %1033 = vmatprep.mubr.f32.mxu0 0.0
    %1034 = vmatmul.mubr.f32.gmra.mrb[0].mxu0 %v962
    %v1035 = vpop.f32.mrb[0].mxu0
    %v1036 = vadd.f32 0.0, %v1035
    %v1037 = vpop.f32.mrb[0].mxu0
    %1038 = vdwg.mxu0
    %v1040 = vsel %vm302, %v549, 0
    %v1043 = vsel %vm302, %v625, 0
    %1045 = vmatprep.subr.mxu0 0.0
    %1046 = vmatpush1.msra.mxu0 %v156
    %1047 = vmatprep.subr.mxu0 0.0
    %1048 = vmatpush1.msra.mxu0 0.0
    %1049 = vmatprep.subr.mxu0 0.0
    %1050 = vmatpush1.msra.mxu0 0.0
    %1051 = vmatprep.subr.mxu0 0.0
    %1052 = vmatpush1.msra.mxu0 0.0
    %1053 = vmatprep.subr.mxu0 0.0
    %1054 = vmatpush1.msra.mxu0 0.0
    %1055 = vmatprep.subr.mxu0 0.0
    %1056 = vmatpush1.msra.mxu0 0.0
    %1057 = vmatprep.subr.mxu0 0.0
    %1058 = vmatpush1.msra.mxu0 0.0
    %1059 = vmatprep.subr.mxu0 0.0
    %1060 = vmatpush1.msra.mxu0 0.0
    %1061 = vmatprep.subr.mxu0 0.0
    %1062 = vmatpush1.msra.mxu0 0.0
    %1063 = vmatprep.subr.mxu0 0.0
    %1064 = vmatpush1.msra.mxu0 0.0
    %1065 = vmatprep.subr.mxu0 0.0
    %1066 = vmatpush1.msra.mxu0 0.0
    %1067 = vmatprep.subr.mxu0 0.0
    %1068 = vmatpush1.msra.mxu0 0.0
    %1069 = vmatprep.subr.mxu0 0.0
    %1070 = vmatpush1.msra.mxu0 0.0
    %1071 = vmatprep.subr.mxu0 0.0
    %1072 = vmatpush1.msra.mxu0 0.0
    %1073 = vmatprep.subr.mxu0 0.0
    %1074 = vmatpush1.msra.mxu0 0.0
    %1075 = vmatprep.subr.mxu0 0.0
    %1076 = vmatpush1.msra.mxu0 0.0
    %1077 = vmatprep.subr.mxu0 0.0
    %1078 = vmatpush1.msra.mxu0 0.0
    %1079 = vmatprep.subr.mxu0 0.0
    %1080 = vmatpush1.msra.mxu0 0.0
    %1081 = vmatprep.subr.mxu0 0.0
    %1082 = vmatpush1.msra.mxu0 0.0
    %1083 = vmatprep.subr.mxu0 0.0
    %1084 = vmatpush1.msra.mxu0 0.0
    %1085 = vmatprep.subr.mxu0 0.0
    %1086 = vmatpush1.msra.mxu0 0.0
    %1087 = vmatprep.subr.mxu0 0.0
    %1088 = vmatpush1.msra.mxu0 0.0
    %1089 = vmatprep.subr.mxu0 0.0
    %1090 = vmatpush1.msra.mxu0 0.0
    %1091 = vmatprep.subr.mxu0 0.0
    %1092 = vmatpush1.msra.mxu0 0.0
    %1093 = vmatprep.subr.mxu0 0.0
    %1094 = vmatpush1.msra.mxu0 0.0
    %1095 = vmatprep.subr.mxu0 0.0
    %1096 = vmatpush1.msra.mxu0 0.0
    %1097 = vmatprep.subr.mxu0 0.0
    %1098 = vmatpush1.msra.mxu0 0.0
    %1099 = vmatprep.subr.mxu0 0.0
    %1100 = vmatpush1.msra.mxu0 0.0
    %1101 = vmatprep.subr.mxu0 0.0
    %1102 = vmatpush1.msra.mxu0 0.0
    %1103 = vmatprep.subr.mxu0 0.0
    %1104 = vmatpush1.msra.mxu0 0.0
    %1105 = vmatprep.subr.mxu0 0.0
    %1106 = vmatpush1.msra.mxu0 0.0
    %1107 = vmatprep.subr.mxu0 0.0
    %1108 = vmatpush1.msra.mxu0 0.0
    %1109 = vmatprep.mubr.f32.mxu0 0.0
    %1110 = vmatmul.mubr.f32.gmra.mrb[0].mxu0 %v1040
    %v1111 = vpop.f32.mrb[0].mxu0
    %v1112 = vadd.f32 %v1031, %v1111
    %v1113 = vpop.f32.mrb[0].mxu0
    %1114 = vmatprep.mubr.f32.mxu0 0.0
    %1115 = vmatmul.mubr.f32.gmra.mrb[0].mxu0 %v1043
    %v1116 = vpop.f32.mrb[0].mxu0
    %v1117 = vadd.f32 %v1036, %v1116
    %v1118 = vpop.f32.mrb[0].mxu0
    %1119 = vdwg.mxu0
    %1120 = vrot.lane.b32.xlu0 %v281, 112
    %v1121 = vpop.permute.xlu0 %1120
    %1122 = vrot.lane.b32.xlu0 %v281, 80
    %v1123 = vpop.permute.xlu0 %1122
    %v1124 = vsel %vm302, %v1121, 0
    %v1126 = vsel %vm302, %v1123, 0
    %1128 = vmatprep.subr.mxu0 0.0
    %1129 = vmatpush1.xpose.msra.mxu0 %v1126
    %1130 = vmatprep.subr.mxu0 0.0
    %1131 = vmatpush1.xpose.msra.mxu0 0.0
    %1132 = vmatprep.subr.mxu0 0.0
    %1133 = vmatpush1.xpose.msra.mxu0 0.0
    %1134 = vmatprep.subr.mxu0 0.0
    %1135 = vmatpush1.xpose.msra.mxu0 0.0
    %1136 = vmatprep.subr.mxu0 0.0
    %1137 = vmatpush1.xpose.msra.mxu0 0.0
    %1138 = vmatprep.subr.mxu0 0.0
    %1139 = vmatpush1.xpose.msra.mxu0 0.0
    %1140 = vmatprep.subr.mxu0 0.0
    %1141 = vmatpush1.xpose.msra.mxu0 0.0
    %1142 = vmatprep.subr.mxu0 0.0
    %1143 = vmatpush1.xpose.msra.mxu0 0.0
    %1144 = vmatprep.subr.mxu0 0.0
    %1145 = vmatpush1.xpose.msra.mxu0 0.0
    %1146 = vmatprep.subr.mxu0 0.0
    %1147 = vmatpush1.xpose.msra.mxu0 0.0
    %1148 = vmatprep.subr.mxu0 0.0
    %1149 = vmatpush1.xpose.msra.mxu0 0.0
    %1150 = vmatprep.subr.mxu0 0.0
    %1151 = vmatpush1.xpose.msra.mxu0 0.0
    %1152 = vmatprep.subr.mxu0 0.0
    %1153 = vmatpush1.xpose.msra.mxu0 0.0
    %1154 = vmatprep.subr.mxu0 0.0
    %1155 = vmatpush1.xpose.msra.mxu0 0.0
    %1156 = vmatprep.subr.mxu0 0.0
    %1157 = vmatpush1.xpose.msra.mxu0 0.0
    %1158 = vmatprep.subr.mxu0 0.0
    %1159 = vmatpush1.xpose.msra.mxu0 0.0
    %1160 = vmatprep.subr.mxu0 0.0
    %1161 = vmatpush1.xpose.msra.mxu0 0.0
    %1162 = vmatprep.subr.mxu0 0.0
    %1163 = vmatpush1.xpose.msra.mxu0 0.0
    %1164 = vmatprep.subr.mxu0 0.0
    %1165 = vmatpush1.xpose.msra.mxu0 0.0
    %1166 = vmatprep.subr.mxu0 0.0
    %1167 = vmatpush1.xpose.msra.mxu0 0.0
    %1168 = vmatprep.subr.mxu0 0.0
    %1169 = vmatpush1.xpose.msra.mxu0 0.0
    %1170 = vmatprep.subr.mxu0 0.0
    %1171 = vmatpush1.xpose.msra.mxu0 0.0
    %1172 = vmatprep.subr.mxu0 0.0
    %1173 = vmatpush1.xpose.msra.mxu0 0.0
    %1174 = vmatprep.subr.mxu0 0.0
    %1175 = vmatpush1.xpose.msra.mxu0 0.0
    %1176 = vmatprep.subr.mxu0 0.0
    %1177 = vmatpush1.xpose.msra.mxu0 0.0
    %1178 = vmatprep.subr.mxu0 0.0
    %1179 = vmatpush1.xpose.msra.mxu0 0.0
    %1180 = vmatprep.subr.mxu0 0.0
    %1181 = vmatpush1.xpose.msra.mxu0 0.0
    %1182 = vmatprep.subr.mxu0 0.0
    %1183 = vmatpush1.xpose.msra.mxu0 0.0
    %1184 = vmatprep.subr.mxu0 0.0
    %1185 = vmatpush1.xpose.msra.mxu0 0.0
    %1186 = vmatprep.subr.mxu0 0.0
    %1187 = vmatpush1.xpose.msra.mxu0 0.0
    %1188 = vmatprep.subr.mxu0 0.0
    %1189 = vmatpush1.xpose.msra.mxu0 0.0
    %1190 = vmatprep.subr.mxu0 0.0
    %1191 = vmatpush1.xpose.msra.mxu0 0.0
    %1192 = vmatprep.mubr.f32.mxu0 0.0
    %1193 = vmatmul.mubr.f32.gmra.mrb[0].mxu0 %v1124
    %v1194 = vpop.f32.mrb[0].mxu0
    %v1195 = vadd.f32 %v292, %v1194
    %v1196 = vpop.f32.mrb[0].mxu0
    %1197 = vdwg.mxu0
    %1198 = vrot.lane.b32.xlu0 %v286, 112
    %v1199 = vpop.permute.xlu0 %1198
    %1200 = vrot.lane.b32.xlu0 %v286, 80
    %v1201 = vpop.permute.xlu0 %1200
    %v1202 = vsel %vm302, %v1199, 0
    %v1204 = vsel %vm302, %v1201, 0
    %1206 = vmatprep.subr.mxu0 0.0
    %1207 = vmatpush1.xpose.msra.mxu0 %v1204
    %1208 = vmatprep.subr.mxu0 0.0
    %1209 = vmatpush1.xpose.msra.mxu0 0.0
    %1210 = vmatprep.subr.mxu0 0.0
    %1211 = vmatpush1.xpose.msra.mxu0 0.0
    %1212 = vmatprep.subr.mxu0 0.0
    %1213 = vmatpush1.xpose.msra.mxu0 0.0
    %1214 = vmatprep.subr.mxu0 0.0
    %1215 = vmatpush1.xpose.msra.mxu0 0.0
    %1216 = vmatprep.subr.mxu0 0.0
    %1217 = vmatpush1.xpose.msra.mxu0 0.0
    %1218 = vmatprep.subr.mxu0 0.0
    %1219 = vmatpush1.xpose.msra.mxu0 0.0
    %1220 = vmatprep.subr.mxu0 0.0
    %1221 = vmatpush1.xpose.msra.mxu0 0.0
    %1222 = vmatprep.subr.mxu0 0.0
    %1223 = vmatpush1.xpose.msra.mxu0 0.0
    %1224 = vmatprep.subr.mxu0 0.0
    %1225 = vmatpush1.xpose.msra.mxu0 0.0
    %1226 = vmatprep.subr.mxu0 0.0
    %1227 = vmatpush1.xpose.msra.mxu0 0.0
    %1228 = vmatprep.subr.mxu0 0.0
    %1229 = vmatpush1.xpose.msra.mxu0 0.0
    %1230 = vmatprep.subr.mxu0 0.0
    %1231 = vmatpush1.xpose.msra.mxu0 0.0
    %1232 = vmatprep.subr.mxu0 0.0
    %1233 = vmatpush1.xpose.msra.mxu0 0.0
    %1234 = vmatprep.subr.mxu0 0.0
    %1235 = vmatpush1.xpose.msra.mxu0 0.0
    %1236 = vmatprep.subr.mxu0 0.0
    %1237 = vmatpush1.xpose.msra.mxu0 0.0
    %1238 = vmatprep.subr.mxu0 0.0
    %1239 = vmatpush1.xpose.msra.mxu0 0.0
    %1240 = vmatprep.subr.mxu0 0.0
    %1241 = vmatpush1.xpose.msra.mxu0 0.0
    %1242 = vmatprep.subr.mxu0 0.0
    %1243 = vmatpush1.xpose.msra.mxu0 0.0
    %1244 = vmatprep.subr.mxu0 0.0
    %1245 = vmatpush1.xpose.msra.mxu0 0.0
    %1246 = vmatprep.subr.mxu0 0.0
    %1247 = vmatpush1.xpose.msra.mxu0 0.0
    %1248 = vmatprep.subr.mxu0 0.0
    %1249 = vmatpush1.xpose.msra.mxu0 0.0
    %1250 = vmatprep.subr.mxu0 0.0
    %1251 = vmatpush1.xpose.msra.mxu0 0.0
    %1252 = vmatprep.subr.mxu0 0.0
    %1253 = vmatpush1.xpose.msra.mxu0 0.0
    %1254 = vmatprep.subr.mxu0 0.0
    %1255 = vmatpush1.xpose.msra.mxu0 0.0
    %1256 = vmatprep.subr.mxu0 0.0
    %1257 = vmatpush1.xpose.msra.mxu0 0.0
    %1258 = vmatprep.subr.mxu0 0.0
    %1259 = vmatpush1.xpose.msra.mxu0 0.0
    %1260 = vmatprep.subr.mxu0 0.0
    %1261 = vmatpush1.xpose.msra.mxu0 0.0
    %1262 = vmatprep.subr.mxu0 0.0
    %1263 = vmatpush1.xpose.msra.mxu0 0.0
    %1264 = vmatprep.subr.mxu0 0.0
    %1265 = vmatpush1.xpose.msra.mxu0 0.0
    %1266 = vmatprep.subr.mxu0 0.0
    %1267 = vmatpush1.xpose.msra.mxu0 0.0
    %1268 = vmatprep.subr.mxu0 0.0
    %1269 = vmatpush1.xpose.msra.mxu0 0.0
    %1270 = vmatprep.mubr.f32.mxu0 0.0
    %1271 = vmatmul.mubr.f32.gmra.mrb[0].mxu0 %v1202
    %v1272 = vpop.f32.mrb[0].mxu0
    %v1273 = vadd.f32 %v296, %v1272
    %v1274 = vpop.f32.mrb[0].mxu0
    %1275 = vdwg.mxu0
    %v1276 = vsel %vm302, %v1195, -inf
    %1277 = vmax.xlane.f32.xlu0 %v1276
    %v1278 = vpop.xlane.xlu0 %1277
    %v1279 = vsel %vm302, %v1273, -inf
    %1280 = vmax.xlane.f32.xlu0 %v1279
    %v1281 = vpop.xlane.xlu0 %1280
    %v1282 = vsub.f32 %v1195, %v1278
    %v1283 = vsub.f32 %v1273, %v1281
    %v1284 = vmul.f32 %v1282, 1.442695
    %v1285 = vpow.pop %v1284
    %v1286 = vmul.f32 %v1283, 1.442695
    %v1287 = vpow.pop %v1286
    %v1288 = vsel %vm302, %v1285, 0.0
    %1289 = vadd.xlane.f32.xlu0 %v1288
    %v1290 = vpop.xlane.xlu0 %1289
    %v1291 = vsel %vm302, %v1287, 0.0
    %1292 = vadd.xlane.f32.xlu0 %v1291
    %v1293 = vpop.xlane.xlu0 %1292
    %v1294 = vrcp.pop %v1290
    %v1295 = vrcp.pop %v1293
    %v1296 = vmul.f32 %v1285, %v1294
    %v1297 = vmul.f32 %v1287, %v1295
    %1298 = vrot.lane.b32.xlu0 %v281, 48
    %v1299 = vpop.permute.xlu0 %1298
    %v1302 = vsel %vm302, %v1296, 0
    %1304 = vmatprep.subr.mxu0 0.0
    %1305 = vmatpush1.msra.mxu0 %v1299
    %1306 = vmatprep.subr.mxu0 0.0
    %1307 = vmatpush1.msra.mxu0 0.0
    %1308 = vmatprep.subr.mxu0 0.0
    %1309 = vmatpush1.msra.mxu0 0.0
    %1310 = vmatprep.subr.mxu0 0.0
    %1311 = vmatpush1.msra.mxu0 0.0
    %1312 = vmatprep.subr.mxu0 0.0
    %1313 = vmatpush1.msra.mxu0 0.0
    %1314 = vmatprep.subr.mxu0 0.0
    %1315 = vmatpush1.msra.mxu0 0.0
    %1316 = vmatprep.subr.mxu0 0.0
    %1317 = vmatpush1.msra.mxu0 0.0
    %1318 = vmatprep.subr.mxu0 0.0
    %1319 = vmatpush1.msra.mxu0 0.0
    %1320 = vmatprep.subr.mxu0 0.0
    %1321 = vmatpush1.msra.mxu0 0.0
    %1322 = vmatprep.subr.mxu0 0.0
    %1323 = vmatpush1.msra.mxu0 0.0
    %1324 = vmatprep.subr.mxu0 0.0
    %1325 = vmatpush1.msra.mxu0 0.0
    %1326 = vmatprep.subr.mxu0 0.0
    %1327 = vmatpush1.msra.mxu0 0.0
    %1328 = vmatprep.subr.mxu0 0.0
    %1329 = vmatpush1.msra.mxu0 0.0
    %1330 = vmatprep.subr.mxu0 0.0
    %1331 = vmatpush1.msra.mxu0 0.0
    %1332 = vmatprep.subr.mxu0 0.0
    %1333 = vmatpush1.msra.mxu0 0.0
    %1334 = vmatprep.subr.mxu0 0.0
    %1335 = vmatpush1.msra.mxu0 0.0
    %1336 = vmatprep.subr.mxu0 0.0
    %1337 = vmatpush1.msra.mxu0 0.0
    %1338 = vmatprep.subr.mxu0 0.0
    %1339 = vmatpush1.msra.mxu0 0.0
    %1340 = vmatprep.subr.mxu0 0.0
    %1341 = vmatpush1.msra.mxu0 0.0
    %1342 = vmatprep.subr.mxu0 0.0
    %1343 = vmatpush1.msra.mxu0 0.0
    %1344 = vmatprep.subr.mxu0 0.0
    %1345 = vmatpush1.msra.mxu0 0.0
    %1346 = vmatprep.subr.mxu0 0.0
    %1347 = vmatpush1.msra.mxu0 0.0
    %1348 = vmatprep.subr.mxu0 0.0
    %1349 = vmatpush1.msra.mxu0 0.0
    %1350 = vmatprep.subr.mxu0 0.0
    %1351 = vmatpush1.msra.mxu0 0.0
    %1352 = vmatprep.subr.mxu0 0.0
    %1353 = vmatpush1.msra.mxu0 0.0
    %1354 = vmatprep.subr.mxu0 0.0
    %1355 = vmatpush1.msra.mxu0 0.0
    %1356 = vmatprep.subr.mxu0 0.0
    %1357 = vmatpush1.msra.mxu0 0.0
    %1358 = vmatprep.subr.mxu0 0.0
    %1359 = vmatpush1.msra.mxu0 0.0
    %1360 = vmatprep.subr.mxu0 0.0
    %1361 = vmatpush1.msra.mxu0 0.0
    %1362 = vmatprep.subr.mxu0 0.0
    %1363 = vmatpush1.msra.mxu0 0.0
    %1364 = vmatprep.subr.mxu0 0.0
    %1365 = vmatpush1.msra.mxu0 0.0
    %1366 = vmatprep.subr.mxu0 0.0
    %1367 = vmatpush1.msra.mxu0 0.0
    %1368 = vmatprep.mubr.f32.mxu0 0.0
    %1369 = vmatmul.mubr.f32.gmra.mrb[0].mxu0 %v1302
    %v1370 = vpop.f32.mrb[0].mxu0
    %v1371 = vadd.f32 0.0, %v1370
    %v1372 = vpop.f32.mrb[0].mxu0
    %1373 = vdwg.mxu0
    %1374 = vrot.lane.b32.xlu0 %v286, 48
    %v1375 = vpop.permute.xlu0 %1374
    %v1378 = vsel %vm302, %v1297, 0
    %1380 = vmatprep.subr.mxu0 0.0
    %1381 = vmatpush1.msra.mxu0 %v1375
    %1382 = vmatprep.subr.mxu0 0.0
    %1383 = vmatpush1.msra.mxu0 0.0
    %1384 = vmatprep.subr.mxu0 0.0
    %1385 = vmatpush1.msra.mxu0 0.0
    %1386 = vmatprep.subr.mxu0 0.0
    %1387 = vmatpush1.msra.mxu0 0.0
    %1388 = vmatprep.subr.mxu0 0.0
    %1389 = vmatpush1.msra.mxu0 0.0
    %1390 = vmatprep.subr.mxu0 0.0
    %1391 = vmatpush1.msra.mxu0 0.0
    %1392 = vmatprep.subr.mxu0 0.0
    %1393 = vmatpush1.msra.mxu0 0.0
    %1394 = vmatprep.subr.mxu0 0.0
    %1395 = vmatpush1.msra.mxu0 0.0
    %1396 = vmatprep.subr.mxu0 0.0
    %1397 = vmatpush1.msra.mxu0 0.0
    %1398 = vmatprep.subr.mxu0 0.0
    %1399 = vmatpush1.msra.mxu0 0.0
    %1400 = vmatprep.subr.mxu0 0.0
    %1401 = vmatpush1.msra.mxu0 0.0
    %1402 = vmatprep.subr.mxu0 0.0
    %1403 = vmatpush1.msra.mxu0 0.0
    %1404 = vmatprep.subr.mxu0 0.0
    %1405 = vmatpush1.msra.mxu0 0.0
    %1406 = vmatprep.subr.mxu0 0.0
    %1407 = vmatpush1.msra.mxu0 0.0
    %1408 = vmatprep.subr.mxu0 0.0
    %1409 = vmatpush1.msra.mxu0 0.0
    %1410 = vmatprep.subr.mxu0 0.0
    %1411 = vmatpush1.msra.mxu0 0.0
    %1412 = vmatprep.subr.mxu0 0.0
    %1413 = vmatpush1.msra.mxu0 0.0
    %1414 = vmatprep.subr.mxu0 0.0
    %1415 = vmatpush1.msra.mxu0 0.0
    %1416 = vmatprep.subr.mxu0 0.0
    %1417 = vmatpush1.msra.mxu0 0.0
    %1418 = vmatprep.subr.mxu0 0.0
    %1419 = vmatpush1.msra.mxu0 0.0
    %1420 = vmatprep.subr.mxu0 0.0
    %1421 = vmatpush1.msra.mxu0 0.0
    %1422 = vmatprep.subr.mxu0 0.0
    %1423 = vmatpush1.msra.mxu0 0.0
    %1424 = vmatprep.subr.mxu0 0.0
    %1425 = vmatpush1.msra.mxu0 0.0
    %1426 = vmatprep.subr.mxu0 0.0
    %1427 = vmatpush1.msra.mxu0 0.0
    %1428 = vmatprep.subr.mxu0 0.0
    %1429 = vmatpush1.msra.mxu0 0.0
    %1430 = vmatprep.subr.mxu0 0.0
    %1431 = vmatpush1.msra.mxu0 0.0
    %1432 = vmatprep.subr.mxu0 0.0
    %1433 = vmatpush1.msra.mxu0 0.0
    %1434 = vmatprep.subr.mxu0 0.0
    %1435 = vmatpush1.msra.mxu0 0.0
    %1436 = vmatprep.subr.mxu0 0.0
    %1437 = vmatpush1.msra.mxu0 0.0
    %1438 = vmatprep.subr.mxu0 0.0
    %1439 = vmatpush1.msra.mxu0 0.0
    %1440 = vmatprep.subr.mxu0 0.0
    %1441 = vmatpush1.msra.mxu0 0.0
    %1442 = vmatprep.subr.mxu0 0.0
    %1443 = vmatpush1.msra.mxu0 0.0
    %1444 = vmatprep.mubr.f32.mxu0 0.0
    %1445 = vmatmul.mubr.f32.gmra.mrb[0].mxu0 %v1378
    %v1446 = vpop.f32.mrb[0].mxu0
    %v1447 = vadd.f32 0.0, %v1446
    %v1448 = vpop.f32.mrb[0].mxu0
    %1449 = vdwg.mxu0
    %v1451 = vsel %vm302, %v1371, 0
    %v1454 = vsel %vm302, %v1447, 0
    %1456 = vmatprep.subr.mxu0 0.0
    %1457 = vmatpush1.msra.mxu0 %v158
    %1458 = vmatprep.subr.mxu0 0.0
    %1459 = vmatpush1.msra.mxu0 0.0
    %1460 = vmatprep.subr.mxu0 0.0
    %1461 = vmatpush1.msra.mxu0 0.0
    %1462 = vmatprep.subr.mxu0 0.0
    %1463 = vmatpush1.msra.mxu0 0.0
    %1464 = vmatprep.subr.mxu0 0.0
    %1465 = vmatpush1.msra.mxu0 0.0
    %1466 = vmatprep.subr.mxu0 0.0
    %1467 = vmatpush1.msra.mxu0 0.0
    %1468 = vmatprep.subr.mxu0 0.0
    %1469 = vmatpush1.msra.mxu0 0.0
    %1470 = vmatprep.subr.mxu0 0.0
    %1471 = vmatpush1.msra.mxu0 0.0
    %1472 = vmatprep.subr.mxu0 0.0
    %1473 = vmatpush1.msra.mxu0 0.0
    %1474 = vmatprep.subr.mxu0 0.0
    %1475 = vmatpush1.msra.mxu0 0.0
    %1476 = vmatprep.subr.mxu0 0.0
    %1477 = vmatpush1.msra.mxu0 0.0
    %1478 = vmatprep.subr.mxu0 0.0
    %1479 = vmatpush1.msra.mxu0 0.0
    %1480 = vmatprep.subr.mxu0 0.0
    %1481 = vmatpush1.msra.mxu0 0.0
    %1482 = vmatprep.subr.mxu0 0.0
    %1483 = vmatpush1.msra.mxu0 0.0
    %1484 = vmatprep.subr.mxu0 0.0
    %1485 = vmatpush1.msra.mxu0 0.0
    %1486 = vmatprep.subr.mxu0 0.0
    %1487 = vmatpush1.msra.mxu0 0.0
    %1488 = vmatprep.subr.mxu0 0.0
    %1489 = vmatpush1.msra.mxu0 0.0
    %1490 = vmatprep.subr.mxu0 0.0
    %1491 = vmatpush1.msra.mxu0 0.0
    %1492 = vmatprep.subr.mxu0 0.0
    %1493 = vmatpush1.msra.mxu0 0.0
    %1494 = vmatprep.subr.mxu0 0.0
    %1495 = vmatpush1.msra.mxu0 0.0
    %1496 = vmatprep.subr.mxu0 0.0
    %1497 = vmatpush1.msra.mxu0 0.0
    %1498 = vmatprep.subr.mxu0 0.0
    %1499 = vmatpush1.msra.mxu0 0.0
    %1500 = vmatprep.subr.mxu0 0.0
    %1501 = vmatpush1.msra.mxu0 0.0
    %1502 = vmatprep.subr.mxu0 0.0
    %1503 = vmatpush1.msra.mxu0 0.0
    %1504 = vmatprep.subr.mxu0 0.0
    %1505 = vmatpush1.msra.mxu0 0.0
    %1506 = vmatprep.subr.mxu0 0.0
    %1507 = vmatpush1.msra.mxu0 0.0
    %1508 = vmatprep.subr.mxu0 0.0
    %1509 = vmatpush1.msra.mxu0 0.0
    %1510 = vmatprep.subr.mxu0 0.0
    %1511 = vmatpush1.msra.mxu0 0.0
    %1512 = vmatprep.subr.mxu0 0.0
    %1513 = vmatpush1.msra.mxu0 0.0
    %1514 = vmatprep.subr.mxu0 0.0
    %1515 = vmatpush1.msra.mxu0 0.0
    %1516 = vmatprep.subr.mxu0 0.0
    %1517 = vmatpush1.msra.mxu0 0.0
    %1518 = vmatprep.subr.mxu0 0.0
    %1519 = vmatpush1.msra.mxu0 0.0
    %1520 = vmatprep.mubr.f32.mxu0 0.0
    %1521 = vmatmul.mubr.f32.gmra.mrb[0].mxu0 %v1451
    %v1522 = vpop.f32.mrb[0].mxu0
    %v1523 = vadd.f32 0.0, %v1522
    %v1524 = vpop.f32.mrb[0].mxu0
    %1525 = vmatprep.mubr.f32.mxu0 0.0
    %1526 = vmatmul.mubr.f32.gmra.mrb[0].mxu0 %v1454
    %v1527 = vpop.f32.mrb[0].mxu0
    %v1528 = vadd.f32 0.0, %v1527
    %v1529 = vpop.f32.mrb[0].mxu0
    %1530 = vdwg.mxu0
    %v1531 = vadd.f32 %v1112, %v1523
    %v1532 = vadd.f32 %v1117, %v1528
    %1533 = vrot.lane.b32.xlu0 %v281, 104
    %v1534 = vpop.permute.xlu0 %1533
    %1535 = vrot.lane.b32.xlu0 %v281, 72
    %v1536 = vpop.permute.xlu0 %1535
    %v1537 = vsel %vm302, %v1534, 0
    %v1539 = vsel %vm302, %v1536, 0
    %1541 = vmatprep.subr.mxu0 0.0
    %1542 = vmatpush1.xpose.msra.mxu0 %v1539
    %1543 = vmatprep.subr.mxu0 0.0
    %1544 = vmatpush1.xpose.msra.mxu0 0.0
    %1545 = vmatprep.subr.mxu0 0.0
    %1546 = vmatpush1.xpose.msra.mxu0 0.0
    %1547 = vmatprep.subr.mxu0 0.0
    %1548 = vmatpush1.xpose.msra.mxu0 0.0
    %1549 = vmatprep.subr.mxu0 0.0
    %1550 = vmatpush1.xpose.msra.mxu0 0.0
    %1551 = vmatprep.subr.mxu0 0.0
    %1552 = vmatpush1.xpose.msra.mxu0 0.0
    %1553 = vmatprep.subr.mxu0 0.0
    %1554 = vmatpush1.xpose.msra.mxu0 0.0
    %1555 = vmatprep.subr.mxu0 0.0
    %1556 = vmatpush1.xpose.msra.mxu0 0.0
    %1557 = vmatprep.subr.mxu0 0.0
    %1558 = vmatpush1.xpose.msra.mxu0 0.0
    %1559 = vmatprep.subr.mxu0 0.0
    %1560 = vmatpush1.xpose.msra.mxu0 0.0
    %1561 = vmatprep.subr.mxu0 0.0
    %1562 = vmatpush1.xpose.msra.mxu0 0.0
    %1563 = vmatprep.subr.mxu0 0.0
    %1564 = vmatpush1.xpose.msra.mxu0 0.0
    %1565 = vmatprep.subr.mxu0 0.0
    %1566 = vmatpush1.xpose.msra.mxu0 0.0
    %1567 = vmatprep.subr.mxu0 0.0
    %1568 = vmatpush1.xpose.msra.mxu0 0.0
    %1569 = vmatprep.subr.mxu0 0.0
    %1570 = vmatpush1.xpose.msra.mxu0 0.0
    %1571 = vmatprep.subr.mxu0 0.0
    %1572 = vmatpush1.xpose.msra.mxu0 0.0
    %1573 = vmatprep.subr.mxu0 0.0
    %1574 = vmatpush1.xpose.msra.mxu0 0.0
    %1575 = vmatprep.subr.mxu0 0.0
    %1576 = vmatpush1.xpose.msra.mxu0 0.0
    %1577 = vmatprep.subr.mxu0 0.0
    %1578 = vmatpush1.xpose.msra.mxu0 0.0
    %1579 = vmatprep.subr.mxu0 0.0
    %1580 = vmatpush1.xpose.msra.mxu0 0.0
    %1581 = vmatprep.subr.mxu0 0.0
    %1582 = vmatpush1.xpose.msra.mxu0 0.0
    %1583 = vmatprep.subr.mxu0 0.0
    %1584 = vmatpush1.xpose.msra.mxu0 0.0
    %1585 = vmatprep.subr.mxu0 0.0
    %1586 = vmatpush1.xpose.msra.mxu0 0.0
    %1587 = vmatprep.subr.mxu0 0.0
    %1588 = vmatpush1.xpose.msra.mxu0 0.0
    %1589 = vmatprep.subr.mxu0 0.0
    %1590 = vmatpush1.xpose.msra.mxu0 0.0
    %1591 = vmatprep.subr.mxu0 0.0
    %1592 = vmatpush1.xpose.msra.mxu0 0.0
    %1593 = vmatprep.subr.mxu0 0.0
    %1594 = vmatpush1.xpose.msra.mxu0 0.0
    %1595 = vmatprep.subr.mxu0 0.0
    %1596 = vmatpush1.xpose.msra.mxu0 0.0
    %1597 = vmatprep.subr.mxu0 0.0
    %1598 = vmatpush1.xpose.msra.mxu0 0.0
    %1599 = vmatprep.subr.mxu0 0.0
    %1600 = vmatpush1.xpose.msra.mxu0 0.0
    %1601 = vmatprep.subr.mxu0 0.0
    %1602 = vmatpush1.xpose.msra.mxu0 0.0
    %1603 = vmatprep.subr.mxu0 0.0
    %1604 = vmatpush1.xpose.msra.mxu0 0.0
    %1605 = vmatprep.mubr.f32.mxu0 0.0
    %1606 = vmatmul.mubr.f32.gmra.mrb[0].mxu0 %v1537
    %v1607 = vpop.f32.mrb[0].mxu0
    %v1608 = vadd.f32 %v292, %v1607
    %v1609 = vpop.f32.mrb[0].mxu0
    %1610 = vdwg.mxu0
    %1611 = vrot.lane.b32.xlu0 %v286, 104
    %v1612 = vpop.permute.xlu0 %1611
    %1613 = vrot.lane.b32.xlu0 %v286, 72
    %v1614 = vpop.permute.xlu0 %1613
    %v1615 = vsel %vm302, %v1612, 0
    %v1617 = vsel %vm302, %v1614, 0
    %1619 = vmatprep.subr.mxu0 0.0
    %1620 = vmatpush1.xpose.msra.mxu0 %v1617
    %1621 = vmatprep.subr.mxu0 0.0
    %1622 = vmatpush1.xpose.msra.mxu0 0.0
    %1623 = vmatprep.subr.mxu0 0.0
    %1624 = vmatpush1.xpose.msra.mxu0 0.0
    %1625 = vmatprep.subr.mxu0 0.0
    %1626 = vmatpush1.xpose.msra.mxu0 0.0
    %1627 = vmatprep.subr.mxu0 0.0
    %1628 = vmatpush1.xpose.msra.mxu0 0.0
    %1629 = vmatprep.subr.mxu0 0.0
    %1630 = vmatpush1.xpose.msra.mxu0 0.0
    %1631 = vmatprep.subr.mxu0 0.0
    %1632 = vmatpush1.xpose.msra.mxu0 0.0
    %1633 = vmatprep.subr.mxu0 0.0
    %1634 = vmatpush1.xpose.msra.mxu0 0.0
    %1635 = vmatprep.subr.mxu0 0.0
    %1636 = vmatpush1.xpose.msra.mxu0 0.0
    %1637 = vmatprep.subr.mxu0 0.0
    %1638 = vmatpush1.xpose.msra.mxu0 0.0
    %1639 = vmatprep.subr.mxu0 0.0
    %1640 = vmatpush1.xpose.msra.mxu0 0.0
    %1641 = vmatprep.subr.mxu0 0.0
    %1642 = vmatpush1.xpose.msra.mxu0 0.0
    %1643 = vmatprep.subr.mxu0 0.0
    %1644 = vmatpush1.xpose.msra.mxu0 0.0
    %1645 = vmatprep.subr.mxu0 0.0
    %1646 = vmatpush1.xpose.msra.mxu0 0.0
    %1647 = vmatprep.subr.mxu0 0.0
    %1648 = vmatpush1.xpose.msra.mxu0 0.0
    %1649 = vmatprep.subr.mxu0 0.0
    %1650 = vmatpush1.xpose.msra.mxu0 0.0
    %1651 = vmatprep.subr.mxu0 0.0
    %1652 = vmatpush1.xpose.msra.mxu0 0.0
    %1653 = vmatprep.subr.mxu0 0.0
    %1654 = vmatpush1.xpose.msra.mxu0 0.0
    %1655 = vmatprep.subr.mxu0 0.0
    %1656 = vmatpush1.xpose.msra.mxu0 0.0
    %1657 = vmatprep.subr.mxu0 0.0
    %1658 = vmatpush1.xpose.msra.mxu0 0.0
    %1659 = vmatprep.subr.mxu0 0.0
    %1660 = vmatpush1.xpose.msra.mxu0 0.0
    %1661 = vmatprep.subr.mxu0 0.0
    %1662 = vmatpush1.xpose.msra.mxu0 0.0
    %1663 = vmatprep.subr.mxu0 0.0
    %1664 = vmatpush1.xpose.msra.mxu0 0.0
    %1665 = vmatprep.subr.mxu0 0.0
    %1666 = vmatpush1.xpose.msra.mxu0 0.0
    %1667 = vmatprep.subr.mxu0 0.0
    %1668 = vmatpush1.xpose.msra.mxu0 0.0
    %1669 = vmatprep.subr.mxu0 0.0
    %1670 = vmatpush1.xpose.msra.mxu0 0.0
    %1671 = vmatprep.subr.mxu0 0.0
    %1672 = vmatpush1.xpose.msra.mxu0 0.0
    %1673 = vmatprep.subr.mxu0 0.0
    %1674 = vmatpush1.xpose.msra.mxu0 0.0
    %1675 = vmatprep.subr.mxu0 0.0
    %1676 = vmatpush1.xpose.msra.mxu0 0.0
    %1677 = vmatprep.subr.mxu0 0.0
    %1678 = vmatpush1.xpose.msra.mxu0 0.0
    %1679 = vmatprep.subr.mxu0 0.0
    %1680 = vmatpush1.xpose.msra.mxu0 0.0
    %1681 = vmatprep.subr.mxu0 0.0
    %1682 = vmatpush1.xpose.msra.mxu0 0.0
    %1683 = vmatprep.mubr.f32.mxu0 0.0
    %1684 = vmatmul.mubr.f32.gmra.mrb[0].mxu0 %v1615
    %v1685 = vpop.f32.mrb[0].mxu0
    %v1686 = vadd.f32 %v296, %v1685
    %v1687 = vpop.f32.mrb[0].mxu0
    %1688 = vdwg.mxu0
    %v1689 = vsel %vm302, %v1608, -inf
    %1690 = vmax.xlane.f32.xlu0 %v1689
    %v1691 = vpop.xlane.xlu0 %1690
    %v1692 = vsel %vm302, %v1686, -inf
    %1693 = vmax.xlane.f32.xlu0 %v1692
    %v1694 = vpop.xlane.xlu0 %1693
    %v1695 = vsub.f32 %v1608, %v1691
    %v1696 = vsub.f32 %v1686, %v1694
    %v1697 = vmul.f32 %v1695, 1.442695
    %v1698 = vpow.pop %v1697
    %v1699 = vmul.f32 %v1696, 1.442695
    %v1700 = vpow.pop %v1699
    %v1701 = vsel %vm302, %v1698, 0.0
    %1702 = vadd.xlane.f32.xlu0 %v1701
    %v1703 = vpop.xlane.xlu0 %1702
    %v1704 = vsel %vm302, %v1700, 0.0
    %1705 = vadd.xlane.f32.xlu0 %v1704
    %v1706 = vpop.xlane.xlu0 %1705
    %v1707 = vrcp.pop %v1703
    %v1708 = vrcp.pop %v1706
    %v1709 = vmul.f32 %v1698, %v1707
    %v1710 = vmul.f32 %v1700, %v1708
    %1711 = vrot.lane.b32.xlu0 %v281, 40
    %v1712 = vpop.permute.xlu0 %1711
    %v1715 = vsel %vm302, %v1709, 0
    %1717 = vmatprep.subr.mxu0 0.0
    %1718 = vmatpush1.msra.mxu0 %v1712
    %1719 = vmatprep.subr.mxu0 0.0
    %1720 = vmatpush1.msra.mxu0 0.0
    %1721 = vmatprep.subr.mxu0 0.0
    %1722 = vmatpush1.msra.mxu0 0.0
    %1723 = vmatprep.subr.mxu0 0.0
    %1724 = vmatpush1.msra.mxu0 0.0
    %1725 = vmatprep.subr.mxu0 0.0
    %1726 = vmatpush1.msra.mxu0 0.0
    %1727 = vmatprep.subr.mxu0 0.0
    %1728 = vmatpush1.msra.mxu0 0.0
    %1729 = vmatprep.subr.mxu0 0.0
    %1730 = vmatpush1.msra.mxu0 0.0
    %1731 = vmatprep.subr.mxu0 0.0
    %1732 = vmatpush1.msra.mxu0 0.0
    %1733 = vmatprep.subr.mxu0 0.0
    %1734 = vmatpush1.msra.mxu0 0.0
    %1735 = vmatprep.subr.mxu0 0.0
    %1736 = vmatpush1.msra.mxu0 0.0
    %1737 = vmatprep.subr.mxu0 0.0
    %1738 = vmatpush1.msra.mxu0 0.0
    %1739 = vmatprep.subr.mxu0 0.0
    %1740 = vmatpush1.msra.mxu0 0.0
    %1741 = vmatprep.subr.mxu0 0.0
    %1742 = vmatpush1.msra.mxu0 0.0
    %1743 = vmatprep.subr.mxu0 0.0
    %1744 = vmatpush1.msra.mxu0 0.0
    %1745 = vmatprep.subr.mxu0 0.0
    %1746 = vmatpush1.msra.mxu0 0.0
    %1747 = vmatprep.subr.mxu0 0.0
    %1748 = vmatpush1.msra.mxu0 0.0
    %1749 = vmatprep.subr.mxu0 0.0
    %1750 = vmatpush1.msra.mxu0 0.0
    %1751 = vmatprep.subr.mxu0 0.0
    %1752 = vmatpush1.msra.mxu0 0.0
    %1753 = vmatprep.subr.mxu0 0.0
    %1754 = vmatpush1.msra.mxu0 0.0
    %1755 = vmatprep.subr.mxu0 0.0
    %1756 = vmatpush1.msra.mxu0 0.0
    %1757 = vmatprep.subr.mxu0 0.0
    %1758 = vmatpush1.msra.mxu0 0.0
    %1759 = vmatprep.subr.mxu0 0.0
    %1760 = vmatpush1.msra.mxu0 0.0
    %1761 = vmatprep.subr.mxu0 0.0
    %1762 = vmatpush1.msra.mxu0 0.0
    %1763 = vmatprep.subr.mxu0 0.0
    %1764 = vmatpush1.msra.mxu0 0.0
    %1765 = vmatprep.subr.mxu0 0.0
    %1766 = vmatpush1.msra.mxu0 0.0
    %1767 = vmatprep.subr.mxu0 0.0
    %1768 = vmatpush1.msra.mxu0 0.0
    %1769 = vmatprep.subr.mxu0 0.0
    %1770 = vmatpush1.msra.mxu0 0.0
    %1771 = vmatprep.subr.mxu0 0.0
    %1772 = vmatpush1.msra.mxu0 0.0
    %1773 = vmatprep.subr.mxu0 0.0
    %1774 = vmatpush1.msra.mxu0 0.0
    %1775 = vmatprep.subr.mxu0 0.0
    %1776 = vmatpush1.msra.mxu0 0.0
    %1777 = vmatprep.subr.mxu0 0.0
    %1778 = vmatpush1.msra.mxu0 0.0
    %1779 = vmatprep.subr.mxu0 0.0
    %1780 = vmatpush1.msra.mxu0 0.0
    %1781 = vmatprep.mubr.f32.mxu0 0.0
    %1782 = vmatmul.mubr.f32.gmra.mrb[0].mxu0 %v1715
    %v1783 = vpop.f32.mrb[0].mxu0
    %v1784 = vadd.f32 0.0, %v1783
    %v1785 = vpop.f32.mrb[0].mxu0
    %1786 = vdwg.mxu0
    %1787 = vrot.lane.b32.xlu0 %v286, 40
    %v1788 = vpop.permute.xlu0 %1787
    %v1791 = vsel %vm302, %v1710, 0
    %1793 = vmatprep.subr.mxu0 0.0
    %1794 = vmatpush1.msra.mxu0 %v1788
    %1795 = vmatprep.subr.mxu0 0.0
    %1796 = vmatpush1.msra.mxu0 0.0
    %1797 = vmatprep.subr.mxu0 0.0
    %1798 = vmatpush1.msra.mxu0 0.0
    %1799 = vmatprep.subr.mxu0 0.0
    %1800 = vmatpush1.msra.mxu0 0.0
    %1801 = vmatprep.subr.mxu0 0.0
    %1802 = vmatpush1.msra.mxu0 0.0
    %1803 = vmatprep.subr.mxu0 0.0
    %1804 = vmatpush1.msra.mxu0 0.0
    %1805 = vmatprep.subr.mxu0 0.0
    %1806 = vmatpush1.msra.mxu0 0.0
    %1807 = vmatprep.subr.mxu0 0.0
    %1808 = vmatpush1.msra.mxu0 0.0
    %1809 = vmatprep.subr.mxu0 0.0
    %1810 = vmatpush1.msra.mxu0 0.0
    %1811 = vmatprep.subr.mxu0 0.0
    %1812 = vmatpush1.msra.mxu0 0.0
    %1813 = vmatprep.subr.mxu0 0.0
    %1814 = vmatpush1.msra.mxu0 0.0
    %1815 = vmatprep.subr.mxu0 0.0
    %1816 = vmatpush1.msra.mxu0 0.0
    %1817 = vmatprep.subr.mxu0 0.0
    %1818 = vmatpush1.msra.mxu0 0.0
    %1819 = vmatprep.subr.mxu0 0.0
    %1820 = vmatpush1.msra.mxu0 0.0
    %1821 = vmatprep.subr.mxu0 0.0
    %1822 = vmatpush1.msra.mxu0 0.0
    %1823 = vmatprep.subr.mxu0 0.0
    %1824 = vmatpush1.msra.mxu0 0.0
    %1825 = vmatprep.subr.mxu0 0.0
    %1826 = vmatpush1.msra.mxu0 0.0
    %1827 = vmatprep.subr.mxu0 0.0
    %1828 = vmatpush1.msra.mxu0 0.0
    %1829 = vmatprep.subr.mxu0 0.0
    %1830 = vmatpush1.msra.mxu0 0.0
    %1831 = vmatprep.subr.mxu0 0.0
    %1832 = vmatpush1.msra.mxu0 0.0
    %1833 = vmatprep.subr.mxu0 0.0
    %1834 = vmatpush1.msra.mxu0 0.0
    %1835 = vmatprep.subr.mxu0 0.0
    %1836 = vmatpush1.msra.mxu0 0.0
    %1837 = vmatprep.subr.mxu0 0.0
    %1838 = vmatpush1.msra.mxu0 0.0
    %1839 = vmatprep.subr.mxu0 0.0
    %1840 = vmatpush1.msra.mxu0 0.0
    %1841 = vmatprep.subr.mxu0 0.0
    %1842 = vmatpush1.msra.mxu0 0.0
    %1843 = vmatprep.subr.mxu0 0.0
    %1844 = vmatpush1.msra.mxu0 0.0
    %1845 = vmatprep.subr.mxu0 0.0
    %1846 = vmatpush1.msra.mxu0 0.0
    %1847 = vmatprep.subr.mxu0 0.0
    %1848 = vmatpush1.msra.mxu0 0.0
    %1849 = vmatprep.subr.mxu0 0.0
    %1850 = vmatpush1.msra.mxu0 0.0
    %1851 = vmatprep.subr.mxu0 0.0
    %1852 = vmatpush1.msra.mxu0 0.0
    %1853 = vmatprep.subr.mxu0 0.0
    %1854 = vmatpush1.msra.mxu0 0.0
    %1855 = vmatprep.subr.mxu0 0.0
    %1856 = vmatpush1.msra.mxu0 0.0
    %1857 = vmatprep.mubr.f32.mxu0 0.0
    %1858 = vmatmul.mubr.f32.gmra.mrb[0].mxu0 %v1791
    %v1859 = vpop.f32.mrb[0].mxu0
    %v1860 = vadd.f32 0.0, %v1859
    %v1861 = vpop.f32.mrb[0].mxu0
    %1862 = vdwg.mxu0
    %v1864 = vsel %vm302, %v1784, 0
    %v1867 = vsel %vm302, %v1860, 0
    %1869 = vmatprep.subr.mxu0 0.0
    %1870 = vmatpush1.msra.mxu0 %v159
    %1871 = vmatprep.subr.mxu0 0.0
    %1872 = vmatpush1.msra.mxu0 0.0
    %1873 = vmatprep.subr.mxu0 0.0
    %1874 = vmatpush1.msra.mxu0 0.0
    %1875 = vmatprep.subr.mxu0 0.0
    %1876 = vmatpush1.msra.mxu0 0.0
    %1877 = vmatprep.subr.mxu0 0.0
    %1878 = vmatpush1.msra.mxu0 0.0
    %1879 = vmatprep.subr.mxu0 0.0
    %1880 = vmatpush1.msra.mxu0 0.0
    %1881 = vmatprep.subr.mxu0 0.0
    %1882 = vmatpush1.msra.mxu0 0.0
    %1883 = vmatprep.subr.mxu0 0.0
    %1884 = vmatpush1.msra.mxu0 0.0
    %1885 = vmatprep.subr.mxu0 0.0
    %1886 = vmatpush1.msra.mxu0 0.0
    %1887 = vmatprep.subr.mxu0 0.0
    %1888 = vmatpush1.msra.mxu0 0.0
    %1889 = vmatprep.subr.mxu0 0.0
    %1890 = vmatpush1.msra.mxu0 0.0
    %1891 = vmatprep.subr.mxu0 0.0
    %1892 = vmatpush1.msra.mxu0 0.0
    %1893 = vmatprep.subr.mxu0 0.0
    %1894 = vmatpush1.msra.mxu0 0.0
    %1895 = vmatprep.subr.mxu0 0.0
    %1896 = vmatpush1.msra.mxu0 0.0
    %1897 = vmatprep.subr.mxu0 0.0
    %1898 = vmatpush1.msra.mxu0 0.0
    %1899 = vmatprep.subr.mxu0 0.0
    %1900 = vmatpush1.msra.mxu0 0.0
    %1901 = vmatprep.subr.mxu0 0.0
    %1902 = vmatpush1.msra.mxu0 0.0
    %1903 = vmatprep.subr.mxu0 0.0
    %1904 = vmatpush1.msra.mxu0 0.0
    %1905 = vmatprep.subr.mxu0 0.0
    %1906 = vmatpush1.msra.mxu0 0.0
    %1907 = vmatprep.subr.mxu0 0.0
    %1908 = vmatpush1.msra.mxu0 0.0
    %1909 = vmatprep.subr.mxu0 0.0
    %1910 = vmatpush1.msra.mxu0 0.0
    %1911 = vmatprep.subr.mxu0 0.0
    %1912 = vmatpush1.msra.mxu0 0.0
    %1913 = vmatprep.subr.mxu0 0.0
    %1914 = vmatpush1.msra.mxu0 0.0
    %1915 = vmatprep.subr.mxu0 0.0
    %1916 = vmatpush1.msra.mxu0 0.0
    %1917 = vmatprep.subr.mxu0 0.0
    %1918 = vmatpush1.msra.mxu0 0.0
    %1919 = vmatprep.subr.mxu0 0.0
    %1920 = vmatpush1.msra.mxu0 0.0
    %1921 = vmatprep.subr.mxu0 0.0
    %1922 = vmatpush1.msra.mxu0 0.0
    %1923 = vmatprep.subr.mxu0 0.0
    %1924 = vmatpush1.msra.mxu0 0.0
    %1925 = vmatprep.subr.mxu0 0.0
    %1926 = vmatpush1.msra.mxu0 0.0
    %1927 = vmatprep.subr.mxu0 0.0
    %1928 = vmatpush1.msra.mxu0 0.0
    %1929 = vmatprep.subr.mxu0 0.0
    %1930 = vmatpush1.msra.mxu0 0.0
    %1931 = vmatprep.subr.mxu0 0.0
    %1932 = vmatpush1.msra.mxu0 0.0
    %1933 = vmatprep.mubr.f32.mxu0 0.0
    %1934 = vmatmul.mubr.f32.gmra.mrb[0].mxu0 %v1864
    %v1935 = vpop.f32.mrb[0].mxu0
    %v1936 = vadd.f32 0.0, %v1935
    %v1937 = vpop.f32.mrb[0].mxu0
    %1938 = vmatprep.mubr.f32.mxu0 0.0
    %1939 = vmatmul.mubr.f32.gmra.mrb[0].mxu0 %v1867
    %v1940 = vpop.f32.mrb[0].mxu0
    %v1941 = vadd.f32 0.0, %v1940
    %v1942 = vpop.f32.mrb[0].mxu0
    %1943 = vdwg.mxu0
    %v1944 = vadd.f32 %v1531, %v1936
    %v1945 = vadd.f32 %v1532, %v1941
    %v1946 = vadd.f32 %v127, %v1944
    %v1947 = vadd.f32 %v128, %v1945
    %v1948 = vlaneseq
    %v1949 = vshrl.u32 %v1948, 7
    %v1950 = vsub.s32 5, %v1949
    %v1951 = vrot.slane %v155, %v1950
    %v1952 = vadd.f32 %v1946, %v1951
    %v1953 = vadd.f32 %v1947, %v1951
    %v1954 = vsel %vm160, %v1952, 0.0
    %1955 = vadd.xlane.f32.xlu0 %v1954
    %v1956 = vpop.xlane.xlu0 %1955
    %v1957 = vsel %vm160, %v1953, 0.0
    %1958 = vadd.xlane.f32.xlu0 %v1957
    %v1959 = vpop.xlane.xlu0 %1958
    %v1960 = vmul.f32 %v1956, %v167
    %v1961 = vmul.f32 %v1959, %v167
    %v1962 = vsub.f32 %v1952, %v1960
    %v1963 = vsub.f32 %v1953, %v1961
    %v1964 = vmul.f32 %v1962, %v1962
    %v1965 = vmul.f32 %v1963, %v1963
    %v1966 = vsel %vm160, %v1964, 0.0
    %1967 = vadd.xlane.f32.xlu0 %v1966
    %v1968 = vpop.xlane.xlu0 %1967
    %v1969 = vsel %vm160, %v1965, 0.0
    %1970 = vadd.xlane.f32.xlu0 %v1969
    %v1971 = vpop.xlane.xlu0 %1970
    %v1972 = vmul.f32 %v1968, %v167
    %v1973 = vmul.f32 %v1971, %v167
    %v1974 = vadd.f32 %v1972, 1e-05
    %v1975 = vadd.f32 %v1973, 1e-05
    %v1976 = vrsqrt.pop %v1974
    %v1977 = vrsqrt.pop %v1975
    %v1978 = vmul.f32 %v1962, %v1976
    %v1979 = vmul.f32 %v1963, %v1977
    %v1980 = vlaneseq
    %v1981 = vshrl.u32 %v1980, 7
    %v1982 = vsub.s32 2, %v1981
    %v1983 = vrot.slane %v155, %v1982
    %v1984 = vmul.f32 %v1978, %v1983
    %v1985 = vmul.f32 %v1979, %v1983
    %v1986 = vlaneseq
    %v1987 = vshrl.u32 %v1986, 7
    %v1988 = vsub.s32 3, %v1987
    %v1989 = vrot.slane %v155, %v1988
    %v1990 = vadd.f32 %v1984, %v1989
    %v1991 = vadd.f32 %v1985, %v1989
    %v1992 = vld [vmem:[%s7] sm:$0xff]
    %v1993 = vld [vmem:[%s7 + $0x8] sm:$0xff]
    %v1994 = vld [vmem:[%s7 + $0x10] sm:$0xff]
    %v1995 = vld [vmem:[%s7 + $0x18] sm:$0xff]
    %v1996 = vlaneseq
    %v1997 = vshrl.u32 %v1996, 7
    %v1998 = vsub.s32 6, %v1997
    %v1999 = vrot.slane %v155, %v1998
    %v2001 = vsel %vm160, %v1990, 0
    %v2004 = vsel %vm160, %v1991, 0
    %2006 = vmatprep.subr.mxu0 0.0
    %2007 = vmatpush1.msra.mxu0 %v1992
    %2008 = vmatprep.subr.mxu0 0.0
    %2009 = vmatpush1.msra.mxu0 %v1993
    %2010 = vmatprep.subr.mxu0 0.0
    %2011 = vmatpush1.msra.mxu0 %v1994
    %2012 = vmatprep.subr.mxu0 0.0
    %2013 = vmatpush1.msra.mxu0 %v1995
    %2014 = vmatprep.subr.mxu0 0.0
    %2015 = vmatpush1.msra.mxu0 0.0
    %2016 = vmatprep.subr.mxu0 0.0
    %2017 = vmatpush1.msra.mxu0 0.0
    %2018 = vmatprep.subr.mxu0 0.0
    %2019 = vmatpush1.msra.mxu0 0.0
    %2020 = vmatprep.subr.mxu0 0.0
    %2021 = vmatpush1.msra.mxu0 0.0
    %2022 = vmatprep.subr.mxu0 0.0
    %2023 = vmatpush1.msra.mxu0 0.0
    %2024 = vmatprep.subr.mxu0 0.0
    %2025 = vmatpush1.msra.mxu0 0.0
    %2026 = vmatprep.subr.mxu0 0.0
    %2027 = vmatpush1.msra.mxu0 0.0
    %2028 = vmatprep.subr.mxu0 0.0
    %2029 = vmatpush1.msra.mxu0 0.0
    %2030 = vmatprep.subr.mxu0 0.0
    %2031 = vmatpush1.msra.mxu0 0.0
    %2032 = vmatprep.subr.mxu0 0.0
    %2033 = vmatpush1.msra.mxu0 0.0
    %2034 = vmatprep.subr.mxu0 0.0
    %2035 = vmatpush1.msra.mxu0 0.0
    %2036 = vmatprep.subr.mxu0 0.0
    %2037 = vmatpush1.msra.mxu0 0.0
    %2038 = vmatprep.subr.mxu0 0.0
    %2039 = vmatpush1.msra.mxu0 0.0
    %2040 = vmatprep.subr.mxu0 0.0
    %2041 = vmatpush1.msra.mxu0 0.0
    %2042 = vmatprep.subr.mxu0 0.0
    %2043 = vmatpush1.msra.mxu0 0.0
    %2044 = vmatprep.subr.mxu0 0.0
    %2045 = vmatpush1.msra.mxu0 0.0
    %2046 = vmatprep.subr.mxu0 0.0
    %2047 = vmatpush1.msra.mxu0 0.0
    %2048 = vmatprep.subr.mxu0 0.0
    %2049 = vmatpush1.msra.mxu0 0.0
    %2050 = vmatprep.subr.mxu0 0.0
    %2051 = vmatpush1.msra.mxu0 0.0
    %2052 = vmatprep.subr.mxu0 0.0
    %2053 = vmatpush1.msra.mxu0 0.0
    %2054 = vmatprep.subr.mxu0 0.0
    %2055 = vmatpush1.msra.mxu0 0.0
    %2056 = vmatprep.subr.mxu0 0.0
    %2057 = vmatpush1.msra.mxu0 0.0
    %2058 = vmatprep.subr.mxu0 0.0
    %2059 = vmatpush1.msra.mxu0 0.0
    %2060 = vmatprep.subr.mxu0 0.0
    %2061 = vmatpush1.msra.mxu0 0.0
    %2062 = vmatprep.subr.mxu0 0.0
    %2063 = vmatpush1.msra.mxu0 0.0
    %2064 = vmatprep.subr.mxu0 0.0
    %2065 = vmatpush1.msra.mxu0 0.0
    %2066 = vmatprep.subr.mxu0 0.0
    %2067 = vmatpush1.msra.mxu0 0.0
    %2068 = vmatprep.subr.mxu0 0.0
    %2069 = vmatpush1.msra.mxu0 0.0
    %2070 = vmatprep.mubr.f32.mxu0 0.0
    %2071 = vmatmul.mubr.f32.gmra.mrb[0].mxu0 %v2001
    %v2072 = vpop.f32.mrb[0].mxu0
    %v2073 = vadd.f32 %v1999, %v2072
    %v2074 = vpop.f32.mrb[0].mxu0
    %2075 = vmatprep.mubr.f32.mxu0 0.0
    %2076 = vmatmul.mubr.f32.gmra.mrb[0].mxu0 %v2004
    %v2077 = vpop.f32.mrb[0].mxu0
    %v2078 = vadd.f32 %v1999, %v2077
    %v2079 = vpop.f32.mrb[0].mxu0
    %2080 = vdwg.mxu0
    %v2081 = vmax.f32 %v2073, 0.0
    %v2082 = vmax.f32 %v2078, 0.0
    %v2083 = vld [vmem:[%s8] sm:$0xff]
    %v2084 = vld [vmem:[%s8 + $0x8] sm:$0xff]
    %v2085 = vld [vmem:[%s8 + $0x10] sm:$0xff]
    %v2086 = vld [vmem:[%s8 + $0x18] sm:$0xff]
    %v2087 = vld [vmem:[%s8 + $0x20] sm:$0xff]
    %v2088 = vld [vmem:[%s8 + $0x28] sm:$0xff]
    %v2089 = vld [vmem:[%s8 + $0x30] sm:$0xff]
    %v2090 = vld [vmem:[%s8 + $0x38] sm:$0xff]
    %v2091 = vld [vmem:[%s8 + $0x40] sm:$0xff]
    %v2092 = vld [vmem:[%s8 + $0x48] sm:$0xff]
    %v2093 = vld [vmem:[%s8 + $0x50] sm:$0xff]
    %v2094 = vld [vmem:[%s8 + $0x58] sm:$0xff]
    %v2095 = vld [vmem:[%s8 + $0x60] sm:$0xff]
    %v2096 = vld [vmem:[%s8 + $0x68] sm:$0xff]
    %v2097 = vld [vmem:[%s8 + $0x70] sm:$0xff]
    %v2098 = vld [vmem:[%s8 + $0x78] sm:$0xff]
    %2099 = vmatprep.subr.mxu0 0.0
    %2100 = vmatpush1.msra.mxu0 %v2083
    %2101 = vmatprep.subr.mxu0 0.0
    %2102 = vmatpush1.msra.mxu0 %v2084
    %2103 = vmatprep.subr.mxu0 0.0
    %2104 = vmatpush1.msra.mxu0 %v2085
    %2105 = vmatprep.subr.mxu0 0.0
    %2106 = vmatpush1.msra.mxu0 %v2086
    %2107 = vmatprep.subr.mxu0 0.0
    %2108 = vmatpush1.msra.mxu0 %v2087
    %2109 = vmatprep.subr.mxu0 0.0
    %2110 = vmatpush1.msra.mxu0 %v2088
    %2111 = vmatprep.subr.mxu0 0.0
    %2112 = vmatpush1.msra.mxu0 %v2089
    %2113 = vmatprep.subr.mxu0 0.0
    %2114 = vmatpush1.msra.mxu0 %v2090
    %2115 = vmatprep.subr.mxu0 0.0
    %2116 = vmatpush1.msra.mxu0 %v2091
    %2117 = vmatprep.subr.mxu0 0.0
    %2118 = vmatpush1.msra.mxu0 %v2092
    %2119 = vmatprep.subr.mxu0 0.0
    %2120 = vmatpush1.msra.mxu0 %v2093
    %2121 = vmatprep.subr.mxu0 0.0
    %2122 = vmatpush1.msra.mxu0 %v2094
    %2123 = vmatprep.subr.mxu0 0.0
    %2124 = vmatpush1.msra.mxu0 %v2095
    %2125 = vmatprep.subr.mxu0 0.0
    %2126 = vmatpush1.msra.mxu0 %v2096
    %2127 = vmatprep.subr.mxu0 0.0
    %2128 = vmatpush1.msra.mxu0 %v2097
    %2129 = vmatprep.subr.mxu0 0.0
    %2130 = vmatpush1.msra.mxu0 %v2098
    %2131 = vmatprep.subr.mxu0 0.0
    %2132 = vmatpush1.msra.mxu0 0.0
    %2133 = vmatprep.subr.mxu0 0.0
    %2134 = vmatpush1.msra.mxu0 0.0
    %2135 = vmatprep.subr.mxu0 0.0
    %2136 = vmatpush1.msra.mxu0 0.0
    %2137 = vmatprep.subr.mxu0 0.0
    %2138 = vmatpush1.msra.mxu0 0.0
    %2139 = vmatprep.subr.mxu0 0.0
    %2140 = vmatpush1.msra.mxu0 0.0
    %2141 = vmatprep.subr.mxu0 0.0
    %2142 = vmatpush1.msra.mxu0 0.0
    %2143 = vmatprep.subr.mxu0 0.0
    %2144 = vmatpush1.msra.mxu0 0.0
    %2145 = vmatprep.subr.mxu0 0.0
    %2146 = vmatpush1.msra.mxu0 0.0
    %2147 = vmatprep.subr.mxu0 0.0
    %2148 = vmatpush1.msra.mxu0 0.0
    %2149 = vmatprep.subr.mxu0 0.0
    %2150 = vmatpush1.msra.mxu0 0.0
    %2151 = vmatprep.subr.mxu0 0.0
    %2152 = vmatpush1.msra.mxu0 0.0
    %2153 = vmatprep.subr.mxu0 0.0
    %2154 = vmatpush1.msra.mxu0 0.0
    %2155 = vmatprep.subr.mxu0 0.0
    %2156 = vmatpush1.msra.mxu0 0.0
    %2157 = vmatprep.subr.mxu0 0.0
    %2158 = vmatpush1.msra.mxu0 0.0
    %2159 = vmatprep.subr.mxu0 0.0
    %2160 = vmatpush1.msra.mxu0 0.0
    %2161 = vmatprep.subr.mxu0 0.0
    %2162 = vmatpush1.msra.mxu0 0.0
    %2163 = vmatprep.mubr.f32.mxu0 0.0
    %2164 = vmatmul.mubr.f32.gmra.mrb[0].mxu0 %v2081
    %v2165 = vpop.f32.mrb[0].mxu0
    %v2166 = vadd.f32 0.0, %v2165
    %v2167 = vpop.f32.mrb[0].mxu0
    %2168 = vmatprep.mubr.f32.mxu0 0.0
    %2169 = vmatmul.mubr.f32.gmra.mrb[0].mxu0 %v2082
    %v2170 = vpop.f32.mrb[0].mxu0
    %v2171 = vadd.f32 0.0, %v2170
    %v2172 = vpop.f32.mrb[0].mxu0
    %2173 = vdwg.mxu0
    %v2174 = vadd.f32 %v1952, %v2166
    %v2175 = vadd.f32 %v1953, %v2171
    %v2176 = vlaneseq
    %v2177 = vshrl.u32 %v2176, 7
    %v2178 = vsub.s32 7, %v2177
    %v2179 = vrot.slane %v155, %v2178
    %v2180 = vadd.f32 %v2174, %v2179
    %v2181 = vadd.f32 %v2175, %v2179
    %s2182 = scalar_lea.vmem %s9, 8
    %v2183 = vld [vmem:[%s2182] sm:$0xff]
    %s2184 = scalar_lea.vmem %s6, 32
    %v2185 = vld [vmem:[%s2184] sm:$0xff]
    %v2186 = vld [vmem:[%s2184 + $0x8] sm:$0xff]
    %v2187 = vld [vmem:[%s2184 + $0x10] sm:$0xff]
    %v2188 = vld [vmem:[%s2184 + $0x18] sm:$0xff]
    %v2189 = vsel %vm160, %v2180, 0.0
    %2190 = vadd.xlane.f32.xlu0 %v2189
    %v2191 = vpop.xlane.xlu0 %2190
    %v2192 = vsel %vm160, %v2181, 0.0
    %2193 = vadd.xlane.f32.xlu0 %v2192
    %v2194 = vpop.xlane.xlu0 %2193
    %v2195 = vmul.f32 %v2191, %v167
    %v2196 = vmul.f32 %v2194, %v167
    %v2197 = vsub.f32 %v2180, %v2195
    %v2198 = vsub.f32 %v2181, %v2196
    %v2199 = vmul.f32 %v2197, %v2197
    %v2200 = vmul.f32 %v2198, %v2198
    %v2201 = vsel %vm160, %v2199, 0.0
    %2202 = vadd.xlane.f32.xlu0 %v2201
    %v2203 = vpop.xlane.xlu0 %2202
    %v2204 = vsel %vm160, %v2200, 0.0
    %2205 = vadd.xlane.f32.xlu0 %v2204
    %v2206 = vpop.xlane.xlu0 %2205
    %v2207 = vmul.f32 %v2203, %v167
    %v2208 = vmul.f32 %v2206, %v167
    %v2209 = vadd.f32 %v2207, 1e-05
    %v2210 = vadd.f32 %v2208, 1e-05
    %v2211 = vrsqrt.pop %v2209
    %v2212 = vrsqrt.pop %v2210
    %v2213 = vmul.f32 %v2197, %v2211
    %v2214 = vmul.f32 %v2198, %v2212
    %v2215 = vlaneseq
    %v2216 = vshrl.u32 %v2215, 7
    %v2217 = vsub.s32 0, %v2216
    %v2218 = vrot.slane %v2183, %v2217
    %v2219 = vmul.f32 %v2213, %v2218
    %v2220 = vmul.f32 %v2214, %v2218
    %v2221 = vlaneseq
    %v2222 = vshrl.u32 %v2221, 7
    %v2223 = vsub.s32 1, %v2222
    %v2224 = vrot.slane %v2183, %v2223
    %v2225 = vadd.f32 %v2219, %v2224
    %v2226 = vadd.f32 %v2220, %v2224
    %s2227 = scalar_lea.vmem %s5, 32
    %v2228 = vld [vmem:[%s2227] sm:$0xff]
    %v2229 = vld [vmem:[%s2227 + $0x8] sm:$0xff]
    %v2230 = vld [vmem:[%s2227 + $0x10] sm:$0xff]
    %v2231 = vld [vmem:[%s2227 + $0x18] sm:$0xff]
    %v2232 = vlaneseq
    %v2233 = vshrl.u32 %v2232, 7
    %v2234 = vsub.s32 4, %v2233
    %v2235 = vrot.slane %v2183, %v2234
    %v2237 = vsel %vm160, %v2225, 0
    %v2240 = vsel %vm160, %v2226, 0
    %2242 = vmatprep.subr.mxu0 0.0
    %2243 = vmatpush1.msra.mxu0 %v2228
    %2244 = vmatprep.subr.mxu0 0.0
    %2245 = vmatpush1.msra.mxu0 %v2229
    %2246 = vmatprep.subr.mxu0 0.0
    %2247 = vmatpush1.msra.mxu0 %v2230
    %2248 = vmatprep.subr.mxu0 0.0
    %2249 = vmatpush1.msra.mxu0 %v2231
    %2250 = vmatprep.subr.mxu0 0.0
    %2251 = vmatpush1.msra.mxu0 0.0
    %2252 = vmatprep.subr.mxu0 0.0
    %2253 = vmatpush1.msra.mxu0 0.0
    %2254 = vmatprep.subr.mxu0 0.0
    %2255 = vmatpush1.msra.mxu0 0.0
    %2256 = vmatprep.subr.mxu0 0.0
    %2257 = vmatpush1.msra.mxu0 0.0
    %2258 = vmatprep.subr.mxu0 0.0
    %2259 = vmatpush1.msra.mxu0 0.0
    %2260 = vmatprep.subr.mxu0 0.0
    %2261 = vmatpush1.msra.mxu0 0.0
    %2262 = vmatprep.subr.mxu0 0.0
    %2263 = vmatpush1.msra.mxu0 0.0
    %2264 = vmatprep.subr.mxu0 0.0
    %2265 = vmatpush1.msra.mxu0 0.0
    %2266 = vmatprep.subr.mxu0 0.0
    %2267 = vmatpush1.msra.mxu0 0.0
    %2268 = vmatprep.subr.mxu0 0.0
    %2269 = vmatpush1.msra.mxu0 0.0
    %2270 = vmatprep.subr.mxu0 0.0
    %2271 = vmatpush1.msra.mxu0 0.0
    %2272 = vmatprep.subr.mxu0 0.0
    %2273 = vmatpush1.msra.mxu0 0.0
    %2274 = vmatprep.subr.mxu0 0.0
    %2275 = vmatpush1.msra.mxu0 0.0
    %2276 = vmatprep.subr.mxu0 0.0
    %2277 = vmatpush1.msra.mxu0 0.0
    %2278 = vmatprep.subr.mxu0 0.0
    %2279 = vmatpush1.msra.mxu0 0.0
    %2280 = vmatprep.subr.mxu0 0.0
    %2281 = vmatpush1.msra.mxu0 0.0
    %2282 = vmatprep.subr.mxu0 0.0
    %2283 = vmatpush1.msra.mxu0 0.0
    %2284 = vmatprep.subr.mxu0 0.0
    %2285 = vmatpush1.msra.mxu0 0.0
    %2286 = vmatprep.subr.mxu0 0.0
    %2287 = vmatpush1.msra.mxu0 0.0
    %2288 = vmatprep.subr.mxu0 0.0
    %2289 = vmatpush1.msra.mxu0 0.0
    %2290 = vmatprep.subr.mxu0 0.0
    %2291 = vmatpush1.msra.mxu0 0.0
    %2292 = vmatprep.subr.mxu0 0.0
    %2293 = vmatpush1.msra.mxu0 0.0
    %2294 = vmatprep.subr.mxu0 0.0
    %2295 = vmatpush1.msra.mxu0 0.0
    %2296 = vmatprep.subr.mxu0 0.0
    %2297 = vmatpush1.msra.mxu0 0.0
    %2298 = vmatprep.subr.mxu0 0.0
    %2299 = vmatpush1.msra.mxu0 0.0
    %2300 = vmatprep.subr.mxu0 0.0
    %2301 = vmatpush1.msra.mxu0 0.0
    %2302 = vmatprep.subr.mxu0 0.0
    %2303 = vmatpush1.msra.mxu0 0.0
    %2304 = vmatprep.subr.mxu0 0.0
    %2305 = vmatpush1.msra.mxu0 0.0
    %2306 = vmatprep.mubr.f32.mxu0 0.0
    %2307 = vmatmul.mubr.f32.gmra.mrb[0].mxu0 %v2237
    %v2308 = vpop.f32.mrb[0].mxu0
    %v2309 = vadd.f32 %v2235, %v2308
    %v2310 = vpop.f32.mrb[0].mxu0
    %2311 = vmatprep.mubr.f32.mxu0 0.0
    %2312 = vmatmul.mubr.f32.gmra.mrb[0].mxu0 %v2240
    %v2313 = vpop.f32.mrb[0].mxu0
    %v2314 = vadd.f32 %v2235, %v2313
    %v2315 = vpop.f32.mrb[0].mxu0
    %2316 = vdwg.mxu0
    %2318 = vrot.lane.b32.xlu0 %v2309, 96
    %v2319 = vpop.permute.xlu0 %2318
    %v2320 = vsel %vm302, %v2309, 0
    %v2322 = vsel %vm302, %v2319, 0
    %2324 = vmatprep.subr.mxu0 0.0
    %2325 = vmatpush1.xpose.msra.mxu0 %v2322
    %2326 = vmatprep.subr.mxu0 0.0
    %2327 = vmatpush1.xpose.msra.mxu0 0.0
    %2328 = vmatprep.subr.mxu0 0.0
    %2329 = vmatpush1.xpose.msra.mxu0 0.0
    %2330 = vmatprep.subr.mxu0 0.0
    %2331 = vmatpush1.xpose.msra.mxu0 0.0
    %2332 = vmatprep.subr.mxu0 0.0
    %2333 = vmatpush1.xpose.msra.mxu0 0.0
    %2334 = vmatprep.subr.mxu0 0.0
    %2335 = vmatpush1.xpose.msra.mxu0 0.0
    %2336 = vmatprep.subr.mxu0 0.0
    %2337 = vmatpush1.xpose.msra.mxu0 0.0
    %2338 = vmatprep.subr.mxu0 0.0
    %2339 = vmatpush1.xpose.msra.mxu0 0.0
    %2340 = vmatprep.subr.mxu0 0.0
    %2341 = vmatpush1.xpose.msra.mxu0 0.0
    %2342 = vmatprep.subr.mxu0 0.0
    %2343 = vmatpush1.xpose.msra.mxu0 0.0
    %2344 = vmatprep.subr.mxu0 0.0
    %2345 = vmatpush1.xpose.msra.mxu0 0.0
    %2346 = vmatprep.subr.mxu0 0.0
    %2347 = vmatpush1.xpose.msra.mxu0 0.0
    %2348 = vmatprep.subr.mxu0 0.0
    %2349 = vmatpush1.xpose.msra.mxu0 0.0
    %2350 = vmatprep.subr.mxu0 0.0
    %2351 = vmatpush1.xpose.msra.mxu0 0.0
    %2352 = vmatprep.subr.mxu0 0.0
    %2353 = vmatpush1.xpose.msra.mxu0 0.0
    %2354 = vmatprep.subr.mxu0 0.0
    %2355 = vmatpush1.xpose.msra.mxu0 0.0
    %2356 = vmatprep.subr.mxu0 0.0
    %2357 = vmatpush1.xpose.msra.mxu0 0.0
    %2358 = vmatprep.subr.mxu0 0.0
    %2359 = vmatpush1.xpose.msra.mxu0 0.0
    %2360 = vmatprep.subr.mxu0 0.0
    %2361 = vmatpush1.xpose.msra.mxu0 0.0
    %2362 = vmatprep.subr.mxu0 0.0
    %2363 = vmatpush1.xpose.msra.mxu0 0.0
    %2364 = vmatprep.subr.mxu0 0.0
    %2365 = vmatpush1.xpose.msra.mxu0 0.0
    %2366 = vmatprep.subr.mxu0 0.0
    %2367 = vmatpush1.xpose.msra.mxu0 0.0
    %2368 = vmatprep.subr.mxu0 0.0
    %2369 = vmatpush1.xpose.msra.mxu0 0.0
    %2370 = vmatprep.subr.mxu0 0.0
    %2371 = vmatpush1.xpose.msra.mxu0 0.0
    %2372 = vmatprep.subr.mxu0 0.0
    %2373 = vmatpush1.xpose.msra.mxu0 0.0
    %2374 = vmatprep.subr.mxu0 0.0
    %2375 = vmatpush1.xpose.msra.mxu0 0.0
    %2376 = vmatprep.subr.mxu0 0.0
    %2377 = vmatpush1.xpose.msra.mxu0 0.0
    %2378 = vmatprep.subr.mxu0 0.0
    %2379 = vmatpush1.xpose.msra.mxu0 0.0
    %2380 = vmatprep.subr.mxu0 0.0
    %2381 = vmatpush1.xpose.msra.mxu0 0.0
    %2382 = vmatprep.subr.mxu0 0.0
    %2383 = vmatpush1.xpose.msra.mxu0 0.0
    %2384 = vmatprep.subr.mxu0 0.0
    %2385 = vmatpush1.xpose.msra.mxu0 0.0
    %2386 = vmatprep.subr.mxu0 0.0
    %2387 = vmatpush1.xpose.msra.mxu0 0.0
    %2388 = vmatprep.mubr.f32.mxu0 0.0
    %2389 = vmatmul.mubr.f32.gmra.mrb[0].mxu0 %v2320
    %v2390 = vpop.f32.mrb[0].mxu0
    %v2391 = vadd.f32 %v292, %v2390
    %v2392 = vpop.f32.mrb[0].mxu0
    %2393 = vdwg.mxu0
    %2395 = vrot.lane.b32.xlu0 %v2314, 96
    %v2396 = vpop.permute.xlu0 %2395
    %v2397 = vsel %vm302, %v2314, 0
    %v2399 = vsel %vm302, %v2396, 0
    %2401 = vmatprep.subr.mxu0 0.0
    %2402 = vmatpush1.xpose.msra.mxu0 %v2399
    %2403 = vmatprep.subr.mxu0 0.0
    %2404 = vmatpush1.xpose.msra.mxu0 0.0
    %2405 = vmatprep.subr.mxu0 0.0
    %2406 = vmatpush1.xpose.msra.mxu0 0.0
    %2407 = vmatprep.subr.mxu0 0.0
    %2408 = vmatpush1.xpose.msra.mxu0 0.0
    %2409 = vmatprep.subr.mxu0 0.0
    %2410 = vmatpush1.xpose.msra.mxu0 0.0
    %2411 = vmatprep.subr.mxu0 0.0
    %2412 = vmatpush1.xpose.msra.mxu0 0.0
    %2413 = vmatprep.subr.mxu0 0.0
    %2414 = vmatpush1.xpose.msra.mxu0 0.0
    %2415 = vmatprep.subr.mxu0 0.0
    %2416 = vmatpush1.xpose.msra.mxu0 0.0
    %2417 = vmatprep.subr.mxu0 0.0
    %2418 = vmatpush1.xpose.msra.mxu0 0.0
    %2419 = vmatprep.subr.mxu0 0.0
    %2420 = vmatpush1.xpose.msra.mxu0 0.0
    %2421 = vmatprep.subr.mxu0 0.0
    %2422 = vmatpush1.xpose.msra.mxu0 0.0
    %2423 = vmatprep.subr.mxu0 0.0
    %2424 = vmatpush1.xpose.msra.mxu0 0.0
    %2425 = vmatprep.subr.mxu0 0.0
    %2426 = vmatpush1.xpose.msra.mxu0 0.0
    %2427 = vmatprep.subr.mxu0 0.0
    %2428 = vmatpush1.xpose.msra.mxu0 0.0
    %2429 = vmatprep.subr.mxu0 0.0
    %2430 = vmatpush1.xpose.msra.mxu0 0.0
    %2431 = vmatprep.subr.mxu0 0.0
    %2432 = vmatpush1.xpose.msra.mxu0 0.0
    %2433 = vmatprep.subr.mxu0 0.0
    %2434 = vmatpush1.xpose.msra.mxu0 0.0
    %2435 = vmatprep.subr.mxu0 0.0
    %2436 = vmatpush1.xpose.msra.mxu0 0.0
    %2437 = vmatprep.subr.mxu0 0.0
    %2438 = vmatpush1.xpose.msra.mxu0 0.0
    %2439 = vmatprep.subr.mxu0 0.0
    %2440 = vmatpush1.xpose.msra.mxu0 0.0
    %2441 = vmatprep.subr.mxu0 0.0
    %2442 = vmatpush1.xpose.msra.mxu0 0.0
    %2443 = vmatprep.subr.mxu0 0.0
    %2444 = vmatpush1.xpose.msra.mxu0 0.0
    %2445 = vmatprep.subr.mxu0 0.0
    %2446 = vmatpush1.xpose.msra.mxu0 0.0
    %2447 = vmatprep.subr.mxu0 0.0
    %2448 = vmatpush1.xpose.msra.mxu0 0.0
    %2449 = vmatprep.subr.mxu0 0.0
    %2450 = vmatpush1.xpose.msra.mxu0 0.0
    %2451 = vmatprep.subr.mxu0 0.0
    %2452 = vmatpush1.xpose.msra.mxu0 0.0
    %2453 = vmatprep.subr.mxu0 0.0
    %2454 = vmatpush1.xpose.msra.mxu0 0.0
    %2455 = vmatprep.subr.mxu0 0.0
    %2456 = vmatpush1.xpose.msra.mxu0 0.0
    %2457 = vmatprep.subr.mxu0 0.0
    %2458 = vmatpush1.xpose.msra.mxu0 0.0
    %2459 = vmatprep.subr.mxu0 0.0
    %2460 = vmatpush1.xpose.msra.mxu0 0.0
    %2461 = vmatprep.subr.mxu0 0.0
    %2462 = vmatpush1.xpose.msra.mxu0 0.0
    %2463 = vmatprep.subr.mxu0 0.0
    %2464 = vmatpush1.xpose.msra.mxu0 0.0
    %2465 = vmatprep.mubr.f32.mxu0 0.0
    %2466 = vmatmul.mubr.f32.gmra.mrb[0].mxu0 %v2397
    %v2467 = vpop.f32.mrb[0].mxu0
    %v2468 = vadd.f32 %v296, %v2467
    %v2469 = vpop.f32.mrb[0].mxu0
    %2470 = vdwg.mxu0
    %v2471 = vsel %vm302, %v2391, -inf
    %2472 = vmax.xlane.f32.xlu0 %v2471
    %v2473 = vpop.xlane.xlu0 %2472
    %v2474 = vsel %vm302, %v2468, -inf
    %2475 = vmax.xlane.f32.xlu0 %v2474
    %v2476 = vpop.xlane.xlu0 %2475
    %v2477 = vsub.f32 %v2391, %v2473
    %v2478 = vsub.f32 %v2468, %v2476
    %v2479 = vmul.f32 %v2477, 1.442695
    %v2480 = vpow.pop %v2479
    %v2481 = vmul.f32 %v2478, 1.442695
    %v2482 = vpow.pop %v2481
    %v2483 = vsel %vm302, %v2480, 0.0
    %2484 = vadd.xlane.f32.xlu0 %v2483
    %v2485 = vpop.xlane.xlu0 %2484
    %v2486 = vsel %vm302, %v2482, 0.0
    %2487 = vadd.xlane.f32.xlu0 %v2486
    %v2488 = vpop.xlane.xlu0 %2487
    %v2489 = vrcp.pop %v2485
    %v2490 = vrcp.pop %v2488
    %v2491 = vmul.f32 %v2480, %v2489
    %v2492 = vmul.f32 %v2482, %v2490
    %2493 = vrot.lane.b32.xlu0 %v2309, 64
    %v2494 = vpop.permute.xlu0 %2493
    %v2497 = vsel %vm302, %v2491, 0
    %2499 = vmatprep.subr.mxu0 0.0
    %2500 = vmatpush1.msra.mxu0 %v2494
    %2501 = vmatprep.subr.mxu0 0.0
    %2502 = vmatpush1.msra.mxu0 0.0
    %2503 = vmatprep.subr.mxu0 0.0
    %2504 = vmatpush1.msra.mxu0 0.0
    %2505 = vmatprep.subr.mxu0 0.0
    %2506 = vmatpush1.msra.mxu0 0.0
    %2507 = vmatprep.subr.mxu0 0.0
    %2508 = vmatpush1.msra.mxu0 0.0
    %2509 = vmatprep.subr.mxu0 0.0
    %2510 = vmatpush1.msra.mxu0 0.0
    %2511 = vmatprep.subr.mxu0 0.0
    %2512 = vmatpush1.msra.mxu0 0.0
    %2513 = vmatprep.subr.mxu0 0.0
    %2514 = vmatpush1.msra.mxu0 0.0
    %2515 = vmatprep.subr.mxu0 0.0
    %2516 = vmatpush1.msra.mxu0 0.0
    %2517 = vmatprep.subr.mxu0 0.0
    %2518 = vmatpush1.msra.mxu0 0.0
    %2519 = vmatprep.subr.mxu0 0.0
    %2520 = vmatpush1.msra.mxu0 0.0
    %2521 = vmatprep.subr.mxu0 0.0
    %2522 = vmatpush1.msra.mxu0 0.0
    %2523 = vmatprep.subr.mxu0 0.0
    %2524 = vmatpush1.msra.mxu0 0.0
    %2525 = vmatprep.subr.mxu0 0.0
    %2526 = vmatpush1.msra.mxu0 0.0
    %2527 = vmatprep.subr.mxu0 0.0
    %2528 = vmatpush1.msra.mxu0 0.0
    %2529 = vmatprep.subr.mxu0 0.0
    %2530 = vmatpush1.msra.mxu0 0.0
    %2531 = vmatprep.subr.mxu0 0.0
    %2532 = vmatpush1.msra.mxu0 0.0
    %2533 = vmatprep.subr.mxu0 0.0
    %2534 = vmatpush1.msra.mxu0 0.0
    %2535 = vmatprep.subr.mxu0 0.0
    %2536 = vmatpush1.msra.mxu0 0.0
    %2537 = vmatprep.subr.mxu0 0.0
    %2538 = vmatpush1.msra.mxu0 0.0
    %2539 = vmatprep.subr.mxu0 0.0
    %2540 = vmatpush1.msra.mxu0 0.0
    %2541 = vmatprep.subr.mxu0 0.0
    %2542 = vmatpush1.msra.mxu0 0.0
    %2543 = vmatprep.subr.mxu0 0.0
    %2544 = vmatpush1.msra.mxu0 0.0
    %2545 = vmatprep.subr.mxu0 0.0
    %2546 = vmatpush1.msra.mxu0 0.0
    %2547 = vmatprep.subr.mxu0 0.0
    %2548 = vmatpush1.msra.mxu0 0.0
    %2549 = vmatprep.subr.mxu0 0.0
    %2550 = vmatpush1.msra.mxu0 0.0
    %2551 = vmatprep.subr.mxu0 0.0
    %2552 = vmatpush1.msra.mxu0 0.0
    %2553 = vmatprep.subr.mxu0 0.0
    %2554 = vmatpush1.msra.mxu0 0.0
    %2555 = vmatprep.subr.mxu0 0.0
    %2556 = vmatpush1.msra.mxu0 0.0
    %2557 = vmatprep.subr.mxu0 0.0
    %2558 = vmatpush1.msra.mxu0 0.0
    %2559 = vmatprep.subr.mxu0 0.0
    %2560 = vmatpush1.msra.mxu0 0.0
    %2561 = vmatprep.subr.mxu0 0.0
    %2562 = vmatpush1.msra.mxu0 0.0
    %2563 = vmatprep.mubr.f32.mxu0 0.0
    %2564 = vmatmul.mubr.f32.gmra.mrb[0].mxu0 %v2497
    %v2565 = vpop.f32.mrb[0].mxu0
    %v2566 = vadd.f32 0.0, %v2565
    %v2567 = vpop.f32.mrb[0].mxu0
    %2568 = vdwg.mxu0
    %2569 = vrot.lane.b32.xlu0 %v2314, 64
    %v2570 = vpop.permute.xlu0 %2569
    %v2573 = vsel %vm302, %v2492, 0
    %2575 = vmatprep.subr.mxu0 0.0
    %2576 = vmatpush1.msra.mxu0 %v2570
    %2577 = vmatprep.subr.mxu0 0.0
    %2578 = vmatpush1.msra.mxu0 0.0
    %2579 = vmatprep.subr.mxu0 0.0
    %2580 = vmatpush1.msra.mxu0 0.0
    %2581 = vmatprep.subr.mxu0 0.0
    %2582 = vmatpush1.msra.mxu0 0.0
    %2583 = vmatprep.subr.mxu0 0.0
    %2584 = vmatpush1.msra.mxu0 0.0
    %2585 = vmatprep.subr.mxu0 0.0
    %2586 = vmatpush1.msra.mxu0 0.0
    %2587 = vmatprep.subr.mxu0 0.0
    %2588 = vmatpush1.msra.mxu0 0.0
    %2589 = vmatprep.subr.mxu0 0.0
    %2590 = vmatpush1.msra.mxu0 0.0
    %2591 = vmatprep.subr.mxu0 0.0
    %2592 = vmatpush1.msra.mxu0 0.0
    %2593 = vmatprep.subr.mxu0 0.0
    %2594 = vmatpush1.msra.mxu0 0.0
    %2595 = vmatprep.subr.mxu0 0.0
    %2596 = vmatpush1.msra.mxu0 0.0
    %2597 = vmatprep.subr.mxu0 0.0
    %2598 = vmatpush1.msra.mxu0 0.0
    %2599 = vmatprep.subr.mxu0 0.0
    %2600 = vmatpush1.msra.mxu0 0.0
    %2601 = vmatprep.subr.mxu0 0.0
    %2602 = vmatpush1.msra.mxu0 0.0
    %2603 = vmatprep.subr.mxu0 0.0
    %2604 = vmatpush1.msra.mxu0 0.0
    %2605 = vmatprep.subr.mxu0 0.0
    %2606 = vmatpush1.msra.mxu0 0.0
    %2607 = vmatprep.subr.mxu0 0.0
    %2608 = vmatpush1.msra.mxu0 0.0
    %2609 = vmatprep.subr.mxu0 0.0
    %2610 = vmatpush1.msra.mxu0 0.0
    %2611 = vmatprep.subr.mxu0 0.0
    %2612 = vmatpush1.msra.mxu0 0.0
    %2613 = vmatprep.subr.mxu0 0.0
    %2614 = vmatpush1.msra.mxu0 0.0
    %2615 = vmatprep.subr.mxu0 0.0
    %2616 = vmatpush1.msra.mxu0 0.0
    %2617 = vmatprep.subr.mxu0 0.0
    %2618 = vmatpush1.msra.mxu0 0.0
    %2619 = vmatprep.subr.mxu0 0.0
    %2620 = vmatpush1.msra.mxu0 0.0
    %2621 = vmatprep.subr.mxu0 0.0
    %2622 = vmatpush1.msra.mxu0 0.0
    %2623 = vmatprep.subr.mxu0 0.0
    %2624 = vmatpush1.msra.mxu0 0.0
    %2625 = vmatprep.subr.mxu0 0.0
    %2626 = vmatpush1.msra.mxu0 0.0
    %2627 = vmatprep.subr.mxu0 0.0
    %2628 = vmatpush1.msra.mxu0 0.0
    %2629 = vmatprep.subr.mxu0 0.0
    %2630 = vmatpush1.msra.mxu0 0.0
    %2631 = vmatprep.subr.mxu0 0.0
    %2632 = vmatpush1.msra.mxu0 0.0
    %2633 = vmatprep.subr.mxu0 0.0
    %2634 = vmatpush1.msra.mxu0 0.0
    %2635 = vmatprep.subr.mxu0 0.0
    %2636 = vmatpush1.msra.mxu0 0.0
    %2637 = vmatprep.subr.mxu0 0.0
    %2638 = vmatpush1.msra.mxu0 0.0
    %2639 = vmatprep.mubr.f32.mxu0 0.0
    %2640 = vmatmul.mubr.f32.gmra.mrb[0].mxu0 %v2573
    %v2641 = vpop.f32.mrb[0].mxu0
    %v2642 = vadd.f32 0.0, %v2641
    %v2643 = vpop.f32.mrb[0].mxu0
    %2644 = vdwg.mxu0
    %2645 = vrot.lane.b32.xlu0 %v2309, 120
    %v2646 = vpop.permute.xlu0 %2645
    %2647 = vrot.lane.b32.xlu0 %v2309, 88
    %v2648 = vpop.permute.xlu0 %2647
    %v2649 = vsel %vm302, %v2646, 0
    %v2651 = vsel %vm302, %v2648, 0
    %2653 = vmatprep.subr.mxu0 0.0
    %2654 = vmatpush1.xpose.msra.mxu0 %v2651
    %2655 = vmatprep.subr.mxu0 0.0
    %2656 = vmatpush1.xpose.msra.mxu0 0.0
    %2657 = vmatprep.subr.mxu0 0.0
    %2658 = vmatpush1.xpose.msra.mxu0 0.0
    %2659 = vmatprep.subr.mxu0 0.0
    %2660 = vmatpush1.xpose.msra.mxu0 0.0
    %2661 = vmatprep.subr.mxu0 0.0
    %2662 = vmatpush1.xpose.msra.mxu0 0.0
    %2663 = vmatprep.subr.mxu0 0.0
    %2664 = vmatpush1.xpose.msra.mxu0 0.0
    %2665 = vmatprep.subr.mxu0 0.0
    %2666 = vmatpush1.xpose.msra.mxu0 0.0
    %2667 = vmatprep.subr.mxu0 0.0
    %2668 = vmatpush1.xpose.msra.mxu0 0.0
    %2669 = vmatprep.subr.mxu0 0.0
    %2670 = vmatpush1.xpose.msra.mxu0 0.0
    %2671 = vmatprep.subr.mxu0 0.0
    %2672 = vmatpush1.xpose.msra.mxu0 0.0
    %2673 = vmatprep.subr.mxu0 0.0
    %2674 = vmatpush1.xpose.msra.mxu0 0.0
    %2675 = vmatprep.subr.mxu0 0.0
    %2676 = vmatpush1.xpose.msra.mxu0 0.0
    %2677 = vmatprep.subr.mxu0 0.0
    %2678 = vmatpush1.xpose.msra.mxu0 0.0
    %2679 = vmatprep.subr.mxu0 0.0
    %2680 = vmatpush1.xpose.msra.mxu0 0.0
    %2681 = vmatprep.subr.mxu0 0.0
    %2682 = vmatpush1.xpose.msra.mxu0 0.0
    %2683 = vmatprep.subr.mxu0 0.0
    %2684 = vmatpush1.xpose.msra.mxu0 0.0
    %2685 = vmatprep.subr.mxu0 0.0
    %2686 = vmatpush1.xpose.msra.mxu0 0.0
    %2687 = vmatprep.subr.mxu0 0.0
    %2688 = vmatpush1.xpose.msra.mxu0 0.0
    %2689 = vmatprep.subr.mxu0 0.0
    %2690 = vmatpush1.xpose.msra.mxu0 0.0
    %2691 = vmatprep.subr.mxu0 0.0
    %2692 = vmatpush1.xpose.msra.mxu0 0.0
    %2693 = vmatprep.subr.mxu0 0.0
    %2694 = vmatpush1.xpose.msra.mxu0 0.0
    %2695 = vmatprep.subr.mxu0 0.0
    %2696 = vmatpush1.xpose.msra.mxu0 0.0
    %2697 = vmatprep.subr.mxu0 0.0
    %2698 = vmatpush1.xpose.msra.mxu0 0.0
    %2699 = vmatprep.subr.mxu0 0.0
    %2700 = vmatpush1.xpose.msra.mxu0 0.0
    %2701 = vmatprep.subr.mxu0 0.0
    %2702 = vmatpush1.xpose.msra.mxu0 0.0
    %2703 = vmatprep.subr.mxu0 0.0
    %2704 = vmatpush1.xpose.msra.mxu0 0.0
    %2705 = vmatprep.subr.mxu0 0.0
    %2706 = vmatpush1.xpose.msra.mxu0 0.0
    %2707 = vmatprep.subr.mxu0 0.0
    %2708 = vmatpush1.xpose.msra.mxu0 0.0
    %2709 = vmatprep.subr.mxu0 0.0
    %2710 = vmatpush1.xpose.msra.mxu0 0.0
    %2711 = vmatprep.subr.mxu0 0.0
    %2712 = vmatpush1.xpose.msra.mxu0 0.0
    %2713 = vmatprep.subr.mxu0 0.0
    %2714 = vmatpush1.xpose.msra.mxu0 0.0
    %2715 = vmatprep.subr.mxu0 0.0
    %2716 = vmatpush1.xpose.msra.mxu0 0.0
    %2717 = vmatprep.mubr.f32.mxu0 0.0
    %2718 = vmatmul.mubr.f32.gmra.mrb[0].mxu0 %v2649
    %v2719 = vpop.f32.mrb[0].mxu0
    %v2720 = vadd.f32 %v292, %v2719
    %v2721 = vpop.f32.mrb[0].mxu0
    %2722 = vdwg.mxu0
    %2723 = vrot.lane.b32.xlu0 %v2314, 120
    %v2724 = vpop.permute.xlu0 %2723
    %2725 = vrot.lane.b32.xlu0 %v2314, 88
    %v2726 = vpop.permute.xlu0 %2725
    %v2727 = vsel %vm302, %v2724, 0
    %v2729 = vsel %vm302, %v2726, 0
    %2731 = vmatprep.subr.mxu0 0.0
    %2732 = vmatpush1.xpose.msra.mxu0 %v2729
    %2733 = vmatprep.subr.mxu0 0.0
    %2734 = vmatpush1.xpose.msra.mxu0 0.0
    %2735 = vmatprep.subr.mxu0 0.0
    %2736 = vmatpush1.xpose.msra.mxu0 0.0
    %2737 = vmatprep.subr.mxu0 0.0
    %2738 = vmatpush1.xpose.msra.mxu0 0.0
    %2739 = vmatprep.subr.mxu0 0.0
    %2740 = vmatpush1.xpose.msra.mxu0 0.0
    %2741 = vmatprep.subr.mxu0 0.0
    %2742 = vmatpush1.xpose.msra.mxu0 0.0
    %2743 = vmatprep.subr.mxu0 0.0
    %2744 = vmatpush1.xpose.msra.mxu0 0.0
    %2745 = vmatprep.subr.mxu0 0.0
    %2746 = vmatpush1.xpose.msra.mxu0 0.0
    %2747 = vmatprep.subr.mxu0 0.0
    %2748 = vmatpush1.xpose.msra.mxu0 0.0
    %2749 = vmatprep.subr.mxu0 0.0
    %2750 = vmatpush1.xpose.msra.mxu0 0.0
    %2751 = vmatprep.subr.mxu0 0.0
    %2752 = vmatpush1.xpose.msra.mxu0 0.0
    %2753 = vmatprep.subr.mxu0 0.0
    %2754 = vmatpush1.xpose.msra.mxu0 0.0
    %2755 = vmatprep.subr.mxu0 0.0
    %2756 = vmatpush1.xpose.msra.mxu0 0.0
    %2757 = vmatprep.subr.mxu0 0.0
    %2758 = vmatpush1.xpose.msra.mxu0 0.0
    %2759 = vmatprep.subr.mxu0 0.0
    %2760 = vmatpush1.xpose.msra.mxu0 0.0
    %2761 = vmatprep.subr.mxu0 0.0
    %2762 = vmatpush1.xpose.msra.mxu0 0.0
    %2763 = vmatprep.subr.mxu0 0.0
    %2764 = vmatpush1.xpose.msra.mxu0 0.0
    %2765 = vmatprep.subr.mxu0 0.0
    %2766 = vmatpush1.xpose.msra.mxu0 0.0
    %2767 = vmatprep.subr.mxu0 0.0
    %2768 = vmatpush1.xpose.msra.mxu0 0.0
    %2769 = vmatprep.subr.mxu0 0.0
    %2770 = vmatpush1.xpose.msra.mxu0 0.0
    %2771 = vmatprep.subr.mxu0 0.0
    %2772 = vmatpush1.xpose.msra.mxu0 0.0
    %2773 = vmatprep.subr.mxu0 0.0
    %2774 = vmatpush1.xpose.msra.mxu0 0.0
    %2775 = vmatprep.subr.mxu0 0.0
    %2776 = vmatpush1.xpose.msra.mxu0 0.0
    %2777 = vmatprep.subr.mxu0 0.0
    %2778 = vmatpush1.xpose.msra.mxu0 0.0
    %2779 = vmatprep.subr.mxu0 0.0
    %2780 = vmatpush1.xpose.msra.mxu0 0.0
    %2781 = vmatprep.subr.mxu0 0.0
    %2782 = vmatpush1.xpose.msra.mxu0 0.0
    %2783 = vmatprep.subr.mxu0 0.0
    %2784 = vmatpush1.xpose.msra.mxu0 0.0
    %2785 = vmatprep.subr.mxu0 0.0
    %2786 = vmatpush1.xpose.msra.mxu0 0.0
    %2787 = vmatprep.subr.mxu0 0.0
    %2788 = vmatpush1.xpose.msra.mxu0 0.0
    %2789 = vmatprep.subr.mxu0 0.0
    %2790 = vmatpush1.xpose.msra.mxu0 0.0
    %2791 = vmatprep.subr.mxu0 0.0
    %2792 = vmatpush1.xpose.msra.mxu0 0.0
    %2793 = vmatprep.subr.mxu0 0.0
    %2794 = vmatpush1.xpose.msra.mxu0 0.0
    %2795 = vmatprep.mubr.f32.mxu0 0.0
    %2796 = vmatmul.mubr.f32.gmra.mrb[0].mxu0 %v2727
    %v2797 = vpop.f32.mrb[0].mxu0
    %v2798 = vadd.f32 %v296, %v2797
    %v2799 = vpop.f32.mrb[0].mxu0
    %2800 = vdwg.mxu0
    %v2801 = vsel %vm302, %v2720, -inf
    %2802 = vmax.xlane.f32.xlu0 %v2801
    %v2803 = vpop.xlane.xlu0 %2802
    %v2804 = vsel %vm302, %v2798, -inf
    %2805 = vmax.xlane.f32.xlu0 %v2804
    %v2806 = vpop.xlane.xlu0 %2805
    %v2807 = vsub.f32 %v2720, %v2803
    %v2808 = vsub.f32 %v2798, %v2806
    %v2809 = vmul.f32 %v2807, 1.442695
    %v2810 = vpow.pop %v2809
    %v2811 = vmul.f32 %v2808, 1.442695
    %v2812 = vpow.pop %v2811
    %v2813 = vsel %vm302, %v2810, 0.0
    %2814 = vadd.xlane.f32.xlu0 %v2813
    %v2815 = vpop.xlane.xlu0 %2814
    %v2816 = vsel %vm302, %v2812, 0.0
    %2817 = vadd.xlane.f32.xlu0 %v2816
    %v2818 = vpop.xlane.xlu0 %2817
    %v2819 = vrcp.pop %v2815
    %v2820 = vrcp.pop %v2818
    %v2821 = vmul.f32 %v2810, %v2819
    %v2822 = vmul.f32 %v2812, %v2820
    %2823 = vrot.lane.b32.xlu0 %v2309, 56
    %v2824 = vpop.permute.xlu0 %2823
    %v2827 = vsel %vm302, %v2821, 0
    %2829 = vmatprep.subr.mxu0 0.0
    %2830 = vmatpush1.msra.mxu0 %v2824
    %2831 = vmatprep.subr.mxu0 0.0
    %2832 = vmatpush1.msra.mxu0 0.0
    %2833 = vmatprep.subr.mxu0 0.0
    %2834 = vmatpush1.msra.mxu0 0.0
    %2835 = vmatprep.subr.mxu0 0.0
    %2836 = vmatpush1.msra.mxu0 0.0
    %2837 = vmatprep.subr.mxu0 0.0
    %2838 = vmatpush1.msra.mxu0 0.0
    %2839 = vmatprep.subr.mxu0 0.0
    %2840 = vmatpush1.msra.mxu0 0.0
    %2841 = vmatprep.subr.mxu0 0.0
    %2842 = vmatpush1.msra.mxu0 0.0
    %2843 = vmatprep.subr.mxu0 0.0
    %2844 = vmatpush1.msra.mxu0 0.0
    %2845 = vmatprep.subr.mxu0 0.0
    %2846 = vmatpush1.msra.mxu0 0.0
    %2847 = vmatprep.subr.mxu0 0.0
    %2848 = vmatpush1.msra.mxu0 0.0
    %2849 = vmatprep.subr.mxu0 0.0
    %2850 = vmatpush1.msra.mxu0 0.0
    %2851 = vmatprep.subr.mxu0 0.0
    %2852 = vmatpush1.msra.mxu0 0.0
    %2853 = vmatprep.subr.mxu0 0.0
    %2854 = vmatpush1.msra.mxu0 0.0
    %2855 = vmatprep.subr.mxu0 0.0
    %2856 = vmatpush1.msra.mxu0 0.0
    %2857 = vmatprep.subr.mxu0 0.0
    %2858 = vmatpush1.msra.mxu0 0.0
    %2859 = vmatprep.subr.mxu0 0.0
    %2860 = vmatpush1.msra.mxu0 0.0
    %2861 = vmatprep.subr.mxu0 0.0
    %2862 = vmatpush1.msra.mxu0 0.0
    %2863 = vmatprep.subr.mxu0 0.0
    %2864 = vmatpush1.msra.mxu0 0.0
    %2865 = vmatprep.subr.mxu0 0.0
    %2866 = vmatpush1.msra.mxu0 0.0
    %2867 = vmatprep.subr.mxu0 0.0
    %2868 = vmatpush1.msra.mxu0 0.0
    %2869 = vmatprep.subr.mxu0 0.0
    %2870 = vmatpush1.msra.mxu0 0.0
    %2871 = vmatprep.subr.mxu0 0.0
    %2872 = vmatpush1.msra.mxu0 0.0
    %2873 = vmatprep.subr.mxu0 0.0
    %2874 = vmatpush1.msra.mxu0 0.0
    %2875 = vmatprep.subr.mxu0 0.0
    %2876 = vmatpush1.msra.mxu0 0.0
    %2877 = vmatprep.subr.mxu0 0.0
    %2878 = vmatpush1.msra.mxu0 0.0
    %2879 = vmatprep.subr.mxu0 0.0
    %2880 = vmatpush1.msra.mxu0 0.0
    %2881 = vmatprep.subr.mxu0 0.0
    %2882 = vmatpush1.msra.mxu0 0.0
    %2883 = vmatprep.subr.mxu0 0.0
    %2884 = vmatpush1.msra.mxu0 0.0
    %2885 = vmatprep.subr.mxu0 0.0
    %2886 = vmatpush1.msra.mxu0 0.0
    %2887 = vmatprep.subr.mxu0 0.0
    %2888 = vmatpush1.msra.mxu0 0.0
    %2889 = vmatprep.subr.mxu0 0.0
    %2890 = vmatpush1.msra.mxu0 0.0
    %2891 = vmatprep.subr.mxu0 0.0
    %2892 = vmatpush1.msra.mxu0 0.0
    %2893 = vmatprep.mubr.f32.mxu0 0.0
    %2894 = vmatmul.mubr.f32.gmra.mrb[0].mxu0 %v2827
    %v2895 = vpop.f32.mrb[0].mxu0
    %v2896 = vadd.f32 0.0, %v2895
    %v2897 = vpop.f32.mrb[0].mxu0
    %2898 = vdwg.mxu0
    %2899 = vrot.lane.b32.xlu0 %v2314, 56
    %v2900 = vpop.permute.xlu0 %2899
    %v2903 = vsel %vm302, %v2822, 0
    %2905 = vmatprep.subr.mxu0 0.0
    %2906 = vmatpush1.msra.mxu0 %v2900
    %2907 = vmatprep.subr.mxu0 0.0
    %2908 = vmatpush1.msra.mxu0 0.0
    %2909 = vmatprep.subr.mxu0 0.0
    %2910 = vmatpush1.msra.mxu0 0.0
    %2911 = vmatprep.subr.mxu0 0.0
    %2912 = vmatpush1.msra.mxu0 0.0
    %2913 = vmatprep.subr.mxu0 0.0
    %2914 = vmatpush1.msra.mxu0 0.0
    %2915 = vmatprep.subr.mxu0 0.0
    %2916 = vmatpush1.msra.mxu0 0.0
    %2917 = vmatprep.subr.mxu0 0.0
    %2918 = vmatpush1.msra.mxu0 0.0
    %2919 = vmatprep.subr.mxu0 0.0
    %2920 = vmatpush1.msra.mxu0 0.0
    %2921 = vmatprep.subr.mxu0 0.0
    %2922 = vmatpush1.msra.mxu0 0.0
    %2923 = vmatprep.subr.mxu0 0.0
    %2924 = vmatpush1.msra.mxu0 0.0
    %2925 = vmatprep.subr.mxu0 0.0
    %2926 = vmatpush1.msra.mxu0 0.0
    %2927 = vmatprep.subr.mxu0 0.0
    %2928 = vmatpush1.msra.mxu0 0.0
    %2929 = vmatprep.subr.mxu0 0.0
    %2930 = vmatpush1.msra.mxu0 0.0
    %2931 = vmatprep.subr.mxu0 0.0
    %2932 = vmatpush1.msra.mxu0 0.0
    %2933 = vmatprep.subr.mxu0 0.0
    %2934 = vmatpush1.msra.mxu0 0.0
    %2935 = vmatprep.subr.mxu0 0.0
    %2936 = vmatpush1.msra.mxu0 0.0
    %2937 = vmatprep.subr.mxu0 0.0
    %2938 = vmatpush1.msra.mxu0 0.0
    %2939 = vmatprep.subr.mxu0 0.0
    %2940 = vmatpush1.msra.mxu0 0.0
    %2941 = vmatprep.subr.mxu0 0.0
    %2942 = vmatpush1.msra.mxu0 0.0
    %2943 = vmatprep.subr.mxu0 0.0
    %2944 = vmatpush1.msra.mxu0 0.0
    %2945 = vmatprep.subr.mxu0 0.0
    %2946 = vmatpush1.msra.mxu0 0.0
    %2947 = vmatprep.subr.mxu0 0.0
    %2948 = vmatpush1.msra.mxu0 0.0
    %2949 = vmatprep.subr.mxu0 0.0
    %2950 = vmatpush1.msra.mxu0 0.0
    %2951 = vmatprep.subr.mxu0 0.0
    %2952 = vmatpush1.msra.mxu0 0.0
    %2953 = vmatprep.subr.mxu0 0.0
    %2954 = vmatpush1.msra.mxu0 0.0
    %2955 = vmatprep.subr.mxu0 0.0
    %2956 = vmatpush1.msra.mxu0 0.0
    %2957 = vmatprep.subr.mxu0 0.0
    %2958 = vmatpush1.msra.mxu0 0.0
    %2959 = vmatprep.subr.mxu0 0.0
    %2960 = vmatpush1.msra.mxu0 0.0
    %2961 = vmatprep.subr.mxu0 0.0
    %2962 = vmatpush1.msra.mxu0 0.0
    %2963 = vmatprep.subr.mxu0 0.0
    %2964 = vmatpush1.msra.mxu0 0.0
    %2965 = vmatprep.subr.mxu0 0.0
    %2966 = vmatpush1.msra.mxu0 0.0
    %2967 = vmatprep.subr.mxu0 0.0
    %2968 = vmatpush1.msra.mxu0 0.0
    %2969 = vmatprep.mubr.f32.mxu0 0.0
    %2970 = vmatmul.mubr.f32.gmra.mrb[0].mxu0 %v2903
    %v2971 = vpop.f32.mrb[0].mxu0
    %v2972 = vadd.f32 0.0, %v2971
    %v2973 = vpop.f32.mrb[0].mxu0
    %2974 = vdwg.mxu0
    %v2976 = vsel %vm302, %v2896, 0
    %v2979 = vsel %vm302, %v2972, 0
    %2981 = vmatprep.subr.mxu0 0.0
    %2982 = vmatpush1.msra.mxu0 %v2186
    %2983 = vmatprep.subr.mxu0 0.0
    %2984 = vmatpush1.msra.mxu0 0.0
    %2985 = vmatprep.subr.mxu0 0.0
    %2986 = vmatpush1.msra.mxu0 0.0
    %2987 = vmatprep.subr.mxu0 0.0
    %2988 = vmatpush1.msra.mxu0 0.0
    %2989 = vmatprep.subr.mxu0 0.0
    %2990 = vmatpush1.msra.mxu0 0.0
    %2991 = vmatprep.subr.mxu0 0.0
    %2992 = vmatpush1.msra.mxu0 0.0
    %2993 = vmatprep.subr.mxu0 0.0
    %2994 = vmatpush1.msra.mxu0 0.0
    %2995 = vmatprep.subr.mxu0 0.0
    %2996 = vmatpush1.msra.mxu0 0.0
    %2997 = vmatprep.subr.mxu0 0.0
    %2998 = vmatpush1.msra.mxu0 0.0
    %2999 = vmatprep.subr.mxu0 0.0
    %3000 = vmatpush1.msra.mxu0 0.0
    %3001 = vmatprep.subr.mxu0 0.0
    %3002 = vmatpush1.msra.mxu0 0.0
    %3003 = vmatprep.subr.mxu0 0.0
    %3004 = vmatpush1.msra.mxu0 0.0
    %3005 = vmatprep.subr.mxu0 0.0
    %3006 = vmatpush1.msra.mxu0 0.0
    %3007 = vmatprep.subr.mxu0 0.0
    %3008 = vmatpush1.msra.mxu0 0.0
    %3009 = vmatprep.subr.mxu0 0.0
    %3010 = vmatpush1.msra.mxu0 0.0
    %3011 = vmatprep.subr.mxu0 0.0
    %3012 = vmatpush1.msra.mxu0 0.0
    %3013 = vmatprep.subr.mxu0 0.0
    %3014 = vmatpush1.msra.mxu0 0.0
    %3015 = vmatprep.subr.mxu0 0.0
    %3016 = vmatpush1.msra.mxu0 0.0
    %3017 = vmatprep.subr.mxu0 0.0
    %3018 = vmatpush1.msra.mxu0 0.0
    %3019 = vmatprep.subr.mxu0 0.0
    %3020 = vmatpush1.msra.mxu0 0.0
    %3021 = vmatprep.subr.mxu0 0.0
    %3022 = vmatpush1.msra.mxu0 0.0
    %3023 = vmatprep.subr.mxu0 0.0
    %3024 = vmatpush1.msra.mxu0 0.0
    %3025 = vmatprep.subr.mxu0 0.0
    %3026 = vmatpush1.msra.mxu0 0.0
    %3027 = vmatprep.subr.mxu0 0.0
    %3028 = vmatpush1.msra.mxu0 0.0
    %3029 = vmatprep.subr.mxu0 0.0
    %3030 = vmatpush1.msra.mxu0 0.0
    %3031 = vmatprep.subr.mxu0 0.0
    %3032 = vmatpush1.msra.mxu0 0.0
    %3033 = vmatprep.subr.mxu0 0.0
    %3034 = vmatpush1.msra.mxu0 0.0
    %3035 = vmatprep.subr.mxu0 0.0
    %3036 = vmatpush1.msra.mxu0 0.0
    %3037 = vmatprep.subr.mxu0 0.0
    %3038 = vmatpush1.msra.mxu0 0.0
    %3039 = vmatprep.subr.mxu0 0.0
    %3040 = vmatpush1.msra.mxu0 0.0
    %3041 = vmatprep.subr.mxu0 0.0
    %3042 = vmatpush1.msra.mxu0 0.0
    %3043 = vmatprep.subr.mxu0 0.0
    %3044 = vmatpush1.msra.mxu0 0.0
    %3045 = vmatprep.mubr.f32.mxu0 0.0
    %3046 = vmatmul.mubr.f32.gmra.mrb[0].mxu0 %v2976
    %v3047 = vpop.f32.mrb[0].mxu0
    %v3048 = vadd.f32 0.0, %v3047
    %v3049 = vpop.f32.mrb[0].mxu0
    %3050 = vmatprep.mubr.f32.mxu0 0.0
    %3051 = vmatmul.mubr.f32.gmra.mrb[0].mxu0 %v2979
    %v3052 = vpop.f32.mrb[0].mxu0
    %v3053 = vadd.f32 0.0, %v3052
    %v3054 = vpop.f32.mrb[0].mxu0
    %3055 = vdwg.mxu0
    %v3057 = vsel %vm302, %v2566, 0
    %v3060 = vsel %vm302, %v2642, 0
    %3062 = vmatprep.subr.mxu0 0.0
    %3063 = vmatpush1.msra.mxu0 %v2185
    %3064 = vmatprep.subr.mxu0 0.0
    %3065 = vmatpush1.msra.mxu0 0.0
    %3066 = vmatprep.subr.mxu0 0.0
    %3067 = vmatpush1.msra.mxu0 0.0
    %3068 = vmatprep.subr.mxu0 0.0
    %3069 = vmatpush1.msra.mxu0 0.0
    %3070 = vmatprep.subr.mxu0 0.0
    %3071 = vmatpush1.msra.mxu0 0.0
    %3072 = vmatprep.subr.mxu0 0.0
    %3073 = vmatpush1.msra.mxu0 0.0
    %3074 = vmatprep.subr.mxu0 0.0
    %3075 = vmatpush1.msra.mxu0 0.0
    %3076 = vmatprep.subr.mxu0 0.0
    %3077 = vmatpush1.msra.mxu0 0.0
    %3078 = vmatprep.subr.mxu0 0.0
    %3079 = vmatpush1.msra.mxu0 0.0
    %3080 = vmatprep.subr.mxu0 0.0
    %3081 = vmatpush1.msra.mxu0 0.0
    %3082 = vmatprep.subr.mxu0 0.0
    %3083 = vmatpush1.msra.mxu0 0.0
    %3084 = vmatprep.subr.mxu0 0.0
    %3085 = vmatpush1.msra.mxu0 0.0
    %3086 = vmatprep.subr.mxu0 0.0
    %3087 = vmatpush1.msra.mxu0 0.0
    %3088 = vmatprep.subr.mxu0 0.0
    %3089 = vmatpush1.msra.mxu0 0.0
    %3090 = vmatprep.subr.mxu0 0.0
    %3091 = vmatpush1.msra.mxu0 0.0
    %3092 = vmatprep.subr.mxu0 0.0
    %3093 = vmatpush1.msra.mxu0 0.0
    %3094 = vmatprep.subr.mxu0 0.0
    %3095 = vmatpush1.msra.mxu0 0.0
    %3096 = vmatprep.subr.mxu0 0.0
    %3097 = vmatpush1.msra.mxu0 0.0
    %3098 = vmatprep.subr.mxu0 0.0
    %3099 = vmatpush1.msra.mxu0 0.0
    %3100 = vmatprep.subr.mxu0 0.0
    %3101 = vmatpush1.msra.mxu0 0.0
    %3102 = vmatprep.subr.mxu0 0.0
    %3103 = vmatpush1.msra.mxu0 0.0
    %3104 = vmatprep.subr.mxu0 0.0
    %3105 = vmatpush1.msra.mxu0 0.0
    %3106 = vmatprep.subr.mxu0 0.0
    %3107 = vmatpush1.msra.mxu0 0.0
    %3108 = vmatprep.subr.mxu0 0.0
    %3109 = vmatpush1.msra.mxu0 0.0
    %3110 = vmatprep.subr.mxu0 0.0
    %3111 = vmatpush1.msra.mxu0 0.0
    %3112 = vmatprep.subr.mxu0 0.0
    %3113 = vmatpush1.msra.mxu0 0.0
    %3114 = vmatprep.subr.mxu0 0.0
    %3115 = vmatpush1.msra.mxu0 0.0
    %3116 = vmatprep.subr.mxu0 0.0
    %3117 = vmatpush1.msra.mxu0 0.0
    %3118 = vmatprep.subr.mxu0 0.0
    %3119 = vmatpush1.msra.mxu0 0.0
    %3120 = vmatprep.subr.mxu0 0.0
    %3121 = vmatpush1.msra.mxu0 0.0
    %3122 = vmatprep.subr.mxu0 0.0
    %3123 = vmatpush1.msra.mxu0 0.0
    %3124 = vmatprep.subr.mxu0 0.0
    %3125 = vmatpush1.msra.mxu0 0.0
    %3126 = vmatprep.mubr.f32.mxu0 0.0
    %3127 = vmatmul.mubr.f32.gmra.mrb[0].mxu0 %v3057
    %v3128 = vpop.f32.mrb[0].mxu0
    %v3129 = vadd.f32 %v3048, %v3128
    %v3130 = vpop.f32.mrb[0].mxu0
    %3131 = vmatprep.mubr.f32.mxu0 0.0
    %3132 = vmatmul.mubr.f32.gmra.mrb[0].mxu0 %v3060
    %v3133 = vpop.f32.mrb[0].mxu0
    %v3134 = vadd.f32 %v3053, %v3133
    %v3135 = vpop.f32.mrb[0].mxu0
    %3136 = vdwg.mxu0
    %3137 = vrot.lane.b32.xlu0 %v2309, 112
    %v3138 = vpop.permute.xlu0 %3137
    %3139 = vrot.lane.b32.xlu0 %v2309, 80
    %v3140 = vpop.permute.xlu0 %3139
    %v3141 = vsel %vm302, %v3138, 0
    %v3143 = vsel %vm302, %v3140, 0
    %3145 = vmatprep.subr.mxu0 0.0
    %3146 = vmatpush1.xpose.msra.mxu0 %v3143
    %3147 = vmatprep.subr.mxu0 0.0
    %3148 = vmatpush1.xpose.msra.mxu0 0.0
    %3149 = vmatprep.subr.mxu0 0.0
    %3150 = vmatpush1.xpose.msra.mxu0 0.0
    %3151 = vmatprep.subr.mxu0 0.0
    %3152 = vmatpush1.xpose.msra.mxu0 0.0
    %3153 = vmatprep.subr.mxu0 0.0
    %3154 = vmatpush1.xpose.msra.mxu0 0.0
    %3155 = vmatprep.subr.mxu0 0.0
    %3156 = vmatpush1.xpose.msra.mxu0 0.0
    %3157 = vmatprep.subr.mxu0 0.0
    %3158 = vmatpush1.xpose.msra.mxu0 0.0
    %3159 = vmatprep.subr.mxu0 0.0
    %3160 = vmatpush1.xpose.msra.mxu0 0.0
    %3161 = vmatprep.subr.mxu0 0.0
    %3162 = vmatpush1.xpose.msra.mxu0 0.0
    %3163 = vmatprep.subr.mxu0 0.0
    %3164 = vmatpush1.xpose.msra.mxu0 0.0
    %3165 = vmatprep.subr.mxu0 0.0
    %3166 = vmatpush1.xpose.msra.mxu0 0.0
    %3167 = vmatprep.subr.mxu0 0.0
    %3168 = vmatpush1.xpose.msra.mxu0 0.0
    %3169 = vmatprep.subr.mxu0 0.0
    %3170 = vmatpush1.xpose.msra.mxu0 0.0
    %3171 = vmatprep.subr.mxu0 0.0
    %3172 = vmatpush1.xpose.msra.mxu0 0.0
    %3173 = vmatprep.subr.mxu0 0.0
    %3174 = vmatpush1.xpose.msra.mxu0 0.0
    %3175 = vmatprep.subr.mxu0 0.0
    %3176 = vmatpush1.xpose.msra.mxu0 0.0
    %3177 = vmatprep.subr.mxu0 0.0
    %3178 = vmatpush1.xpose.msra.mxu0 0.0
    %3179 = vmatprep.subr.mxu0 0.0
    %3180 = vmatpush1.xpose.msra.mxu0 0.0
    %3181 = vmatprep.subr.mxu0 0.0
    %3182 = vmatpush1.xpose.msra.mxu0 0.0
    %3183 = vmatprep.subr.mxu0 0.0
    %3184 = vmatpush1.xpose.msra.mxu0 0.0
    %3185 = vmatprep.subr.mxu0 0.0
    %3186 = vmatpush1.xpose.msra.mxu0 0.0
    %3187 = vmatprep.subr.mxu0 0.0
    %3188 = vmatpush1.xpose.msra.mxu0 0.0
    %3189 = vmatprep.subr.mxu0 0.0
    %3190 = vmatpush1.xpose.msra.mxu0 0.0
    %3191 = vmatprep.subr.mxu0 0.0
    %3192 = vmatpush1.xpose.msra.mxu0 0.0
    %3193 = vmatprep.subr.mxu0 0.0
    %3194 = vmatpush1.xpose.msra.mxu0 0.0
    %3195 = vmatprep.subr.mxu0 0.0
    %3196 = vmatpush1.xpose.msra.mxu0 0.0
    %3197 = vmatprep.subr.mxu0 0.0
    %3198 = vmatpush1.xpose.msra.mxu0 0.0
    %3199 = vmatprep.subr.mxu0 0.0
    %3200 = vmatpush1.xpose.msra.mxu0 0.0
    %3201 = vmatprep.subr.mxu0 0.0
    %3202 = vmatpush1.xpose.msra.mxu0 0.0
    %3203 = vmatprep.subr.mxu0 0.0
    %3204 = vmatpush1.xpose.msra.mxu0 0.0
    %3205 = vmatprep.subr.mxu0 0.0
    %3206 = vmatpush1.xpose.msra.mxu0 0.0
    %3207 = vmatprep.subr.mxu0 0.0
    %3208 = vmatpush1.xpose.msra.mxu0 0.0
    %3209 = vmatprep.mubr.f32.mxu0 0.0
    %3210 = vmatmul.mubr.f32.gmra.mrb[0].mxu0 %v3141
    %v3211 = vpop.f32.mrb[0].mxu0
    %v3212 = vadd.f32 %v292, %v3211
    %v3213 = vpop.f32.mrb[0].mxu0
    %3214 = vdwg.mxu0
    %3215 = vrot.lane.b32.xlu0 %v2314, 112
    %v3216 = vpop.permute.xlu0 %3215
    %3217 = vrot.lane.b32.xlu0 %v2314, 80
    %v3218 = vpop.permute.xlu0 %3217
    %v3219 = vsel %vm302, %v3216, 0
    %v3221 = vsel %vm302, %v3218, 0
    %3223 = vmatprep.subr.mxu0 0.0
    %3224 = vmatpush1.xpose.msra.mxu0 %v3221
    %3225 = vmatprep.subr.mxu0 0.0
    %3226 = vmatpush1.xpose.msra.mxu0 0.0
    %3227 = vmatprep.subr.mxu0 0.0
    %3228 = vmatpush1.xpose.msra.mxu0 0.0
    %3229 = vmatprep.subr.mxu0 0.0
    %3230 = vmatpush1.xpose.msra.mxu0 0.0
    %3231 = vmatprep.subr.mxu0 0.0
    %3232 = vmatpush1.xpose.msra.mxu0 0.0
    %3233 = vmatprep.subr.mxu0 0.0
    %3234 = vmatpush1.xpose.msra.mxu0 0.0
    %3235 = vmatprep.subr.mxu0 0.0
    %3236 = vmatpush1.xpose.msra.mxu0 0.0
    %3237 = vmatprep.subr.mxu0 0.0
    %3238 = vmatpush1.xpose.msra.mxu0 0.0
    %3239 = vmatprep.subr.mxu0 0.0
    %3240 = vmatpush1.xpose.msra.mxu0 0.0
    %3241 = vmatprep.subr.mxu0 0.0
    %3242 = vmatpush1.xpose.msra.mxu0 0.0
    %3243 = vmatprep.subr.mxu0 0.0
    %3244 = vmatpush1.xpose.msra.mxu0 0.0
    %3245 = vmatprep.subr.mxu0 0.0
    %3246 = vmatpush1.xpose.msra.mxu0 0.0
    %3247 = vmatprep.subr.mxu0 0.0
    %3248 = vmatpush1.xpose.msra.mxu0 0.0
    %3249 = vmatprep.subr.mxu0 0.0
    %3250 = vmatpush1.xpose.msra.mxu0 0.0
    %3251 = vmatprep.subr.mxu0 0.0
    %3252 = vmatpush1.xpose.msra.mxu0 0.0
    %3253 = vmatprep.subr.mxu0 0.0
    %3254 = vmatpush1.xpose.msra.mxu0 0.0
    %3255 = vmatprep.subr.mxu0 0.0
    %3256 = vmatpush1.xpose.msra.mxu0 0.0
    %3257 = vmatprep.subr.mxu0 0.0
    %3258 = vmatpush1.xpose.msra.mxu0 0.0
    %3259 = vmatprep.subr.mxu0 0.0
    %3260 = vmatpush1.xpose.msra.mxu0 0.0
    %3261 = vmatprep.subr.mxu0 0.0
    %3262 = vmatpush1.xpose.msra.mxu0 0.0
    %3263 = vmatprep.subr.mxu0 0.0
    %3264 = vmatpush1.xpose.msra.mxu0 0.0
    %3265 = vmatprep.subr.mxu0 0.0
    %3266 = vmatpush1.xpose.msra.mxu0 0.0
    %3267 = vmatprep.subr.mxu0 0.0
    %3268 = vmatpush1.xpose.msra.mxu0 0.0
    %3269 = vmatprep.subr.mxu0 0.0
    %3270 = vmatpush1.xpose.msra.mxu0 0.0
    %3271 = vmatprep.subr.mxu0 0.0
    %3272 = vmatpush1.xpose.msra.mxu0 0.0
    %3273 = vmatprep.subr.mxu0 0.0
    %3274 = vmatpush1.xpose.msra.mxu0 0.0
    %3275 = vmatprep.subr.mxu0 0.0
    %3276 = vmatpush1.xpose.msra.mxu0 0.0
    %3277 = vmatprep.subr.mxu0 0.0
    %3278 = vmatpush1.xpose.msra.mxu0 0.0
    %3279 = vmatprep.subr.mxu0 0.0
    %3280 = vmatpush1.xpose.msra.mxu0 0.0
    %3281 = vmatprep.subr.mxu0 0.0
    %3282 = vmatpush1.xpose.msra.mxu0 0.0
    %3283 = vmatprep.subr.mxu0 0.0
    %3284 = vmatpush1.xpose.msra.mxu0 0.0
    %3285 = vmatprep.subr.mxu0 0.0
    %3286 = vmatpush1.xpose.msra.mxu0 0.0
    %3287 = vmatprep.mubr.f32.mxu0 0.0
    %3288 = vmatmul.mubr.f32.gmra.mrb[0].mxu0 %v3219
    %v3289 = vpop.f32.mrb[0].mxu0
    %v3290 = vadd.f32 %v296, %v3289
    %v3291 = vpop.f32.mrb[0].mxu0
    %3292 = vdwg.mxu0
    %v3293 = vsel %vm302, %v3212, -inf
    %3294 = vmax.xlane.f32.xlu0 %v3293
    %v3295 = vpop.xlane.xlu0 %3294
    %v3296 = vsel %vm302, %v3290, -inf
    %3297 = vmax.xlane.f32.xlu0 %v3296
    %v3298 = vpop.xlane.xlu0 %3297
    %v3299 = vsub.f32 %v3212, %v3295
    %v3300 = vsub.f32 %v3290, %v3298
    %v3301 = vmul.f32 %v3299, 1.442695
    %v3302 = vpow.pop %v3301
    %v3303 = vmul.f32 %v3300, 1.442695
    %v3304 = vpow.pop %v3303
    %v3305 = vsel %vm302, %v3302, 0.0
    %3306 = vadd.xlane.f32.xlu0 %v3305
    %v3307 = vpop.xlane.xlu0 %3306
    %v3308 = vsel %vm302, %v3304, 0.0
    %3309 = vadd.xlane.f32.xlu0 %v3308
    %v3310 = vpop.xlane.xlu0 %3309
    %v3311 = vrcp.pop %v3307
    %v3312 = vrcp.pop %v3310
    %v3313 = vmul.f32 %v3302, %v3311
    %v3314 = vmul.f32 %v3304, %v3312
    %3315 = vrot.lane.b32.xlu0 %v2309, 48
    %v3316 = vpop.permute.xlu0 %3315
    %v3319 = vsel %vm302, %v3313, 0
    %3321 = vmatprep.subr.mxu0 0.0
    %3322 = vmatpush1.msra.mxu0 %v3316
    %3323 = vmatprep.subr.mxu0 0.0
    %3324 = vmatpush1.msra.mxu0 0.0
    %3325 = vmatprep.subr.mxu0 0.0
    %3326 = vmatpush1.msra.mxu0 0.0
    %3327 = vmatprep.subr.mxu0 0.0
    %3328 = vmatpush1.msra.mxu0 0.0
    %3329 = vmatprep.subr.mxu0 0.0
    %3330 = vmatpush1.msra.mxu0 0.0
    %3331 = vmatprep.subr.mxu0 0.0
    %3332 = vmatpush1.msra.mxu0 0.0
    %3333 = vmatprep.subr.mxu0 0.0
    %3334 = vmatpush1.msra.mxu0 0.0
    %3335 = vmatprep.subr.mxu0 0.0
    %3336 = vmatpush1.msra.mxu0 0.0
    %3337 = vmatprep.subr.mxu0 0.0
    %3338 = vmatpush1.msra.mxu0 0.0
    %3339 = vmatprep.subr.mxu0 0.0
    %3340 = vmatpush1.msra.mxu0 0.0
    %3341 = vmatprep.subr.mxu0 0.0
    %3342 = vmatpush1.msra.mxu0 0.0
    %3343 = vmatprep.subr.mxu0 0.0
    %3344 = vmatpush1.msra.mxu0 0.0
    %3345 = vmatprep.subr.mxu0 0.0
    %3346 = vmatpush1.msra.mxu0 0.0
    %3347 = vmatprep.subr.mxu0 0.0
    %3348 = vmatpush1.msra.mxu0 0.0
    %3349 = vmatprep.subr.mxu0 0.0
    %3350 = vmatpush1.msra.mxu0 0.0
    %3351 = vmatprep.subr.mxu0 0.0
    %3352 = vmatpush1.msra.mxu0 0.0
    %3353 = vmatprep.subr.mxu0 0.0
    %3354 = vmatpush1.msra.mxu0 0.0
    %3355 = vmatprep.subr.mxu0 0.0
    %3356 = vmatpush1.msra.mxu0 0.0
    %3357 = vmatprep.subr.mxu0 0.0
    %3358 = vmatpush1.msra.mxu0 0.0
    %3359 = vmatprep.subr.mxu0 0.0
    %3360 = vmatpush1.msra.mxu0 0.0
    %3361 = vmatprep.subr.mxu0 0.0
    %3362 = vmatpush1.msra.mxu0 0.0
    %3363 = vmatprep.subr.mxu0 0.0
    %3364 = vmatpush1.msra.mxu0 0.0
    %3365 = vmatprep.subr.mxu0 0.0
    %3366 = vmatpush1.msra.mxu0 0.0
    %3367 = vmatprep.subr.mxu0 0.0
    %3368 = vmatpush1.msra.mxu0 0.0
    %3369 = vmatprep.subr.mxu0 0.0
    %3370 = vmatpush1.msra.mxu0 0.0
    %3371 = vmatprep.subr.mxu0 0.0
    %3372 = vmatpush1.msra.mxu0 0.0
    %3373 = vmatprep.subr.mxu0 0.0
    %3374 = vmatpush1.msra.mxu0 0.0
    %3375 = vmatprep.subr.mxu0 0.0
    %3376 = vmatpush1.msra.mxu0 0.0
    %3377 = vmatprep.subr.mxu0 0.0
    %3378 = vmatpush1.msra.mxu0 0.0
    %3379 = vmatprep.subr.mxu0 0.0
    %3380 = vmatpush1.msra.mxu0 0.0
    %3381 = vmatprep.subr.mxu0 0.0
    %3382 = vmatpush1.msra.mxu0 0.0
    %3383 = vmatprep.subr.mxu0 0.0
    %3384 = vmatpush1.msra.mxu0 0.0
    %3385 = vmatprep.mubr.f32.mxu0 0.0
    %3386 = vmatmul.mubr.f32.gmra.mrb[0].mxu0 %v3319
    %v3387 = vpop.f32.mrb[0].mxu0
    %v3388 = vadd.f32 0.0, %v3387
    %v3389 = vpop.f32.mrb[0].mxu0
    %3390 = vdwg.mxu0
    %3391 = vrot.lane.b32.xlu0 %v2314, 48
    %v3392 = vpop.permute.xlu0 %3391
    %v3395 = vsel %vm302, %v3314, 0
    %3397 = vmatprep.subr.mxu0 0.0
    %3398 = vmatpush1.msra.mxu0 %v3392
    %3399 = vmatprep.subr.mxu0 0.0
    %3400 = vmatpush1.msra.mxu0 0.0
    %3401 = vmatprep.subr.mxu0 0.0
    %3402 = vmatpush1.msra.mxu0 0.0
    %3403 = vmatprep.subr.mxu0 0.0
    %3404 = vmatpush1.msra.mxu0 0.0
    %3405 = vmatprep.subr.mxu0 0.0
    %3406 = vmatpush1.msra.mxu0 0.0
    %3407 = vmatprep.subr.mxu0 0.0
    %3408 = vmatpush1.msra.mxu0 0.0
    %3409 = vmatprep.subr.mxu0 0.0
    %3410 = vmatpush1.msra.mxu0 0.0
    %3411 = vmatprep.subr.mxu0 0.0
    %3412 = vmatpush1.msra.mxu0 0.0
    %3413 = vmatprep.subr.mxu0 0.0
    %3414 = vmatpush1.msra.mxu0 0.0
    %3415 = vmatprep.subr.mxu0 0.0
    %3416 = vmatpush1.msra.mxu0 0.0
    %3417 = vmatprep.subr.mxu0 0.0
    %3418 = vmatpush1.msra.mxu0 0.0
    %3419 = vmatprep.subr.mxu0 0.0
    %3420 = vmatpush1.msra.mxu0 0.0
    %3421 = vmatprep.subr.mxu0 0.0
    %3422 = vmatpush1.msra.mxu0 0.0
    %3423 = vmatprep.subr.mxu0 0.0
    %3424 = vmatpush1.msra.mxu0 0.0
    %3425 = vmatprep.subr.mxu0 0.0
    %3426 = vmatpush1.msra.mxu0 0.0
    %3427 = vmatprep.subr.mxu0 0.0
    %3428 = vmatpush1.msra.mxu0 0.0
    %3429 = vmatprep.subr.mxu0 0.0
    %3430 = vmatpush1.msra.mxu0 0.0
    %3431 = vmatprep.subr.mxu0 0.0
    %3432 = vmatpush1.msra.mxu0 0.0
    %3433 = vmatprep.subr.mxu0 0.0
    %3434 = vmatpush1.msra.mxu0 0.0
    %3435 = vmatprep.subr.mxu0 0.0
    %3436 = vmatpush1.msra.mxu0 0.0
    %3437 = vmatprep.subr.mxu0 0.0
    %3438 = vmatpush1.msra.mxu0 0.0
    %3439 = vmatprep.subr.mxu0 0.0
    %3440 = vmatpush1.msra.mxu0 0.0
    %3441 = vmatprep.subr.mxu0 0.0
    %3442 = vmatpush1.msra.mxu0 0.0
    %3443 = vmatprep.subr.mxu0 0.0
    %3444 = vmatpush1.msra.mxu0 0.0
    %3445 = vmatprep.subr.mxu0 0.0
    %3446 = vmatpush1.msra.mxu0 0.0
    %3447 = vmatprep.subr.mxu0 0.0
    %3448 = vmatpush1.msra.mxu0 0.0
    %3449 = vmatprep.subr.mxu0 0.0
    %3450 = vmatpush1.msra.mxu0 0.0
    %3451 = vmatprep.subr.mxu0 0.0
    %3452 = vmatpush1.msra.mxu0 0.0
    %3453 = vmatprep.subr.mxu0 0.0
    %3454 = vmatpush1.msra.mxu0 0.0
    %3455 = vmatprep.subr.mxu0 0.0
    %3456 = vmatpush1.msra.mxu0 0.0
    %3457 = vmatprep.subr.mxu0 0.0
    %3458 = vmatpush1.msra.mxu0 0.0
    %3459 = vmatprep.subr.mxu0 0.0
    %3460 = vmatpush1.msra.mxu0 0.0
    %3461 = vmatprep.mubr.f32.mxu0 0.0
    %3462 = vmatmul.mubr.f32.gmra.mrb[0].mxu0 %v3395
    %v3463 = vpop.f32.mrb[0].mxu0
    %v3464 = vadd.f32 0.0, %v3463
    %v3465 = vpop.f32.mrb[0].mxu0
    %3466 = vdwg.mxu0
    %v3468 = vsel %vm302, %v3388, 0
    %v3471 = vsel %vm302, %v3464, 0
    %3473 = vmatprep.subr.mxu0 0.0
    %3474 = vmatpush1.msra.mxu0 %v2187
    %3475 = vmatprep.subr.mxu0 0.0
    %3476 = vmatpush1.msra.mxu0 0.0
    %3477 = vmatprep.subr.mxu0 0.0
    %3478 = vmatpush1.msra.mxu0 0.0
    %3479 = vmatprep.subr.mxu0 0.0
    %3480 = vmatpush1.msra.mxu0 0.0
    %3481 = vmatprep.subr.mxu0 0.0
    %3482 = vmatpush1.msra.mxu0 0.0
    %3483 = vmatprep.subr.mxu0 0.0
    %3484 = vmatpush1.msra.mxu0 0.0
    %3485 = vmatprep.subr.mxu0 0.0
    %3486 = vmatpush1.msra.mxu0 0.0
    %3487 = vmatprep.subr.mxu0 0.0
    %3488 = vmatpush1.msra.mxu0 0.0
    %3489 = vmatprep.subr.mxu0 0.0
    %3490 = vmatpush1.msra.mxu0 0.0
    %3491 = vmatprep.subr.mxu0 0.0
    %3492 = vmatpush1.msra.mxu0 0.0
    %3493 = vmatprep.subr.mxu0 0.0
    %3494 = vmatpush1.msra.mxu0 0.0
    %3495 = vmatprep.subr.mxu0 0.0
    %3496 = vmatpush1.msra.mxu0 0.0
    %3497 = vmatprep.subr.mxu0 0.0
    %3498 = vmatpush1.msra.mxu0 0.0
    %3499 = vmatprep.subr.mxu0 0.0
    %3500 = vmatpush1.msra.mxu0 0.0
    %3501 = vmatprep.subr.mxu0 0.0
    %3502 = vmatpush1.msra.mxu0 0.0
    %3503 = vmatprep.subr.mxu0 0.0
    %3504 = vmatpush1.msra.mxu0 0.0
    %3505 = vmatprep.subr.mxu0 0.0
    %3506 = vmatpush1.msra.mxu0 0.0
    %3507 = vmatprep.subr.mxu0 0.0
    %3508 = vmatpush1.msra.mxu0 0.0
    %3509 = vmatprep.subr.mxu0 0.0
    %3510 = vmatpush1.msra.mxu0 0.0
    %3511 = vmatprep.subr.mxu0 0.0
    %3512 = vmatpush1.msra.mxu0 0.0
    %3513 = vmatprep.subr.mxu0 0.0
    %3514 = vmatpush1.msra.mxu0 0.0
    %3515 = vmatprep.subr.mxu0 0.0
    %3516 = vmatpush1.msra.mxu0 0.0
    %3517 = vmatprep.subr.mxu0 0.0
    %3518 = vmatpush1.msra.mxu0 0.0
    %3519 = vmatprep.subr.mxu0 0.0
    %3520 = vmatpush1.msra.mxu0 0.0
    %3521 = vmatprep.subr.mxu0 0.0
    %3522 = vmatpush1.msra.mxu0 0.0
    %3523 = vmatprep.subr.mxu0 0.0
    %3524 = vmatpush1.msra.mxu0 0.0
    %3525 = vmatprep.subr.mxu0 0.0
    %3526 = vmatpush1.msra.mxu0 0.0
    %3527 = vmatprep.subr.mxu0 0.0
    %3528 = vmatpush1.msra.mxu0 0.0
    %3529 = vmatprep.subr.mxu0 0.0
    %3530 = vmatpush1.msra.mxu0 0.0
    %3531 = vmatprep.subr.mxu0 0.0
    %3532 = vmatpush1.msra.mxu0 0.0
    %3533 = vmatprep.subr.mxu0 0.0
    %3534 = vmatpush1.msra.mxu0 0.0
    %3535 = vmatprep.subr.mxu0 0.0
    %3536 = vmatpush1.msra.mxu0 0.0
    %3537 = vmatprep.mubr.f32.mxu0 0.0
    %3538 = vmatmul.mubr.f32.gmra.mrb[0].mxu0 %v3468
    %v3539 = vpop.f32.mrb[0].mxu0
    %v3540 = vadd.f32 0.0, %v3539
    %v3541 = vpop.f32.mrb[0].mxu0
    %3542 = vmatprep.mubr.f32.mxu0 0.0
    %3543 = vmatmul.mubr.f32.gmra.mrb[0].mxu0 %v3471
    %v3544 = vpop.f32.mrb[0].mxu0
    %v3545 = vadd.f32 0.0, %v3544
    %v3546 = vpop.f32.mrb[0].mxu0
    %3547 = vdwg.mxu0
    %v3548 = vadd.f32 %v3129, %v3540
    %v3549 = vadd.f32 %v3134, %v3545
    %3550 = vrot.lane.b32.xlu0 %v2309, 104
    %v3551 = vpop.permute.xlu0 %3550
    %3552 = vrot.lane.b32.xlu0 %v2309, 72
    %v3553 = vpop.permute.xlu0 %3552
    %v3554 = vsel %vm302, %v3551, 0
    %v3556 = vsel %vm302, %v3553, 0
    %3558 = vmatprep.subr.mxu0 0.0
    %3559 = vmatpush1.xpose.msra.mxu0 %v3556
    %3560 = vmatprep.subr.mxu0 0.0
    %3561 = vmatpush1.xpose.msra.mxu0 0.0
    %3562 = vmatprep.subr.mxu0 0.0
    %3563 = vmatpush1.xpose.msra.mxu0 0.0
    %3564 = vmatprep.subr.mxu0 0.0
    %3565 = vmatpush1.xpose.msra.mxu0 0.0
    %3566 = vmatprep.subr.mxu0 0.0
    %3567 = vmatpush1.xpose.msra.mxu0 0.0
    %3568 = vmatprep.subr.mxu0 0.0
    %3569 = vmatpush1.xpose.msra.mxu0 0.0
    %3570 = vmatprep.subr.mxu0 0.0
    %3571 = vmatpush1.xpose.msra.mxu0 0.0
    %3572 = vmatprep.subr.mxu0 0.0
    %3573 = vmatpush1.xpose.msra.mxu0 0.0
    %3574 = vmatprep.subr.mxu0 0.0
    %3575 = vmatpush1.xpose.msra.mxu0 0.0
    %3576 = vmatprep.subr.mxu0 0.0
    %3577 = vmatpush1.xpose.msra.mxu0 0.0
    %3578 = vmatprep.subr.mxu0 0.0
    %3579 = vmatpush1.xpose.msra.mxu0 0.0
    %3580 = vmatprep.subr.mxu0 0.0
    %3581 = vmatpush1.xpose.msra.mxu0 0.0
    %3582 = vmatprep.subr.mxu0 0.0
    %3583 = vmatpush1.xpose.msra.mxu0 0.0
    %3584 = vmatprep.subr.mxu0 0.0
    %3585 = vmatpush1.xpose.msra.mxu0 0.0
    %3586 = vmatprep.subr.mxu0 0.0
    %3587 = vmatpush1.xpose.msra.mxu0 0.0
    %3588 = vmatprep.subr.mxu0 0.0
    %3589 = vmatpush1.xpose.msra.mxu0 0.0
    %3590 = vmatprep.subr.mxu0 0.0
    %3591 = vmatpush1.xpose.msra.mxu0 0.0
    %3592 = vmatprep.subr.mxu0 0.0
    %3593 = vmatpush1.xpose.msra.mxu0 0.0
    %3594 = vmatprep.subr.mxu0 0.0
    %3595 = vmatpush1.xpose.msra.mxu0 0.0
    %3596 = vmatprep.subr.mxu0 0.0
    %3597 = vmatpush1.xpose.msra.mxu0 0.0
    %3598 = vmatprep.subr.mxu0 0.0
    %3599 = vmatpush1.xpose.msra.mxu0 0.0
    %3600 = vmatprep.subr.mxu0 0.0
    %3601 = vmatpush1.xpose.msra.mxu0 0.0
    %3602 = vmatprep.subr.mxu0 0.0
    %3603 = vmatpush1.xpose.msra.mxu0 0.0
    %3604 = vmatprep.subr.mxu0 0.0
    %3605 = vmatpush1.xpose.msra.mxu0 0.0
    %3606 = vmatprep.subr.mxu0 0.0
    %3607 = vmatpush1.xpose.msra.mxu0 0.0
    %3608 = vmatprep.subr.mxu0 0.0
    %3609 = vmatpush1.xpose.msra.mxu0 0.0
    %3610 = vmatprep.subr.mxu0 0.0
    %3611 = vmatpush1.xpose.msra.mxu0 0.0
    %3612 = vmatprep.subr.mxu0 0.0
    %3613 = vmatpush1.xpose.msra.mxu0 0.0
    %3614 = vmatprep.subr.mxu0 0.0
    %3615 = vmatpush1.xpose.msra.mxu0 0.0
    %3616 = vmatprep.subr.mxu0 0.0
    %3617 = vmatpush1.xpose.msra.mxu0 0.0
    %3618 = vmatprep.subr.mxu0 0.0
    %3619 = vmatpush1.xpose.msra.mxu0 0.0
    %3620 = vmatprep.subr.mxu0 0.0
    %3621 = vmatpush1.xpose.msra.mxu0 0.0
    %3622 = vmatprep.mubr.f32.mxu0 0.0
    %3623 = vmatmul.mubr.f32.gmra.mrb[0].mxu0 %v3554
    %v3624 = vpop.f32.mrb[0].mxu0
    %v3625 = vadd.f32 %v292, %v3624
    %v3626 = vpop.f32.mrb[0].mxu0
    %3627 = vdwg.mxu0
    %3628 = vrot.lane.b32.xlu0 %v2314, 104
    %v3629 = vpop.permute.xlu0 %3628
    %3630 = vrot.lane.b32.xlu0 %v2314, 72
    %v3631 = vpop.permute.xlu0 %3630
    %v3632 = vsel %vm302, %v3629, 0
    %v3634 = vsel %vm302, %v3631, 0
    %3636 = vmatprep.subr.mxu0 0.0
    %3637 = vmatpush1.xpose.msra.mxu0 %v3634
    %3638 = vmatprep.subr.mxu0 0.0
    %3639 = vmatpush1.xpose.msra.mxu0 0.0
    %3640 = vmatprep.subr.mxu0 0.0
    %3641 = vmatpush1.xpose.msra.mxu0 0.0
    %3642 = vmatprep.subr.mxu0 0.0
    %3643 = vmatpush1.xpose.msra.mxu0 0.0
    %3644 = vmatprep.subr.mxu0 0.0
    %3645 = vmatpush1.xpose.msra.mxu0 0.0
    %3646 = vmatprep.subr.mxu0 0.0
    %3647 = vmatpush1.xpose.msra.mxu0 0.0
    %3648 = vmatprep.subr.mxu0 0.0
    %3649 = vmatpush1.xpose.msra.mxu0 0.0
    %3650 = vmatprep.subr.mxu0 0.0
    %3651 = vmatpush1.xpose.msra.mxu0 0.0
    %3652 = vmatprep.subr.mxu0 0.0
    %3653 = vmatpush1.xpose.msra.mxu0 0.0
    %3654 = vmatprep.subr.mxu0 0.0
    %3655 = vmatpush1.xpose.msra.mxu0 0.0
    %3656 = vmatprep.subr.mxu0 0.0
    %3657 = vmatpush1.xpose.msra.mxu0 0.0
    %3658 = vmatprep.subr.mxu0 0.0
    %3659 = vmatpush1.xpose.msra.mxu0 0.0
    %3660 = vmatprep.subr.mxu0 0.0
    %3661 = vmatpush1.xpose.msra.mxu0 0.0
    %3662 = vmatprep.subr.mxu0 0.0
    %3663 = vmatpush1.xpose.msra.mxu0 0.0
    %3664 = vmatprep.subr.mxu0 0.0
    %3665 = vmatpush1.xpose.msra.mxu0 0.0
    %3666 = vmatprep.subr.mxu0 0.0
    %3667 = vmatpush1.xpose.msra.mxu0 0.0
    %3668 = vmatprep.subr.mxu0 0.0
    %3669 = vmatpush1.xpose.msra.mxu0 0.0
    %3670 = vmatprep.subr.mxu0 0.0
    %3671 = vmatpush1.xpose.msra.mxu0 0.0
    %3672 = vmatprep.subr.mxu0 0.0
    %3673 = vmatpush1.xpose.msra.mxu0 0.0
    %3674 = vmatprep.subr.mxu0 0.0
    %3675 = vmatpush1.xpose.msra.mxu0 0.0
    %3676 = vmatprep.subr.mxu0 0.0
    %3677 = vmatpush1.xpose.msra.mxu0 0.0
    %3678 = vmatprep.subr.mxu0 0.0
    %3679 = vmatpush1.xpose.msra.mxu0 0.0
    %3680 = vmatprep.subr.mxu0 0.0
    %3681 = vmatpush1.xpose.msra.mxu0 0.0
    %3682 = vmatprep.subr.mxu0 0.0
    %3683 = vmatpush1.xpose.msra.mxu0 0.0
    %3684 = vmatprep.subr.mxu0 0.0
    %3685 = vmatpush1.xpose.msra.mxu0 0.0
    %3686 = vmatprep.subr.mxu0 0.0
    %3687 = vmatpush1.xpose.msra.mxu0 0.0
    %3688 = vmatprep.subr.mxu0 0.0
    %3689 = vmatpush1.xpose.msra.mxu0 0.0
    %3690 = vmatprep.subr.mxu0 0.0
    %3691 = vmatpush1.xpose.msra.mxu0 0.0
    %3692 = vmatprep.subr.mxu0 0.0
    %3693 = vmatpush1.xpose.msra.mxu0 0.0
    %3694 = vmatprep.subr.mxu0 0.0
    %3695 = vmatpush1.xpose.msra.mxu0 0.0
    %3696 = vmatprep.subr.mxu0 0.0
    %3697 = vmatpush1.xpose.msra.mxu0 0.0
    %3698 = vmatprep.subr.mxu0 0.0
    %3699 = vmatpush1.xpose.msra.mxu0 0.0
    %3700 = vmatprep.mubr.f32.mxu0 0.0
    %3701 = vmatmul.mubr.f32.gmra.mrb[0].mxu0 %v3632
    %v3702 = vpop.f32.mrb[0].mxu0
    %v3703 = vadd.f32 %v296, %v3702
    %v3704 = vpop.f32.mrb[0].mxu0
    %3705 = vdwg.mxu0
    %v3706 = vsel %vm302, %v3625, -inf
    %3707 = vmax.xlane.f32.xlu0 %v3706
    %v3708 = vpop.xlane.xlu0 %3707
    %v3709 = vsel %vm302, %v3703, -inf
    %3710 = vmax.xlane.f32.xlu0 %v3709
    %v3711 = vpop.xlane.xlu0 %3710
    %v3712 = vsub.f32 %v3625, %v3708
    %v3713 = vsub.f32 %v3703, %v3711
    %v3714 = vmul.f32 %v3712, 1.442695
    %v3715 = vpow.pop %v3714
    %v3716 = vmul.f32 %v3713, 1.442695
    %v3717 = vpow.pop %v3716
    %v3718 = vsel %vm302, %v3715, 0.0
    %3719 = vadd.xlane.f32.xlu0 %v3718
    %v3720 = vpop.xlane.xlu0 %3719
    %v3721 = vsel %vm302, %v3717, 0.0
    %3722 = vadd.xlane.f32.xlu0 %v3721
    %v3723 = vpop.xlane.xlu0 %3722
    %v3724 = vrcp.pop %v3720
    %v3725 = vrcp.pop %v3723
    %v3726 = vmul.f32 %v3715, %v3724
    %v3727 = vmul.f32 %v3717, %v3725
    %3728 = vrot.lane.b32.xlu0 %v2309, 40
    %v3729 = vpop.permute.xlu0 %3728
    %v3732 = vsel %vm302, %v3726, 0
    %3734 = vmatprep.subr.mxu0 0.0
    %3735 = vmatpush1.msra.mxu0 %v3729
    %3736 = vmatprep.subr.mxu0 0.0
    %3737 = vmatpush1.msra.mxu0 0.0
    %3738 = vmatprep.subr.mxu0 0.0
    %3739 = vmatpush1.msra.mxu0 0.0
    %3740 = vmatprep.subr.mxu0 0.0
    %3741 = vmatpush1.msra.mxu0 0.0
    %3742 = vmatprep.subr.mxu0 0.0
    %3743 = vmatpush1.msra.mxu0 0.0
    %3744 = vmatprep.subr.mxu0 0.0
    %3745 = vmatpush1.msra.mxu0 0.0
    %3746 = vmatprep.subr.mxu0 0.0
    %3747 = vmatpush1.msra.mxu0 0.0
    %3748 = vmatprep.subr.mxu0 0.0
    %3749 = vmatpush1.msra.mxu0 0.0
    %3750 = vmatprep.subr.mxu0 0.0
    %3751 = vmatpush1.msra.mxu0 0.0
    %3752 = vmatprep.subr.mxu0 0.0
    %3753 = vmatpush1.msra.mxu0 0.0
    %3754 = vmatprep.subr.mxu0 0.0
    %3755 = vmatpush1.msra.mxu0 0.0
    %3756 = vmatprep.subr.mxu0 0.0
    %3757 = vmatpush1.msra.mxu0 0.0
    %3758 = vmatprep.subr.mxu0 0.0
    %3759 = vmatpush1.msra.mxu0 0.0
    %3760 = vmatprep.subr.mxu0 0.0
    %3761 = vmatpush1.msra.mxu0 0.0
    %3762 = vmatprep.subr.mxu0 0.0
    %3763 = vmatpush1.msra.mxu0 0.0
    %3764 = vmatprep.subr.mxu0 0.0
    %3765 = vmatpush1.msra.mxu0 0.0
    %3766 = vmatprep.subr.mxu0 0.0
    %3767 = vmatpush1.msra.mxu0 0.0
    %3768 = vmatprep.subr.mxu0 0.0
    %3769 = vmatpush1.msra.mxu0 0.0
    %3770 = vmatprep.subr.mxu0 0.0
    %3771 = vmatpush1.msra.mxu0 0.0
    %3772 = vmatprep.subr.mxu0 0.0
    %3773 = vmatpush1.msra.mxu0 0.0
    %3774 = vmatprep.subr.mxu0 0.0
    %3775 = vmatpush1.msra.mxu0 0.0
    %3776 = vmatprep.subr.mxu0 0.0
    %3777 = vmatpush1.msra.mxu0 0.0
    %3778 = vmatprep.subr.mxu0 0.0
    %3779 = vmatpush1.msra.mxu0 0.0
    %3780 = vmatprep.subr.mxu0 0.0
    %3781 = vmatpush1.msra.mxu0 0.0
    %3782 = vmatprep.subr.mxu0 0.0
    %3783 = vmatpush1.msra.mxu0 0.0
    %3784 = vmatprep.subr.mxu0 0.0
    %3785 = vmatpush1.msra.mxu0 0.0
    %3786 = vmatprep.subr.mxu0 0.0
    %3787 = vmatpush1.msra.mxu0 0.0
    %3788 = vmatprep.subr.mxu0 0.0
    %3789 = vmatpush1.msra.mxu0 0.0
    %3790 = vmatprep.subr.mxu0 0.0
    %3791 = vmatpush1.msra.mxu0 0.0
    %3792 = vmatprep.subr.mxu0 0.0
    %3793 = vmatpush1.msra.mxu0 0.0
    %3794 = vmatprep.subr.mxu0 0.0
    %3795 = vmatpush1.msra.mxu0 0.0
    %3796 = vmatprep.subr.mxu0 0.0
    %3797 = vmatpush1.msra.mxu0 0.0
    %3798 = vmatprep.mubr.f32.mxu0 0.0
    %3799 = vmatmul.mubr.f32.gmra.mrb[0].mxu0 %v3732
    %v3800 = vpop.f32.mrb[0].mxu0
    %v3801 = vadd.f32 0.0, %v3800
    %v3802 = vpop.f32.mrb[0].mxu0
    %3803 = vdwg.mxu0
    %3804 = vrot.lane.b32.xlu0 %v2314, 40
    %v3805 = vpop.permute.xlu0 %3804
    %v3808 = vsel %vm302, %v3727, 0
    %3810 = vmatprep.subr.mxu0 0.0
    %3811 = vmatpush1.msra.mxu0 %v3805
    %3812 = vmatprep.subr.mxu0 0.0
    %3813 = vmatpush1.msra.mxu0 0.0
    %3814 = vmatprep.subr.mxu0 0.0
    %3815 = vmatpush1.msra.mxu0 0.0
    %3816 = vmatprep.subr.mxu0 0.0
    %3817 = vmatpush1.msra.mxu0 0.0
    %3818 = vmatprep.subr.mxu0 0.0
    %3819 = vmatpush1.msra.mxu0 0.0
    %3820 = vmatprep.subr.mxu0 0.0
    %3821 = vmatpush1.msra.mxu0 0.0
    %3822 = vmatprep.subr.mxu0 0.0
    %3823 = vmatpush1.msra.mxu0 0.0
    %3824 = vmatprep.subr.mxu0 0.0
    %3825 = vmatpush1.msra.mxu0 0.0
    %3826 = vmatprep.subr.mxu0 0.0
    %3827 = vmatpush1.msra.mxu0 0.0
    %3828 = vmatprep.subr.mxu0 0.0
    %3829 = vmatpush1.msra.mxu0 0.0
    %3830 = vmatprep.subr.mxu0 0.0
    %3831 = vmatpush1.msra.mxu0 0.0
    %3832 = vmatprep.subr.mxu0 0.0
    %3833 = vmatpush1.msra.mxu0 0.0
    %3834 = vmatprep.subr.mxu0 0.0
    %3835 = vmatpush1.msra.mxu0 0.0
    %3836 = vmatprep.subr.mxu0 0.0
    %3837 = vmatpush1.msra.mxu0 0.0
    %3838 = vmatprep.subr.mxu0 0.0
    %3839 = vmatpush1.msra.mxu0 0.0
    %3840 = vmatprep.subr.mxu0 0.0
    %3841 = vmatpush1.msra.mxu0 0.0
    %3842 = vmatprep.subr.mxu0 0.0
    %3843 = vmatpush1.msra.mxu0 0.0
    %3844 = vmatprep.subr.mxu0 0.0
    %3845 = vmatpush1.msra.mxu0 0.0
    %3846 = vmatprep.subr.mxu0 0.0
    %3847 = vmatpush1.msra.mxu0 0.0
    %3848 = vmatprep.subr.mxu0 0.0
    %3849 = vmatpush1.msra.mxu0 0.0
    %3850 = vmatprep.subr.mxu0 0.0
    %3851 = vmatpush1.msra.mxu0 0.0
    %3852 = vmatprep.subr.mxu0 0.0
    %3853 = vmatpush1.msra.mxu0 0.0
    %3854 = vmatprep.subr.mxu0 0.0
    %3855 = vmatpush1.msra.mxu0 0.0
    %3856 = vmatprep.subr.mxu0 0.0
    %3857 = vmatpush1.msra.mxu0 0.0
    %3858 = vmatprep.subr.mxu0 0.0
    %3859 = vmatpush1.msra.mxu0 0.0
    %3860 = vmatprep.subr.mxu0 0.0
    %3861 = vmatpush1.msra.mxu0 0.0
    %3862 = vmatprep.subr.mxu0 0.0
    %3863 = vmatpush1.msra.mxu0 0.0
    %3864 = vmatprep.subr.mxu0 0.0
    %3865 = vmatpush1.msra.mxu0 0.0
    %3866 = vmatprep.subr.mxu0 0.0
    %3867 = vmatpush1.msra.mxu0 0.0
    %3868 = vmatprep.subr.mxu0 0.0
    %3869 = vmatpush1.msra.mxu0 0.0
    %3870 = vmatprep.subr.mxu0 0.0
    %3871 = vmatpush1.msra.mxu0 0.0
    %3872 = vmatprep.subr.mxu0 0.0
    %3873 = vmatpush1.msra.mxu0 0.0
    %3874 = vmatprep.mubr.f32.mxu0 0.0
    %3875 = vmatmul.mubr.f32.gmra.mrb[0].mxu0 %v3808
    %v3876 = vpop.f32.mrb[0].mxu0
    %v3877 = vadd.f32 0.0, %v3876
    %v3878 = vpop.f32.mrb[0].mxu0
    %3879 = vdwg.mxu0
    %v3881 = vsel %vm302, %v3801, 0
    %v3884 = vsel %vm302, %v3877, 0
    %3886 = vmatprep.subr.mxu0 0.0
    %3887 = vmatpush1.msra.mxu0 %v2188
    %3888 = vmatprep.subr.mxu0 0.0
    %3889 = vmatpush1.msra.mxu0 0.0
    %3890 = vmatprep.subr.mxu0 0.0
    %3891 = vmatpush1.msra.mxu0 0.0
    %3892 = vmatprep.subr.mxu0 0.0
    %3893 = vmatpush1.msra.mxu0 0.0
    %3894 = vmatprep.subr.mxu0 0.0
    %3895 = vmatpush1.msra.mxu0 0.0
    %3896 = vmatprep.subr.mxu0 0.0
    %3897 = vmatpush1.msra.mxu0 0.0
    %3898 = vmatprep.subr.mxu0 0.0
    %3899 = vmatpush1.msra.mxu0 0.0
    %3900 = vmatprep.subr.mxu0 0.0
    %3901 = vmatpush1.msra.mxu0 0.0
    %3902 = vmatprep.subr.mxu0 0.0
    %3903 = vmatpush1.msra.mxu0 0.0
    %3904 = vmatprep.subr.mxu0 0.0
    %3905 = vmatpush1.msra.mxu0 0.0
    %3906 = vmatprep.subr.mxu0 0.0
    %3907 = vmatpush1.msra.mxu0 0.0
    %3908 = vmatprep.subr.mxu0 0.0
    %3909 = vmatpush1.msra.mxu0 0.0
    %3910 = vmatprep.subr.mxu0 0.0
    %3911 = vmatpush1.msra.mxu0 0.0
    %3912 = vmatprep.subr.mxu0 0.0
    %3913 = vmatpush1.msra.mxu0 0.0
    %3914 = vmatprep.subr.mxu0 0.0
    %3915 = vmatpush1.msra.mxu0 0.0
    %3916 = vmatprep.subr.mxu0 0.0
    %3917 = vmatpush1.msra.mxu0 0.0
    %3918 = vmatprep.subr.mxu0 0.0
    %3919 = vmatpush1.msra.mxu0 0.0
    %3920 = vmatprep.subr.mxu0 0.0
    %3921 = vmatpush1.msra.mxu0 0.0
    %3922 = vmatprep.subr.mxu0 0.0
    %3923 = vmatpush1.msra.mxu0 0.0
    %3924 = vmatprep.subr.mxu0 0.0
    %3925 = vmatpush1.msra.mxu0 0.0
    %3926 = vmatprep.subr.mxu0 0.0
    %3927 = vmatpush1.msra.mxu0 0.0
    %3928 = vmatprep.subr.mxu0 0.0
    %3929 = vmatpush1.msra.mxu0 0.0
    %3930 = vmatprep.subr.mxu0 0.0
    %3931 = vmatpush1.msra.mxu0 0.0
    %3932 = vmatprep.subr.mxu0 0.0
    %3933 = vmatpush1.msra.mxu0 0.0
    %3934 = vmatprep.subr.mxu0 0.0
    %3935 = vmatpush1.msra.mxu0 0.0
    %3936 = vmatprep.subr.mxu0 0.0
    %3937 = vmatpush1.msra.mxu0 0.0
    %3938 = vmatprep.subr.mxu0 0.0
    %3939 = vmatpush1.msra.mxu0 0.0
    %3940 = vmatprep.subr.mxu0 0.0
    %3941 = vmatpush1.msra.mxu0 0.0
    %3942 = vmatprep.subr.mxu0 0.0
    %3943 = vmatpush1.msra.mxu0 0.0
    %3944 = vmatprep.subr.mxu0 0.0
    %3945 = vmatpush1.msra.mxu0 0.0
    %3946 = vmatprep.subr.mxu0 0.0
    %3947 = vmatpush1.msra.mxu0 0.0
    %3948 = vmatprep.subr.mxu0 0.0
    %3949 = vmatpush1.msra.mxu0 0.0
    %3950 = vmatprep.mubr.f32.mxu0 0.0
    %3951 = vmatmul.mubr.f32.gmra.mrb[0].mxu0 %v3881
    %v3952 = vpop.f32.mrb[0].mxu0
    %v3953 = vadd.f32 0.0, %v3952
    %v3954 = vpop.f32.mrb[0].mxu0
    %3955 = vmatprep.mubr.f32.mxu0 0.0
    %3956 = vmatmul.mubr.f32.gmra.mrb[0].mxu0 %v3884
    %v3957 = vpop.f32.mrb[0].mxu0
    %v3958 = vadd.f32 0.0, %v3957
    %v3959 = vpop.f32.mrb[0].mxu0
    %3960 = vdwg.mxu0
    %v3961 = vadd.f32 %v3548, %v3953
    %v3962 = vadd.f32 %v3549, %v3958
    %v3963 = vadd.f32 %v2180, %v3961
    %v3964 = vadd.f32 %v2181, %v3962
    %v3965 = vlaneseq
    %v3966 = vshrl.u32 %v3965, 7
    %v3967 = vsub.s32 5, %v3966
    %v3968 = vrot.slane %v2183, %v3967
    %v3969 = vadd.f32 %v3963, %v3968
    %v3970 = vadd.f32 %v3964, %v3968
    %v3971 = vsel %vm160, %v3969, 0.0
    %3972 = vadd.xlane.f32.xlu0 %v3971
    %v3973 = vpop.xlane.xlu0 %3972
    %v3974 = vsel %vm160, %v3970, 0.0
    %3975 = vadd.xlane.f32.xlu0 %v3974
    %v3976 = vpop.xlane.xlu0 %3975
    %v3977 = vmul.f32 %v3973, %v167
    %v3978 = vmul.f32 %v3976, %v167
    %v3979 = vsub.f32 %v3969, %v3977
    %v3980 = vsub.f32 %v3970, %v3978
    %v3981 = vmul.f32 %v3979, %v3979
    %v3982 = vmul.f32 %v3980, %v3980
    %v3983 = vsel %vm160, %v3981, 0.0
    %3984 = vadd.xlane.f32.xlu0 %v3983
    %v3985 = vpop.xlane.xlu0 %3984
    %v3986 = vsel %vm160, %v3982, 0.0
    %3987 = vadd.xlane.f32.xlu0 %v3986
    %v3988 = vpop.xlane.xlu0 %3987
    %v3989 = vmul.f32 %v3985, %v167
    %v3990 = vmul.f32 %v3988, %v167
    %v3991 = vadd.f32 %v3989, 1e-05
    %v3992 = vadd.f32 %v3990, 1e-05
    %v3993 = vrsqrt.pop %v3991
    %v3994 = vrsqrt.pop %v3992
    %v3995 = vmul.f32 %v3979, %v3993
    %v3996 = vmul.f32 %v3980, %v3994
    %v3997 = vlaneseq
    %v3998 = vshrl.u32 %v3997, 7
    %v3999 = vsub.s32 2, %v3998
    %v4000 = vrot.slane %v2183, %v3999
    %v4001 = vmul.f32 %v3995, %v4000
    %v4002 = vmul.f32 %v3996, %v4000
    %v4003 = vlaneseq
    %v4004 = vshrl.u32 %v4003, 7
    %v4005 = vsub.s32 3, %v4004
    %v4006 = vrot.slane %v2183, %v4005
    %v4007 = vadd.f32 %v4001, %v4006
    %v4008 = vadd.f32 %v4002, %v4006
    %s4009 = scalar_lea.vmem %s7, 32
    %v4010 = vld [vmem:[%s4009] sm:$0xff]
    %v4011 = vld [vmem:[%s4009 + $0x8] sm:$0xff]
    %v4012 = vld [vmem:[%s4009 + $0x10] sm:$0xff]
    %v4013 = vld [vmem:[%s4009 + $0x18] sm:$0xff]
    %v4014 = vlaneseq
    %v4015 = vshrl.u32 %v4014, 7
    %v4016 = vsub.s32 6, %v4015
    %v4017 = vrot.slane %v2183, %v4016
    %v4019 = vsel %vm160, %v4007, 0
    %v4022 = vsel %vm160, %v4008, 0
    %4024 = vmatprep.subr.mxu0 0.0
    %4025 = vmatpush1.msra.mxu0 %v4010
    %4026 = vmatprep.subr.mxu0 0.0
    %4027 = vmatpush1.msra.mxu0 %v4011
    %4028 = vmatprep.subr.mxu0 0.0
    %4029 = vmatpush1.msra.mxu0 %v4012
    %4030 = vmatprep.subr.mxu0 0.0
    %4031 = vmatpush1.msra.mxu0 %v4013
    %4032 = vmatprep.subr.mxu0 0.0
    %4033 = vmatpush1.msra.mxu0 0.0
    %4034 = vmatprep.subr.mxu0 0.0
    %4035 = vmatpush1.msra.mxu0 0.0
    %4036 = vmatprep.subr.mxu0 0.0
    %4037 = vmatpush1.msra.mxu0 0.0
    %4038 = vmatprep.subr.mxu0 0.0
    %4039 = vmatpush1.msra.mxu0 0.0
    %4040 = vmatprep.subr.mxu0 0.0
    %4041 = vmatpush1.msra.mxu0 0.0
    %4042 = vmatprep.subr.mxu0 0.0
    %4043 = vmatpush1.msra.mxu0 0.0
    %4044 = vmatprep.subr.mxu0 0.0
    %4045 = vmatpush1.msra.mxu0 0.0
    %4046 = vmatprep.subr.mxu0 0.0
    %4047 = vmatpush1.msra.mxu0 0.0
    %4048 = vmatprep.subr.mxu0 0.0
    %4049 = vmatpush1.msra.mxu0 0.0
    %4050 = vmatprep.subr.mxu0 0.0
    %4051 = vmatpush1.msra.mxu0 0.0
    %4052 = vmatprep.subr.mxu0 0.0
    %4053 = vmatpush1.msra.mxu0 0.0
    %4054 = vmatprep.subr.mxu0 0.0
    %4055 = vmatpush1.msra.mxu0 0.0
    %4056 = vmatprep.subr.mxu0 0.0
    %4057 = vmatpush1.msra.mxu0 0.0
    %4058 = vmatprep.subr.mxu0 0.0
    %4059 = vmatpush1.msra.mxu0 0.0
    %4060 = vmatprep.subr.mxu0 0.0
    %4061 = vmatpush1.msra.mxu0 0.0
    %4062 = vmatprep.subr.mxu0 0.0
    %4063 = vmatpush1.msra.mxu0 0.0
    %4064 = vmatprep.subr.mxu0 0.0
    %4065 = vmatpush1.msra.mxu0 0.0
    %4066 = vmatprep.subr.mxu0 0.0
    %4067 = vmatpush1.msra.mxu0 0.0
    %4068 = vmatprep.subr.mxu0 0.0
    %4069 = vmatpush1.msra.mxu0 0.0
    %4070 = vmatprep.subr.mxu0 0.0
    %4071 = vmatpush1.msra.mxu0 0.0
    %4072 = vmatprep.subr.mxu0 0.0
    %4073 = vmatpush1.msra.mxu0 0.0
    %4074 = vmatprep.subr.mxu0 0.0
    %4075 = vmatpush1.msra.mxu0 0.0
    %4076 = vmatprep.subr.mxu0 0.0
    %4077 = vmatpush1.msra.mxu0 0.0
    %4078 = vmatprep.subr.mxu0 0.0
    %4079 = vmatpush1.msra.mxu0 0.0
    %4080 = vmatprep.subr.mxu0 0.0
    %4081 = vmatpush1.msra.mxu0 0.0
    %4082 = vmatprep.subr.mxu0 0.0
    %4083 = vmatpush1.msra.mxu0 0.0
    %4084 = vmatprep.subr.mxu0 0.0
    %4085 = vmatpush1.msra.mxu0 0.0
    %4086 = vmatprep.subr.mxu0 0.0
    %4087 = vmatpush1.msra.mxu0 0.0
    %4088 = vmatprep.mubr.f32.mxu0 0.0
    %4089 = vmatmul.mubr.f32.gmra.mrb[0].mxu0 %v4019
    %v4090 = vpop.f32.mrb[0].mxu0
    %v4091 = vadd.f32 %v4017, %v4090
    %v4092 = vpop.f32.mrb[0].mxu0
    %4093 = vmatprep.mubr.f32.mxu0 0.0
    %4094 = vmatmul.mubr.f32.gmra.mrb[0].mxu0 %v4022
    %v4095 = vpop.f32.mrb[0].mxu0
    %v4096 = vadd.f32 %v4017, %v4095
    %v4097 = vpop.f32.mrb[0].mxu0
    %4098 = vdwg.mxu0
    %v4099 = vmax.f32 %v4091, 0.0
    %v4100 = vmax.f32 %v4096, 0.0
    %s4101 = scalar_lea.vmem %s8, 128
    %v4102 = vld [vmem:[%s4101] sm:$0xff]
    %v4103 = vld [vmem:[%s4101 + $0x8] sm:$0xff]
    %v4104 = vld [vmem:[%s4101 + $0x10] sm:$0xff]
    %v4105 = vld [vmem:[%s4101 + $0x18] sm:$0xff]
    %v4106 = vld [vmem:[%s4101 + $0x20] sm:$0xff]
    %v4107 = vld [vmem:[%s4101 + $0x28] sm:$0xff]
    %v4108 = vld [vmem:[%s4101 + $0x30] sm:$0xff]
    %v4109 = vld [vmem:[%s4101 + $0x38] sm:$0xff]
    %v4110 = vld [vmem:[%s4101 + $0x40] sm:$0xff]
    %v4111 = vld [vmem:[%s4101 + $0x48] sm:$0xff]
    %v4112 = vld [vmem:[%s4101 + $0x50] sm:$0xff]
    %v4113 = vld [vmem:[%s4101 + $0x58] sm:$0xff]
    %v4114 = vld [vmem:[%s4101 + $0x60] sm:$0xff]
    %v4115 = vld [vmem:[%s4101 + $0x68] sm:$0xff]
    %v4116 = vld [vmem:[%s4101 + $0x70] sm:$0xff]
    %v4117 = vld [vmem:[%s4101 + $0x78] sm:$0xff]
    %4118 = vmatprep.subr.mxu0 0.0
    %4119 = vmatpush1.msra.mxu0 %v4102
    %4120 = vmatprep.subr.mxu0 0.0
    %4121 = vmatpush1.msra.mxu0 %v4103
    %4122 = vmatprep.subr.mxu0 0.0
    %4123 = vmatpush1.msra.mxu0 %v4104
    %4124 = vmatprep.subr.mxu0 0.0
    %4125 = vmatpush1.msra.mxu0 %v4105
    %4126 = vmatprep.subr.mxu0 0.0
    %4127 = vmatpush1.msra.mxu0 %v4106
    %4128 = vmatprep.subr.mxu0 0.0
    %4129 = vmatpush1.msra.mxu0 %v4107
    %4130 = vmatprep.subr.mxu0 0.0
    %4131 = vmatpush1.msra.mxu0 %v4108
    %4132 = vmatprep.subr.mxu0 0.0
    %4133 = vmatpush1.msra.mxu0 %v4109
    %4134 = vmatprep.subr.mxu0 0.0
    %4135 = vmatpush1.msra.mxu0 %v4110
    %4136 = vmatprep.subr.mxu0 0.0
    %4137 = vmatpush1.msra.mxu0 %v4111
    %4138 = vmatprep.subr.mxu0 0.0
    %4139 = vmatpush1.msra.mxu0 %v4112
    %4140 = vmatprep.subr.mxu0 0.0
    %4141 = vmatpush1.msra.mxu0 %v4113
    %4142 = vmatprep.subr.mxu0 0.0
    %4143 = vmatpush1.msra.mxu0 %v4114
    %4144 = vmatprep.subr.mxu0 0.0
    %4145 = vmatpush1.msra.mxu0 %v4115
    %4146 = vmatprep.subr.mxu0 0.0
    %4147 = vmatpush1.msra.mxu0 %v4116
    %4148 = vmatprep.subr.mxu0 0.0
    %4149 = vmatpush1.msra.mxu0 %v4117
    %4150 = vmatprep.subr.mxu0 0.0
    %4151 = vmatpush1.msra.mxu0 0.0
    %4152 = vmatprep.subr.mxu0 0.0
    %4153 = vmatpush1.msra.mxu0 0.0
    %4154 = vmatprep.subr.mxu0 0.0
    %4155 = vmatpush1.msra.mxu0 0.0
    %4156 = vmatprep.subr.mxu0 0.0
    %4157 = vmatpush1.msra.mxu0 0.0
    %4158 = vmatprep.subr.mxu0 0.0
    %4159 = vmatpush1.msra.mxu0 0.0
    %4160 = vmatprep.subr.mxu0 0.0
    %4161 = vmatpush1.msra.mxu0 0.0
    %4162 = vmatprep.subr.mxu0 0.0
    %4163 = vmatpush1.msra.mxu0 0.0
    %4164 = vmatprep.subr.mxu0 0.0
    %4165 = vmatpush1.msra.mxu0 0.0
    %4166 = vmatprep.subr.mxu0 0.0
    %4167 = vmatpush1.msra.mxu0 0.0
    %4168 = vmatprep.subr.mxu0 0.0
    %4169 = vmatpush1.msra.mxu0 0.0
    %4170 = vmatprep.subr.mxu0 0.0
    %4171 = vmatpush1.msra.mxu0 0.0
    %4172 = vmatprep.subr.mxu0 0.0
    %4173 = vmatpush1.msra.mxu0 0.0
    %4174 = vmatprep.subr.mxu0 0.0
    %4175 = vmatpush1.msra.mxu0 0.0
    %4176 = vmatprep.subr.mxu0 0.0
    %4177 = vmatpush1.msra.mxu0 0.0
    %4178 = vmatprep.subr.mxu0 0.0
    %4179 = vmatpush1.msra.mxu0 0.0
    %4180 = vmatprep.subr.mxu0 0.0
    %4181 = vmatpush1.msra.mxu0 0.0
    %4182 = vmatprep.mubr.f32.mxu0 0.0
    %4183 = vmatmul.mubr.f32.gmra.mrb[0].mxu0 %v4099
    %v4184 = vpop.f32.mrb[0].mxu0
    %v4185 = vadd.f32 0.0, %v4184
    %v4186 = vpop.f32.mrb[0].mxu0
    %4187 = vmatprep.mubr.f32.mxu0 0.0
    %4188 = vmatmul.mubr.f32.gmra.mrb[0].mxu0 %v4100
    %v4189 = vpop.f32.mrb[0].mxu0
    %v4190 = vadd.f32 0.0, %v4189
    %v4191 = vpop.f32.mrb[0].mxu0
    %4192 = vdwg.mxu0
    %v4193 = vadd.f32 %v3969, %v4185
    %v4194 = vadd.f32 %v3970, %v4190
    %v4195 = vlaneseq
    %v4196 = vshrl.u32 %v4195, 7
    %v4197 = vsub.s32 7, %v4196
    %v4198 = vrot.slane %v2183, %v4197
    %v4199 = vadd.f32 %v4193, %v4198
    %v4200 = vadd.f32 %v4194, %v4198
    %v4201 = vld [vmem:[%s11] sm:$0xff]
    %v4202 = vld [vmem:[%s11 + $0x8] sm:$0x1]
    %v4203 = vld [vmem:[%s3] sm:$0x3]
    %vm4204 = vcmask 91136
    %v4205 = vsel %vm4204, %v4203, 0.0
    %v4206 = vrot.slane %v4205, 4
    %v4207 = vadd.f32 %v4205, %v4206
    %v4208 = vrot.slane %v4207, 2
    %v4209 = vadd.f32 %v4207, %v4208
    %v4210 = vrot.slane %v4209, 1
    %v4211 = vadd.f32 %v4209, %v4210
    %v4212 = vrcp.pop 2.0
    %v4213 = vmul.f32 %v4211, %v4212
    %v4214 = vsub.f32 %v4203, %v4213
    %v4215 = vmul.f32 %v4214, %v4214
    %v4216 = vsel %vm4204, %v4215, 0.0
    %v4217 = vrot.slane %v4216, 4
    %v4218 = vadd.f32 %v4216, %v4217
    %v4219 = vrot.slane %v4218, 2
    %v4220 = vadd.f32 %v4218, %v4219
    %v4221 = vrot.slane %v4220, 1
    %v4222 = vadd.f32 %v4220, %v4221
    %v4223 = vmul.f32 %v4222, %v4212
    %v4224 = vadd.f32 %v4223, 1e-05
    %v4225 = vrsqrt.pop %v4224
    %v4226 = vmul.f32 %v4214, %v4225
    %v4227 = vlaneseq
    %v4228 = vshrl.u32 %v4227, 7
    %v4229 = vsub.s32 0, %v4228
    %v4230 = vrot.slane %v4201, %v4229
    %v4231 = vmul.f32 %v4226, %v4230
    %v4232 = vlaneseq
    %v4233 = vshrl.u32 %v4232, 7
    %v4234 = vsub.s32 1, %v4233
    %v4235 = vrot.slane %v4201, %v4234
    %v4236 = vadd.f32 %v4231, %v4235
    %v4237 = vld [vmem:[#allocation2] sm:$0xff]
    %v4238 = vld [vmem:[#allocation2 + $0x8] sm:$0xff]
    %s4239 = scalar_lea.vmem [#allocation2], 64
    %v4240 = vld [vmem:[%s4239] sm:$0xff]
    %v4241 = vld [vmem:[%s4239 + $0x8] sm:$0xff]
    %v4242 = vld [vmem:[%s4239 + $0x10] sm:$0xff]
    %v4243 = vld [vmem:[%s4239 + $0x18] sm:$0xff]
    %v4244 = vld [vmem:[%s4239 + $0x20] sm:$0xff]
    %v4245 = vld [vmem:[%s4239 + $0x28] sm:$0xff]
    %s4246 = scalar_lea.vmem [#allocation2], 128
    %v4247 = vld [vmem:[%s4246] sm:$0xff]
    %v4248 = vld [vmem:[%s4246 + $0x8] sm:$0xff]
    %v4249 = vld [vmem:[%s4246 + $0x10] sm:$0xff]
    %v4250 = vld [vmem:[%s4246 + $0x18] sm:$0xff]
    %s4251 = scalar_lea.vmem [#allocation2], 192
    %v4252 = vld [vmem:[%s4251] sm:$0xff]
    %v4253 = vld [vmem:[%s4251 + $0x8] sm:$0xff]
    %s4254 = scalar_lea.vmem [#allocation2], 256
    %v4255 = vld [vmem:[%s4254] sm:$0xff]
    %v4256 = vld [vmem:[%s4254 + $0x8] sm:$0xff]
    %v4257 = vld [vmem:[%s4254 + $0x10] sm:$0xff]
    %v4258 = vld [vmem:[%s4254 + $0x18] sm:$0xff]
    %v4259 = vld [vmem:[%s4254 + $0x20] sm:$0xff]
    %v4260 = vld [vmem:[%s4254 + $0x28] sm:$0xff]
    %v4261 = vld [vmem:[%s4254 + $0x30] sm:$0xff]
    %v4262 = vld [vmem:[%s4254 + $0x38] sm:$0xff]
    %s4263 = scalar_lea.vmem [#allocation2], 320
    %v4264 = vld [vmem:[%s4263] sm:$0xff]
    %v4265 = vld [vmem:[%s4263 + $0x8] sm:$0xff]
    %v4266 = vlaneseq
    %v4267 = vshrl.u32 %v4266, 7
    %v4268 = vsub.s32 2, %v4267
    %v4269 = vrot.slane %v4201, %v4268
    %vm4270 = vcmask 97280
    %v4272 = vsel %vm4270, %v4236, 0
    %vm4274 = vcmask 1043456
    %v4276 = vsel %vm4274, %v4238, 0
    %4278 = vmatprep.subr.mxu0 0.0
    %4279 = vmatpush1.msra.mxu0 %v4237
    %4280 = vmatprep.subr.mxu0 0.0
    %4281 = vmatpush1.msra.mxu0 %v4276
    %4282 = vmatprep.subr.mxu0 0.0
    %4283 = vmatpush1.msra.mxu0 0.0
    %4284 = vmatprep.subr.mxu0 0.0
    %4285 = vmatpush1.msra.mxu0 0.0
    %4286 = vmatprep.subr.mxu0 0.0
    %4287 = vmatpush1.msra.mxu0 0.0
    %4288 = vmatprep.subr.mxu0 0.0
    %4289 = vmatpush1.msra.mxu0 0.0
    %4290 = vmatprep.subr.mxu0 0.0
    %4291 = vmatpush1.msra.mxu0 0.0
    %4292 = vmatprep.subr.mxu0 0.0
    %4293 = vmatpush1.msra.mxu0 0.0
    %4294 = vmatprep.subr.mxu0 0.0
    %4295 = vmatpush1.msra.mxu0 0.0
    %4296 = vmatprep.subr.mxu0 0.0
    %4297 = vmatpush1.msra.mxu0 0.0
    %4298 = vmatprep.subr.mxu0 0.0
    %4299 = vmatpush1.msra.mxu0 0.0
    %4300 = vmatprep.subr.mxu0 0.0
    %4301 = vmatpush1.msra.mxu0 0.0
    %4302 = vmatprep.subr.mxu0 0.0
    %4303 = vmatpush1.msra.mxu0 0.0
    %4304 = vmatprep.subr.mxu0 0.0
    %4305 = vmatpush1.msra.mxu0 0.0
    %4306 = vmatprep.subr.mxu0 0.0
    %4307 = vmatpush1.msra.mxu0 0.0
    %4308 = vmatprep.subr.mxu0 0.0
    %4309 = vmatpush1.msra.mxu0 0.0
    %4310 = vmatprep.subr.mxu0 0.0
    %4311 = vmatpush1.msra.mxu0 0.0
    %4312 = vmatprep.subr.mxu0 0.0
    %4313 = vmatpush1.msra.mxu0 0.0
    %4314 = vmatprep.subr.mxu0 0.0
    %4315 = vmatpush1.msra.mxu0 0.0
    %4316 = vmatprep.subr.mxu0 0.0
    %4317 = vmatpush1.msra.mxu0 0.0
    %4318 = vmatprep.subr.mxu0 0.0
    %4319 = vmatpush1.msra.mxu0 0.0
    %4320 = vmatprep.subr.mxu0 0.0
    %4321 = vmatpush1.msra.mxu0 0.0
    %4322 = vmatprep.subr.mxu0 0.0
    %4323 = vmatpush1.msra.mxu0 0.0
    %4324 = vmatprep.subr.mxu0 0.0
    %4325 = vmatpush1.msra.mxu0 0.0
    %4326 = vmatprep.subr.mxu0 0.0
    %4327 = vmatpush1.msra.mxu0 0.0
    %4328 = vmatprep.subr.mxu0 0.0
    %4329 = vmatpush1.msra.mxu0 0.0
    %4330 = vmatprep.subr.mxu0 0.0
    %4331 = vmatpush1.msra.mxu0 0.0
    %4332 = vmatprep.subr.mxu0 0.0
    %4333 = vmatpush1.msra.mxu0 0.0
    %4334 = vmatprep.subr.mxu0 0.0
    %4335 = vmatpush1.msra.mxu0 0.0
    %4336 = vmatprep.subr.mxu0 0.0
    %4337 = vmatpush1.msra.mxu0 0.0
    %4338 = vmatprep.subr.mxu0 0.0
    %4339 = vmatpush1.msra.mxu0 0.0
    %4340 = vmatprep.subr.mxu0 0.0
    %4341 = vmatpush1.msra.mxu0 0.0
    %4342 = vmatprep.mubr.f32.mxu0 0.0
    %4343 = vmatmul.mubr.f32.gmra.mrb[0].mxu0 %v4272
    %v4344 = vpop.f32.mrb[0].mxu0
    %v4345 = vadd.f32 %v4269, %v4344
    %v4346 = vpop.f32.mrb[0].mxu0
    %4347 = vdwg.mxu0
    %v4348 = vmax.f32 %v4345, 0.0
    %v4349 = vlaneseq
    %v4350 = vshrl.u32 %v4349, 7
    %v4351 = vsub.s32 3, %v4350
    %v4352 = vrot.slane %v4201, %v4351
    %vm4353 = vcmask 392192
    %v4355 = vsel %vm4353, %v4348, 0
    %4357 = vmatprep.subr.mxu0 0.0
    %4358 = vmatpush1.msra.mxu0 %v4240
    %4359 = vmatprep.subr.mxu0 0.0
    %4360 = vmatpush1.msra.mxu0 %v4241
    %4361 = vmatprep.subr.mxu0 0.0
    %4362 = vmatpush1.msra.mxu0 %v4242
    %4363 = vmatprep.subr.mxu0 0.0
    %4364 = vmatpush1.msra.mxu0 %v4243
    %4365 = vmatprep.subr.mxu0 0.0
    %4366 = vmatpush1.msra.mxu0 %v4244
    %4367 = vmatprep.subr.mxu0 0.0
    %4368 = vmatpush1.msra.mxu0 %v4245
    %4369 = vmatprep.subr.mxu0 0.0
    %4370 = vmatpush1.msra.mxu0 0.0
    %4371 = vmatprep.subr.mxu0 0.0
    %4372 = vmatpush1.msra.mxu0 0.0
    %4373 = vmatprep.subr.mxu0 0.0
    %4374 = vmatpush1.msra.mxu0 0.0
    %4375 = vmatprep.subr.mxu0 0.0
    %4376 = vmatpush1.msra.mxu0 0.0
    %4377 = vmatprep.subr.mxu0 0.0
    %4378 = vmatpush1.msra.mxu0 0.0
    %4379 = vmatprep.subr.mxu0 0.0
    %4380 = vmatpush1.msra.mxu0 0.0
    %4381 = vmatprep.subr.mxu0 0.0
    %4382 = vmatpush1.msra.mxu0 0.0
    %4383 = vmatprep.subr.mxu0 0.0
    %4384 = vmatpush1.msra.mxu0 0.0
    %4385 = vmatprep.subr.mxu0 0.0
    %4386 = vmatpush1.msra.mxu0 0.0
    %4387 = vmatprep.subr.mxu0 0.0
    %4388 = vmatpush1.msra.mxu0 0.0
    %4389 = vmatprep.subr.mxu0 0.0
    %4390 = vmatpush1.msra.mxu0 0.0
    %4391 = vmatprep.subr.mxu0 0.0
    %4392 = vmatpush1.msra.mxu0 0.0
    %4393 = vmatprep.subr.mxu0 0.0
    %4394 = vmatpush1.msra.mxu0 0.0
    %4395 = vmatprep.subr.mxu0 0.0
    %4396 = vmatpush1.msra.mxu0 0.0
    %4397 = vmatprep.subr.mxu0 0.0
    %4398 = vmatpush1.msra.mxu0 0.0
    %4399 = vmatprep.subr.mxu0 0.0
    %4400 = vmatpush1.msra.mxu0 0.0
    %4401 = vmatprep.subr.mxu0 0.0
    %4402 = vmatpush1.msra.mxu0 0.0
    %4403 = vmatprep.subr.mxu0 0.0
    %4404 = vmatpush1.msra.mxu0 0.0
    %4405 = vmatprep.subr.mxu0 0.0
    %4406 = vmatpush1.msra.mxu0 0.0
    %4407 = vmatprep.subr.mxu0 0.0
    %4408 = vmatpush1.msra.mxu0 0.0
    %4409 = vmatprep.subr.mxu0 0.0
    %4410 = vmatpush1.msra.mxu0 0.0
    %4411 = vmatprep.subr.mxu0 0.0
    %4412 = vmatpush1.msra.mxu0 0.0
    %4413 = vmatprep.subr.mxu0 0.0
    %4414 = vmatpush1.msra.mxu0 0.0
    %4415 = vmatprep.subr.mxu0 0.0
    %4416 = vmatpush1.msra.mxu0 0.0
    %4417 = vmatprep.subr.mxu0 0.0
    %4418 = vmatpush1.msra.mxu0 0.0
    %4419 = vmatprep.subr.mxu0 0.0
    %4420 = vmatpush1.msra.mxu0 0.0
    %4421 = vmatprep.mubr.f32.mxu0 0.0
    %4422 = vmatmul.mubr.f32.gmra.mrb[0].mxu0 %v4355
    %v4423 = vpop.f32.mrb[0].mxu0
    %v4424 = vadd.f32 %v4352, %v4423
    %v4425 = vpop.f32.mrb[0].mxu0
    %4426 = vdwg.mxu0
    %v4427 = vmax.f32 %v4424, 0.0
    %v4430 = vrot.slane %v4200, 7
    %vm4431 = vcmask 1041409
    %v4432 = vsel %vm4431, %v4430, %v4199
    %vm4434 = vcmask 254976
    %v4435 = vsel %vm4434, %v4432, 0.0
    %4436 = vadd.xlane.f32.xlu0 %v4435
    %v4437 = vpop.xlane.xlu0 %4436
    %v4438 = vmul.f32 %v4437, %v167
    %v4440 = vrot.slane %v4438, 1
    %v4443 = vsub.f32 %v4199, %v4438
    %v4444 = vsub.f32 %v4200, %v4440
    %v4445 = vmul.f32 %v4443, %v4443
    %v4446 = vmul.f32 %v4444, %v4444
    %v4449 = vrot.slane %v4446, 7
    %v4450 = vsel %vm4431, %v4449, %v4445
    %v4452 = vsel %vm4434, %v4450, 0.0
    %4453 = vadd.xlane.f32.xlu0 %v4452
    %v4454 = vpop.xlane.xlu0 %4453
    %v4455 = vmul.f32 %v4454, %v167
    %v4456 = vadd.f32 %v4455, 1e-05
    %v4457 = vrsqrt.pop %v4456
    %v4459 = vrot.slane %v4457, 1
    %v4462 = vmul.f32 %v4443, %v4457
    %v4463 = vmul.f32 %v4444, %v4459
    %v4464 = vlaneseq
    %v4465 = vshrl.u32 %v4464, 7
    %v4466 = vsub.s32 4, %v4465
    %v4467 = vrot.slane %v4201, %v4466
    %v4468 = vmul.f32 %v4462, %v4467
    %v4469 = vmul.f32 %v4463, %v4467
    %v4470 = vlaneseq
    %v4471 = vshrl.u32 %v4470, 7
    %v4472 = vsub.s32 5, %v4471
    %v4473 = vrot.slane %v4201, %v4472
    %v4474 = vadd.f32 %v4468, %v4473
    %v4475 = vadd.f32 %v4469, %v4473
    %v4477 = vsel %vm4270, %v4427, 0
    %v4480 = vsel %vm4274, %v4253, 0
    %4482 = vmatprep.subr.mxu0 0.0
    %4483 = vmatpush1.msra.mxu0 %v4252
    %4484 = vmatprep.subr.mxu0 0.0
    %4485 = vmatpush1.msra.mxu0 %v4480
    %4486 = vmatprep.subr.mxu0 0.0
    %4487 = vmatpush1.msra.mxu0 0.0
    %4488 = vmatprep.subr.mxu0 0.0
    %4489 = vmatpush1.msra.mxu0 0.0
    %4490 = vmatprep.subr.mxu0 0.0
    %4491 = vmatpush1.msra.mxu0 0.0
    %4492 = vmatprep.subr.mxu0 0.0
    %4493 = vmatpush1.msra.mxu0 0.0
    %4494 = vmatprep.subr.mxu0 0.0
    %4495 = vmatpush1.msra.mxu0 0.0
    %4496 = vmatprep.subr.mxu0 0.0
    %4497 = vmatpush1.msra.mxu0 0.0
    %4498 = vmatprep.subr.mxu0 0.0
    %4499 = vmatpush1.msra.mxu0 0.0
    %4500 = vmatprep.subr.mxu0 0.0
    %4501 = vmatpush1.msra.mxu0 0.0
    %4502 = vmatprep.subr.mxu0 0.0
    %4503 = vmatpush1.msra.mxu0 0.0
    %4504 = vmatprep.subr.mxu0 0.0
    %4505 = vmatpush1.msra.mxu0 0.0
    %4506 = vmatprep.subr.mxu0 0.0
    %4507 = vmatpush1.msra.mxu0 0.0
    %4508 = vmatprep.subr.mxu0 0.0
    %4509 = vmatpush1.msra.mxu0 0.0
    %4510 = vmatprep.subr.mxu0 0.0
    %4511 = vmatpush1.msra.mxu0 0.0
    %4512 = vmatprep.subr.mxu0 0.0
    %4513 = vmatpush1.msra.mxu0 0.0
    %4514 = vmatprep.subr.mxu0 0.0
    %4515 = vmatpush1.msra.mxu0 0.0
    %4516 = vmatprep.subr.mxu0 0.0
    %4517 = vmatpush1.msra.mxu0 0.0
    %4518 = vmatprep.subr.mxu0 0.0
    %4519 = vmatpush1.msra.mxu0 0.0
    %4520 = vmatprep.subr.mxu0 0.0
    %4521 = vmatpush1.msra.mxu0 0.0
    %4522 = vmatprep.subr.mxu0 0.0
    %4523 = vmatpush1.msra.mxu0 0.0
    %4524 = vmatprep.subr.mxu0 0.0
    %4525 = vmatpush1.msra.mxu0 0.0
    %4526 = vmatprep.subr.mxu0 0.0
    %4527 = vmatpush1.msra.mxu0 0.0
    %4528 = vmatprep.subr.mxu0 0.0
    %4529 = vmatpush1.msra.mxu0 0.0
    %4530 = vmatprep.subr.mxu0 0.0
    %4531 = vmatpush1.msra.mxu0 0.0
    %4532 = vmatprep.subr.mxu0 0.0
    %4533 = vmatpush1.msra.mxu0 0.0
    %4534 = vmatprep.subr.mxu0 0.0
    %4535 = vmatpush1.msra.mxu0 0.0
    %4536 = vmatprep.subr.mxu0 0.0
    %4537 = vmatpush1.msra.mxu0 0.0
    %4538 = vmatprep.subr.mxu0 0.0
    %4539 = vmatpush1.msra.mxu0 0.0
    %4540 = vmatprep.subr.mxu0 0.0
    %4541 = vmatpush1.msra.mxu0 0.0
    %4542 = vmatprep.subr.mxu0 0.0
    %4543 = vmatpush1.msra.mxu0 0.0
    %4544 = vmatprep.subr.mxu0 0.0
    %4545 = vmatpush1.msra.mxu0 0.0
    %4546 = vmatprep.mubr.f32.mxu0 0.0
    %4547 = vmatmul.mubr.f32.gmra.mrb[0].mxu0 %v4477
    %v4548 = vpop.f32.mrb[0].mxu0
    %v4549 = vadd.f32 0.0, %v4548
    %v4550 = vpop.f32.mrb[0].mxu0
    %4551 = vdwg.mxu0
    %v4554 = vrot.slane %v4475, 7
    %v4555 = vsel %vm4431, %v4554, %v4474
    %v4556 = vsel %vm160, %v4555, 0
    %4558 = vmatprep.subr.mxu0 0.0
    %4559 = vmatpush1.msra.mxu0 %v4247
    %4560 = vmatprep.subr.mxu0 0.0
    %4561 = vmatpush1.msra.mxu0 %v4248
    %4562 = vmatprep.subr.mxu0 0.0
    %4563 = vmatpush1.msra.mxu0 %v4249
    %4564 = vmatprep.subr.mxu0 0.0
    %4565 = vmatpush1.msra.mxu0 %v4250
    %4566 = vmatprep.subr.mxu0 0.0
    %4567 = vmatpush1.msra.mxu0 0.0
    %4568 = vmatprep.subr.mxu0 0.0
    %4569 = vmatpush1.msra.mxu0 0.0
    %4570 = vmatprep.subr.mxu0 0.0
    %4571 = vmatpush1.msra.mxu0 0.0
    %4572 = vmatprep.subr.mxu0 0.0
    %4573 = vmatpush1.msra.mxu0 0.0
    %4574 = vmatprep.subr.mxu0 0.0
    %4575 = vmatpush1.msra.mxu0 0.0
    %4576 = vmatprep.subr.mxu0 0.0
    %4577 = vmatpush1.msra.mxu0 0.0
    %4578 = vmatprep.subr.mxu0 0.0
    %4579 = vmatpush1.msra.mxu0 0.0
    %4580 = vmatprep.subr.mxu0 0.0
    %4581 = vmatpush1.msra.mxu0 0.0
    %4582 = vmatprep.subr.mxu0 0.0
    %4583 = vmatpush1.msra.mxu0 0.0
    %4584 = vmatprep.subr.mxu0 0.0
    %4585 = vmatpush1.msra.mxu0 0.0
    %4586 = vmatprep.subr.mxu0 0.0
    %4587 = vmatpush1.msra.mxu0 0.0
    %4588 = vmatprep.subr.mxu0 0.0
    %4589 = vmatpush1.msra.mxu0 0.0
    %4590 = vmatprep.subr.mxu0 0.0
    %4591 = vmatpush1.msra.mxu0 0.0
    %4592 = vmatprep.subr.mxu0 0.0
    %4593 = vmatpush1.msra.mxu0 0.0
    %4594 = vmatprep.subr.mxu0 0.0
    %4595 = vmatpush1.msra.mxu0 0.0
    %4596 = vmatprep.subr.mxu0 0.0
    %4597 = vmatpush1.msra.mxu0 0.0
    %4598 = vmatprep.subr.mxu0 0.0
    %4599 = vmatpush1.msra.mxu0 0.0
    %4600 = vmatprep.subr.mxu0 0.0
    %4601 = vmatpush1.msra.mxu0 0.0
    %4602 = vmatprep.subr.mxu0 0.0
    %4603 = vmatpush1.msra.mxu0 0.0
    %4604 = vmatprep.subr.mxu0 0.0
    %4605 = vmatpush1.msra.mxu0 0.0
    %4606 = vmatprep.subr.mxu0 0.0
    %4607 = vmatpush1.msra.mxu0 0.0
    %4608 = vmatprep.subr.mxu0 0.0
    %4609 = vmatpush1.msra.mxu0 0.0
    %4610 = vmatprep.subr.mxu0 0.0
    %4611 = vmatpush1.msra.mxu0 0.0
    %4612 = vmatprep.subr.mxu0 0.0
    %4613 = vmatpush1.msra.mxu0 0.0
    %4614 = vmatprep.subr.mxu0 0.0
    %4615 = vmatpush1.msra.mxu0 0.0
    %4616 = vmatprep.subr.mxu0 0.0
    %4617 = vmatpush1.msra.mxu0 0.0
    %4618 = vmatprep.subr.mxu0 0.0
    %4619 = vmatpush1.msra.mxu0 0.0
    %4620 = vmatprep.subr.mxu0 0.0
    %4621 = vmatpush1.msra.mxu0 0.0
    %4622 = vmatprep.mubr.f32.mxu0 0.0
    %4623 = vmatmul.mubr.f32.gmra.mrb[0].mxu0 %v4556
    %v4624 = vpop.f32.mrb[0].mxu0
    %v4625 = vadd.f32 %v4549, %v4624
    %v4626 = vpop.f32.mrb[0].mxu0
    %4627 = vdwg.mxu0
    %v4628 = vlaneseq
    %v4629 = vshrl.u32 %v4628, 7
    %v4630 = vsub.s32 6, %v4629
    %v4631 = vrot.slane %v4201, %v4630
    %v4632 = vadd.f32 %v4625, %v4631
    %v4633 = vmax.f32 %v4632, 0.0
    %v4634 = vlaneseq
    %v4635 = vshrl.u32 %v4634, 7
    %v4636 = vsub.s32 7, %v4635
    %v4637 = vrot.slane %v4201, %v4636
    %vm4638 = vcmask 523264
    %v4640 = vsel %vm4638, %v4633, 0
    %4642 = vmatprep.subr.mxu0 0.0
    %4643 = vmatpush1.msra.mxu0 %v4255
    %4644 = vmatprep.subr.mxu0 0.0
    %4645 = vmatpush1.msra.mxu0 %v4256
    %4646 = vmatprep.subr.mxu0 0.0
    %4647 = vmatpush1.msra.mxu0 %v4257
    %4648 = vmatprep.subr.mxu0 0.0
    %4649 = vmatpush1.msra.mxu0 %v4258
    %4650 = vmatprep.subr.mxu0 0.0
    %4651 = vmatpush1.msra.mxu0 %v4259
    %4652 = vmatprep.subr.mxu0 0.0
    %4653 = vmatpush1.msra.mxu0 %v4260
    %4654 = vmatprep.subr.mxu0 0.0
    %4655 = vmatpush1.msra.mxu0 %v4261
    %4656 = vmatprep.subr.mxu0 0.0
    %4657 = vmatpush1.msra.mxu0 %v4262
    %4658 = vmatprep.subr.mxu0 0.0
    %4659 = vmatpush1.msra.mxu0 0.0
    %4660 = vmatprep.subr.mxu0 0.0
    %4661 = vmatpush1.msra.mxu0 0.0
    %4662 = vmatprep.subr.mxu0 0.0
    %4663 = vmatpush1.msra.mxu0 0.0
    %4664 = vmatprep.subr.mxu0 0.0
    %4665 = vmatpush1.msra.mxu0 0.0
    %4666 = vmatprep.subr.mxu0 0.0
    %4667 = vmatpush1.msra.mxu0 0.0
    %4668 = vmatprep.subr.mxu0 0.0
    %4669 = vmatpush1.msra.mxu0 0.0
    %4670 = vmatprep.subr.mxu0 0.0
    %4671 = vmatpush1.msra.mxu0 0.0
    %4672 = vmatprep.subr.mxu0 0.0
    %4673 = vmatpush1.msra.mxu0 0.0
    %4674 = vmatprep.subr.mxu0 0.0
    %4675 = vmatpush1.msra.mxu0 0.0
    %4676 = vmatprep.subr.mxu0 0.0
    %4677 = vmatpush1.msra.mxu0 0.0
    %4678 = vmatprep.subr.mxu0 0.0
    %4679 = vmatpush1.msra.mxu0 0.0
    %4680 = vmatprep.subr.mxu0 0.0
    %4681 = vmatpush1.msra.mxu0 0.0
    %4682 = vmatprep.subr.mxu0 0.0
    %4683 = vmatpush1.msra.mxu0 0.0
    %4684 = vmatprep.subr.mxu0 0.0
    %4685 = vmatpush1.msra.mxu0 0.0
    %4686 = vmatprep.subr.mxu0 0.0
    %4687 = vmatpush1.msra.mxu0 0.0
    %4688 = vmatprep.subr.mxu0 0.0
    %4689 = vmatpush1.msra.mxu0 0.0
    %4690 = vmatprep.subr.mxu0 0.0
    %4691 = vmatpush1.msra.mxu0 0.0
    %4692 = vmatprep.subr.mxu0 0.0
    %4693 = vmatpush1.msra.mxu0 0.0
    %4694 = vmatprep.subr.mxu0 0.0
    %4695 = vmatpush1.msra.mxu0 0.0
    %4696 = vmatprep.subr.mxu0 0.0
    %4697 = vmatpush1.msra.mxu0 0.0
    %4698 = vmatprep.subr.mxu0 0.0
    %4699 = vmatpush1.msra.mxu0 0.0
    %4700 = vmatprep.subr.mxu0 0.0
    %4701 = vmatpush1.msra.mxu0 0.0
    %4702 = vmatprep.subr.mxu0 0.0
    %4703 = vmatpush1.msra.mxu0 0.0
    %4704 = vmatprep.subr.mxu0 0.0
    %4705 = vmatpush1.msra.mxu0 0.0
    %4706 = vmatprep.mubr.f32.mxu0 0.0
    %4707 = vmatmul.mubr.f32.gmra.mrb[0].mxu0 %v4640
    %v4708 = vpop.f32.mrb[0].mxu0
    %v4709 = vadd.f32 %v4637, %v4708
    %v4710 = vpop.f32.mrb[0].mxu0
    %4711 = vdwg.mxu0
    %v4712 = vmax.f32 %v4709, 0.0
    %v4713 = vlaneseq
    %v4714 = vshrl.u32 %v4713, 7
    %v4715 = vsub.s32 0, %v4714
    %v4716 = vrot.slane %v4202, %v4715
    %vm4717 = vcmask 130048
    %v4719 = vsel %vm4717, %v4712, 0
    %4721 = vmatprep.subr.mxu0 0.0
    %4722 = vmatpush1.msra.mxu0 %v4264
    %4723 = vmatprep.subr.mxu0 0.0
    %4724 = vmatpush1.msra.mxu0 %v4265
    %4725 = vmatprep.subr.mxu0 0.0
    %4726 = vmatpush1.msra.mxu0 0.0
    %4727 = vmatprep.subr.mxu0 0.0
    %4728 = vmatpush1.msra.mxu0 0.0
    %4729 = vmatprep.subr.mxu0 0.0
    %4730 = vmatpush1.msra.mxu0 0.0
    %4731 = vmatprep.subr.mxu0 0.0
    %4732 = vmatpush1.msra.mxu0 0.0
    %4733 = vmatprep.subr.mxu0 0.0
    %4734 = vmatpush1.msra.mxu0 0.0
    %4735 = vmatprep.subr.mxu0 0.0
    %4736 = vmatpush1.msra.mxu0 0.0
    %4737 = vmatprep.subr.mxu0 0.0
    %4738 = vmatpush1.msra.mxu0 0.0
    %4739 = vmatprep.subr.mxu0 0.0
    %4740 = vmatpush1.msra.mxu0 0.0
    %4741 = vmatprep.subr.mxu0 0.0
    %4742 = vmatpush1.msra.mxu0 0.0
    %4743 = vmatprep.subr.mxu0 0.0
    %4744 = vmatpush1.msra.mxu0 0.0
    %4745 = vmatprep.subr.mxu0 0.0
    %4746 = vmatpush1.msra.mxu0 0.0
    %4747 = vmatprep.subr.mxu0 0.0
    %4748 = vmatpush1.msra.mxu0 0.0
    %4749 = vmatprep.subr.mxu0 0.0
    %4750 = vmatpush1.msra.mxu0 0.0
    %4751 = vmatprep.subr.mxu0 0.0
    %4752 = vmatpush1.msra.mxu0 0.0
    %4753 = vmatprep.subr.mxu0 0.0
    %4754 = vmatpush1.msra.mxu0 0.0
    %4755 = vmatprep.subr.mxu0 0.0
    %4756 = vmatpush1.msra.mxu0 0.0
    %4757 = vmatprep.subr.mxu0 0.0
    %4758 = vmatpush1.msra.mxu0 0.0
    %4759 = vmatprep.subr.mxu0 0.0
    %4760 = vmatpush1.msra.mxu0 0.0
    %4761 = vmatprep.subr.mxu0 0.0
    %4762 = vmatpush1.msra.mxu0 0.0
    %4763 = vmatprep.subr.mxu0 0.0
    %4764 = vmatpush1.msra.mxu0 0.0
    %4765 = vmatprep.subr.mxu0 0.0
    %4766 = vmatpush1.msra.mxu0 0.0
    %4767 = vmatprep.subr.mxu0 0.0
    %4768 = vmatpush1.msra.mxu0 0.0
    %4769 = vmatprep.subr.mxu0 0.0
    %4770 = vmatpush1.msra.mxu0 0.0
    %4771 = vmatprep.subr.mxu0 0.0
    %4772 = vmatpush1.msra.mxu0 0.0
    %4773 = vmatprep.subr.mxu0 0.0
    %4774 = vmatpush1.msra.mxu0 0.0
    %4775 = vmatprep.subr.mxu0 0.0
    %4776 = vmatpush1.msra.mxu0 0.0
    %4777 = vmatprep.subr.mxu0 0.0
    %4778 = vmatpush1.msra.mxu0 0.0
    %4779 = vmatprep.subr.mxu0 0.0
    %4780 = vmatpush1.msra.mxu0 0.0
    %4781 = vmatprep.subr.mxu0 0.0
    %4782 = vmatpush1.msra.mxu0 0.0
    %4783 = vmatprep.subr.mxu0 0.0
    %4784 = vmatpush1.msra.mxu0 0.0
    %4785 = vmatprep.mubr.f32.mxu0 0.0
    %4786 = vmatmul.mubr.f32.gmra.mrb[0].mxu0 %v4719
    %v4787 = vpop.f32.mrb[0].mxu0
    %v4788 = vadd.f32 %v4716, %v4787
    %v4789 = vpop.f32.mrb[0].mxu0
    %4790 = vdwg.mxu0
    %vm4791 = vcmask 1024
    %4792 = vst.msk [vmem:[%s12] sm:$0x3] %vm4791, %v4788
    // Predicated region
    $region54: #{tpu_custom_call.1} parent=1 // pred_check
      _
    $region55: #{tpu_custom_call.1} parent=1 // pred_check_branch
      %4794 = sbr.rel (0) target = $region57
    $region56: #{tpu_custom_call.1} parent=1 // pred_region
      _
    $region57: #{tpu_custom_call.1} parent=1 // pred_fallthru
      _
    // Predicated region
    $region58: #{tpu_custom_call.1} parent=1 // pred_check
      _
    $region59: #{tpu_custom_call.1} parent=1 // pred_check_branch
      %4796 = sbr.rel (0) target = $region61
    $region60: #{tpu_custom_call.1} parent=1 // pred_region
      _
    $region61: #{tpu_custom_call.1} parent=1 // pred_fallthru
      _
    %4797 = vsyncpa [#allocation3], 1

</llo_original>
